<compile_context>
chip_gen: v5e
topology: v5e:2x2
jax: 0.10.0
libtpu: 0.0.40
codegen_flags: <defaults>
</compile_context>

<pallas_src>
import functools

import jax
import jax.numpy as jnp
import numpy as np
from jax.experimental import pallas as pl
from jax.experimental.pallas import tpu as pltpu

L_FREQ = 2                                  # positional-encoding octaves
POS_RAW = 3                                 # raw (x, y, z)
POS_FEAT = POS_RAW * (1 + 2 * L_FREQ)       # 15 encoded channels
P_AUG = POS_FEAT + 1                        # +1 ones-row carrying the folded biases
DIR_IN_DIMS = 0                             # forward only works when dir_in_dims == 0
D_HIDDEN = 32
MAX_TM = 4096                               # max rows (lanes) per grid step


def _round_up(n, m):
    return ((n + m - 1) // m) * m


def encode_position(x):
    """Standard NeRF frequency encoding, include-input, L_FREQ octaves (last axis)."""
    outs = [x]
    for i in range(L_FREQ):
        outs.append(jnp.sin((2.0 ** i) * x))
        outs.append(jnp.cos((2.0 ** i) * x))
    return jnp.concatenate(outs, axis=-1)


def _choose_tile(N, max_tm):
    """Row tile (lanes) and padded row count. Keeps >=2 'parallel' blocks when
    possible so v7x can shard the row axis across its two TensorCores."""
    n128 = _round_up(N, 128)
    tm = min(max_tm, n128)
    if n128 >= 2 * 128:
        tm = min(tm, _round_up(n128 // 2, 128))
    n_pad = _round_up(N, tm)
    assert n_pad % tm == 0
    return tm, n_pad


# ----------------------------------------------------------------------------- #
# Pallas kernel: 10-layer MLP in feature-major layout, z loop unrolled in-body.
# ----------------------------------------------------------------------------- #
def _nerf_mlp_kernel(enc_ref, wz_ref, wd_ref, vec_ref, rgb_ref, mean_ref,
                     *, z_sample, inv_z):
    x = enc_ref[...]                                    # (16, TM) bf16, z-invariant
                                                        # (row 15 is the constant 1.0)

    def mm(w, h):                                       # MXU, f32 accumulation
        return jnp.dot(w, h, preferred_element_type=jnp.float32)

    def relu16(v):                                      # inter-layer activations in bf16
        return jnp.maximum(v, 0.0).astype(jnp.bfloat16)

    def col(i):                                         # (D, 1) f32 bias / vector column
        return vec_ref[:, i:i + 1]

    # z-invariant weights / biases, hoisted once per row block
    wd = [wd_ref[i] for i in range(8)]                  # each (D, D) bf16
    bias = [col(i) for i in range(7)]                   # b01..b13, br (f32)
    w_rgb = col(7)                                      # fc_rgb weight, zero-padded
    b_rgb = vec_ref[0:1, 8:9]                           # fc_rgb bias (scalar)

    rows = []
    for zi in range(z_sample):                          # z folded into the body
        w0 = wz_ref[zi, 0]                              # (D, 16) bf16: [W00eff | b00eff]
        w1 = wz_ref[zi, 1]                              # (D, 16) bf16: [W10beff | b10eff]
        # layers0 (first layer carries the folded per-z shift + bias via ones-row)
        h = relu16(mm(w0, x))
        h = relu16(mm(wd[0], h) + bias[0])
        h = relu16(mm(wd[1], h) + bias[1])
        h = relu16(mm(wd[2], h) + bias[2])
        # layers1: cat([h, enc], -1) @ W  ==  W10a @ h + [W10beff|b10eff] @ [enc;1]
        h = relu16(mm(wd[3], h) + mm(w1, x))
        h = relu16(mm(wd[4], h) + bias[3])
        h = relu16(mm(wd[5], h) + bias[4])
        h = relu16(mm(wd[6], h) + bias[5])
        # rgb_layers (D//2 outputs zero-padded to D rows)
        feat = jnp.maximum(mm(wd[7], h) + bias[6], 0.0)            # (D, TM) f32
        # fc_rgb as a VPU/XLU reduction (avoids a 1-wide MXU matmul); lane-dense
        rows.append(jnp.sum(feat * w_rgb, axis=0, keepdims=True) + b_rgb)  # (1, TM)

    stacked = jnp.concatenate(rows, axis=0)             # (z_sample, TM) f32
    rgb_ref[...] = stacked.astype(rgb_ref.dtype)        # single dense store
    mean_ref[...] = jnp.sum(stacked, axis=0, keepdims=True) * inv_z


# ----------------------------------------------------------------------------- #
# Parameter packing: fold the per-z encoding shift AND the per-z biases into the
# first-layer weights (exact, via the sin/cos angle-addition identity + ones-row).
# ----------------------------------------------------------------------------- #
def _pack_params(params, z_total, z_sample):
    D = params["w01"].shape[0]
    P = params["w00"].shape[0]

    # torch layout (out, in)
    W00 = params["w00"].T
    W10a = params["w10a"].T
    W10b = params["w10b"].T

    offs = (jnp.arange(z_sample, dtype=jnp.float32) - z_sample // 2) * (2.0 / z_total)

    # enc(p + [0,0,off]) = M(off) @ enc(p) + off * e_2   (exact, angle addition)
    M = jnp.tile(jnp.eye(P, dtype=jnp.float32)[None], (z_sample, 1, 1))
    for i in range(L_FREQ):
        s = 2.0 ** i
        c, sn = jnp.cos(s * offs), jnp.sin(s * offs)
        rs, rc = 3 + 6 * i + 2, 3 + 6 * i + 5              # sin(s*z), cos(s*z) rows
        M = M.at[:, rs, rs].set(c)
        M = M.at[:, rs, rc].set(sn)
        M = M.at[:, rc, rc].set(c)
        M = M.at[:, rc, rs].set(-sn)

    W00eff = jnp.einsum("oi,zij->zoj", W00, M)             # (z, D, P)
    W10beff = jnp.einsum("oi,zij->zoj", W10b, M)
    b00eff = params["b00"].T[None] + offs[:, None, None] * W00[:, 2:3][None]   # (z, D, 1)
    b10eff = params["b10"].T[None] + offs[:, None, None] * W10b[:, 2:3][None]

    # biases ride in the 16th column, multiplied by the constant ones-row of enc
    w0_aug = jnp.concatenate([W00eff, b00eff], axis=-1)    # (z, D, 16)
    w1_aug = jnp.concatenate([W10beff, b10eff], axis=-1)
    wz = jnp.stack([w0_aug, w1_aug], axis=1).astype(jnp.bfloat16)   # (z, 2, D, 16)

    wr_pad = jnp.zeros((D, D), jnp.float32).at[:D // 2, :].set(params["wr"].T)
    wd = jnp.stack(
        [params["w01"].T, params["w02"].T, params["w03"].T, W10a,
         params["w11"].T, params["w12"].T, params["w13"].T, wr_pad],
        axis=0).astype(jnp.bfloat16)                                  # (8, D, D)

    br_pad = jnp.zeros((D,), jnp.float32).at[:D // 2].set(params["br"][0])
    wrgb_pad = jnp.zeros((D,), jnp.float32).at[:D // 2].set(params["wrgb"][:, 0])
    vec = jnp.stack(
        [params["b01"][0], params["b02"][0], params["b03"][0],
         params["b11"][0], params["b12"][0], params["b13"][0],
         br_pad, wrgb_pad, jnp.full((D,), params["brgb"][0, 0], jnp.float32)],
        axis=1)                                                       # (D, 9)
    return wz, wd, vec


# ----------------------------------------------------------------------------- #
# Wrapper reproducing OfficialNerfMean.forward
# ----------------------------------------------------------------------------- #
def official_nerf_mean_forward(pos_enc, params, z_total=130, z_sample=8,
                               test=False, max_tm=MAX_TM,
                               rgb_dtype=jnp.bfloat16, return_x_enc=True):
    B, H, W, _ = pos_enc.shape
    N = B * H * W

    tm, n_pad = _choose_tile(N, max_tm)

    # Kernel input: z-invariant encoding of the *unshifted* positions, built
    # feature-major directly (rays on the lane axis) with a trailing ones-row.
    x3 = pos_enc.reshape(N, POS_RAW).T                               # (3, N)
    feats = [x3]
    for i in range(L_FREQ):
        feats.append(jnp.sin((2.0 ** i) * x3))
        feats.append(jnp.cos((2.0 ** i) * x3))
    feats.append(jnp.ones((1, N), x3.dtype))                         # bias ones-row
    encT = jnp.concatenate(feats, axis=0).astype(jnp.bfloat16)       # (16, N)
    encT = jnp.pad(encT, ((0, 0), (0, n_pad - N)))                   # (16, n_pad)

    wz, wd, vec = _pack_params(params, z_total, z_sample)

    grid = (n_pad // tm,)                     # 1-D row-block grid; z is in-kernel
    rgb_flat, mean_flat = pl.pallas_call(
        functools.partial(_nerf_mlp_kernel, z_sample=z_sample,
                          inv_z=1.0 / float(z_sample)),
        grid=grid,
        in_specs=[
            pl.BlockSpec((P_AUG, tm), lambda ri: (0, ri)),           # encoded rays
            pl.BlockSpec(wz.shape, lambda ri: (0, 0, 0, 0)),         # per-z folded W (z-invariant block)
            pl.BlockSpec(wd.shape, lambda ri: (0, 0, 0)),            # stacked DxD weights
            pl.BlockSpec(vec.shape, lambda ri: (0, 0)),              # bias / vector columns
        ],
        out_specs=[
            pl.BlockSpec((z_sample, tm), lambda ri: (0, ri)),        # per-z rgb (lane-dense)
            pl.BlockSpec((1, tm), lambda ri: (0, ri)),               # rgb mean
        ],
        out_shape=[
            jax.ShapeDtypeStruct((z_sample, n_pad), rgb_dtype),
            jax.ShapeDtypeStruct((1, n_pad), jnp.float32),
        ],
        compiler_params=pltpu.CompilerParams(
            dimension_semantics=("parallel",)),
    )(encT, wz, wd, vec)

    rgb = rgb_flat[:, :N].reshape(z_sample, B, H, W, 1)
    if test:
        return rgb
    rgb_mean = mean_flat[0, :N].reshape(B, H, W, 1)

    # Aux output of the original forward: per-z shifted + encoded positions.
    # Materialized only on request (it is ~7x the kernel's own HBM traffic).
    x_enc = None
    if return_x_enc:
        offset = (jnp.arange(z_sample, dtype=jnp.float32) - z_sample // 2) * (2.0 / z_total)
        pos_tmp = jnp.tile(pos_enc[None], (z_sample, 1, 1, 1, 1))
        pos_tmp = pos_tmp.at[..., 2].add(offset[:, None, None, None])
        x_enc = encode_position(pos_tmp)                             # (z,B,H,W,P)

    # TODO(synk): L_coh is computed but never returned by the PyTorch forward; omitted.
    return rgb_mean, rgb, x_enc


# ----------------------------------------------------------------------------- #
# Deterministic parameter init (PyTorch nn.Linear default: U(+-1/sqrt(fan_in)))
# Weights stored as (fan_in, fan_out), i.e. transposed vs. torch.
# ----------------------------------------------------------------------------- #
def init_params(key, pos_in_dims=POS_FEAT, dir_in_dims=DIR_IN_DIMS, D=D_HIDDEN):
    def linear(k, fi, fo):
        kw, kb = jax.random.split(k)
        bound = 1.0 / np.sqrt(fi)
        w = jax.random.uniform(kw, (fi, fo), jnp.float32, -bound, bound)
        b = jax.random.uniform(kb, (1, fo), jnp.float32, -bound, bound)
        return w, b

    keys = jax.random.split(key, 16)
    p = {}
    p["w00"], p["b00"] = linear(keys[0], pos_in_dims, D)
    p["w01"], p["b01"] = linear(keys[1], D, D)
    p["w02"], p["b02"] = linear(keys[2], D, D)
    p["w03"], p["b03"] = linear(keys[3], D, D)
    w10, p["b10"] = linear(keys[4], D + pos_in_dims, D)
    p["w10a"] = w10[:D, :]
    p["w10b"] = w10[D:, :]
    p["w11"], p["b11"] = linear(keys[5], D, D)
    p["w12"], p["b12"] = linear(keys[6], D, D)
    p["w13"], p["b13"] = linear(keys[7], D, D)
    p["wr"], p["br"] = linear(keys[8], D + dir_in_dims, D // 2)
    p["wrgb"], _ = linear(keys[9], D // 2, 1)
    p["brgb"] = jnp.full((1, 1), 0.02, jnp.float32)       # fc_rgb bias fixed in __init__
    # fc_density / fc_feature exist in the module but are unused in forward.
    return p


# ----------------------------------------------------------------------------- #
# Pure-JAX f32 reference (original concat formulation) for verification.
# ----------------------------------------------------------------------------- #
def _ref_forward(pos_enc, params, z_total, z_sample):
    offset = (jnp.arange(z_sample, dtype=jnp.float32) - z_sample // 2) * (2.0 / z_total)
    pos_tmp = jnp.tile(pos_enc[None], (z_sample, 1, 1, 1, 1))
    pos_tmp = pos_tmp.at[..., 2].add(offset[:, None, None, None])
    x = encode_position(pos_tmp)
    relu = lambda v: jnp.maximum(v, 0.0)
    h = relu(x @ params["w00"] + params["b00"])
    h = relu(h @ params["w01"] + params["b01"])
    h = relu(h @ params["w02"] + params["b02"])
    h = relu(h @ params["w03"] + params["b03"])
    w10 = jnp.concatenate([params["w10a"], params["w10b"]], axis=0)
    h = relu(jnp.concatenate([h, x], axis=-1) @ w10 + params["b10"])
    h = relu(h @ params["w11"] + params["b11"])
    h = relu(h @ params["w12"] + params["b12"])
    h = relu(h @ params["w13"] + params["b13"])
    feat = relu(h @ params["wr"] + params["br"])
    rgb = feat @ params["wrgb"] + params["brgb"]
    return rgb.mean(axis=0), rgb, x


if __name__ == "__main__":
    B, H, W = 2, 8, 8
    z_total, z_sample = 130, 8

    key = jax.random.PRNGKey(0)
    pos_enc = jax.random.uniform(key, (B, H, W, POS_RAW), jnp.float32, -1.0, 1.0)
    params = init_params(jax.random.PRNGKey(42))

    rgb_mean, rgb, pos_enc_tmp = official_nerf_mean_forward(
        pos_enc, params, z_total=z_total, z_sample=z_sample)
    jax.block_until_ready((rgb_mean, rgb, pos_enc_tmp))

    # sanity shapes
    assert rgb.shape == (z_sample, B, H, W, 1)
    assert rgb_mean.shape == (B, H, W, 1)
    assert pos_enc_tmp.shape == (z_sample, B, H, W, POS_FEAT)

    # verify against the pure-JAX f32 reference
    mean_ref, rgb_ref, x_ref = _ref_forward(pos_enc, params, z_total, z_sample)
    assert float(jnp.max(jnp.abs(pos_enc_tmp - x_ref))) < 1e-5
    # bf16 matmul operands / folded bf16 biases / bf16 rgb writeback -> loose tol
    assert float(jnp.max(jnp.abs(rgb.astype(jnp.float32) - rgb_ref))) < 5e-2
    assert float(jnp.max(jnp.abs(rgb_mean - mean_ref))) < 5e-2

    print("KERNEL_OK")
</pallas_src>

<mosaic_0001>
module attributes {stable_mosaic.version = 11 : i64} {
  func.func @_nerf_mlp_kernel(%arg0: i32, %arg1: memref<16x128xbf16, #tpu.memory_space<vmem>>, %arg2: memref<8x2x32x16xbf16, #tpu.memory_space<vmem>>, %arg3: memref<8x32x32xbf16, #tpu.memory_space<vmem>>, %arg4: memref<32x9xf32, #tpu.memory_space<vmem>>, %arg5: memref<8x128xbf16, #tpu.memory_space<vmem>>, %arg6: memref<1x128xf32, #tpu.memory_space<vmem>>) attributes {dimension_semantics = [#tpu.dimension_semantics<parallel>], iteration_bounds = array<i64: 1>, scalar_prefetch = 0 : i64, scratch_operands = 0 : i64, tpu.core_type = #tpu.core_type<tc>, window_params = [{transform_indices = @transform_0, window_bounds = array<i64: 16, 128>}, {pipeline_mode = #tpu.pipeline_mode<synchronous>, transform_indices = @transform_1, window_bounds = array<i64: 8, 2, 32, 16>}, {pipeline_mode = #tpu.pipeline_mode<synchronous>, transform_indices = @transform_2, window_bounds = array<i64: 8, 32, 32>}, {pipeline_mode = #tpu.pipeline_mode<synchronous>, transform_indices = @transform_3, window_bounds = array<i64: 32, 9>}, {transform_indices = @transform_4, window_bounds = array<i64: 8, 128>}, {transform_indices = @transform_5, window_bounds = array<i64: 1, 128>}]} {
    %c0 = arith.constant 0 : index
    %c0_0 = arith.constant 0 : index
    %0 = vector.load %arg1[%c0, %c0_0] : memref<16x128xbf16, #tpu.memory_space<vmem>>, vector<16x128xbf16>
    %c0_1 = arith.constant 0 : index
    %c0_2 = arith.constant 0 : index
    %c0_3 = arith.constant 0 : index
    %1 = vector.load %arg3[%c0_1, %c0_2, %c0_3] : memref<8x32x32xbf16, #tpu.memory_space<vmem>>, vector<1x32x32xbf16>
    %2 = vector.shape_cast %1 : vector<1x32x32xbf16> to vector<32x32xbf16>
    %c1 = arith.constant 1 : index
    %c0_4 = arith.constant 0 : index
    %c0_5 = arith.constant 0 : index
    %3 = vector.load %arg3[%c1, %c0_4, %c0_5] : memref<8x32x32xbf16, #tpu.memory_space<vmem>>, vector<1x32x32xbf16>
    %4 = vector.shape_cast %3 : vector<1x32x32xbf16> to vector<32x32xbf16>
    %c2 = arith.constant 2 : index
    %c0_6 = arith.constant 0 : index
    %c0_7 = arith.constant 0 : index
    %5 = vector.load %arg3[%c2, %c0_6, %c0_7] : memref<8x32x32xbf16, #tpu.memory_space<vmem>>, vector<1x32x32xbf16>
    %6 = vector.shape_cast %5 : vector<1x32x32xbf16> to vector<32x32xbf16>
    %c3 = arith.constant 3 : index
    %c0_8 = arith.constant 0 : index
    %c0_9 = arith.constant 0 : index
    %7 = vector.load %arg3[%c3, %c0_8, %c0_9] : memref<8x32x32xbf16, #tpu.memory_space<vmem>>, vector<1x32x32xbf16>
    %8 = vector.shape_cast %7 : vector<1x32x32xbf16> to vector<32x32xbf16>
    %c4 = arith.constant 4 : index
    %c0_10 = arith.constant 0 : index
    %c0_11 = arith.constant 0 : index
    %9 = vector.load %arg3[%c4, %c0_10, %c0_11] : memref<8x32x32xbf16, #tpu.memory_space<vmem>>, vector<1x32x32xbf16>
    %10 = vector.shape_cast %9 : vector<1x32x32xbf16> to vector<32x32xbf16>
    %c5 = arith.constant 5 : index
    %c0_12 = arith.constant 0 : index
    %c0_13 = arith.constant 0 : index
    %11 = vector.load %arg3[%c5, %c0_12, %c0_13] : memref<8x32x32xbf16, #tpu.memory_space<vmem>>, vector<1x32x32xbf16>
    %12 = vector.shape_cast %11 : vector<1x32x32xbf16> to vector<32x32xbf16>
    %c6 = arith.constant 6 : index
    %c0_14 = arith.constant 0 : index
    %c0_15 = arith.constant 0 : index
    %13 = vector.load %arg3[%c6, %c0_14, %c0_15] : memref<8x32x32xbf16, #tpu.memory_space<vmem>>, vector<1x32x32xbf16>
    %14 = vector.shape_cast %13 : vector<1x32x32xbf16> to vector<32x32xbf16>
    %c7 = arith.constant 7 : index
    %c0_16 = arith.constant 0 : index
    %c0_17 = arith.constant 0 : index
    %15 = vector.load %arg3[%c7, %c0_16, %c0_17] : memref<8x32x32xbf16, #tpu.memory_space<vmem>>, vector<1x32x32xbf16>
    %16 = vector.shape_cast %15 : vector<1x32x32xbf16> to vector<32x32xbf16>
    %c0_18 = arith.constant 0 : index
    %c0_19 = arith.constant 0 : index
    %17 = vector.load %arg4[%c0_18, %c0_19] : memref<32x9xf32, #tpu.memory_space<vmem>>, vector<32x1xf32>
    %c0_20 = arith.constant 0 : index
    %c1_21 = arith.constant 1 : index
    %18 = vector.load %arg4[%c0_20, %c1_21] : memref<32x9xf32, #tpu.memory_space<vmem>>, vector<32x1xf32>
    %c0_22 = arith.constant 0 : index
    %c2_23 = arith.constant 2 : index
    %19 = vector.load %arg4[%c0_22, %c2_23] : memref<32x9xf32, #tpu.memory_space<vmem>>, vector<32x1xf32>
    %c0_24 = arith.constant 0 : index
    %c3_25 = arith.constant 3 : index
    %20 = vector.load %arg4[%c0_24, %c3_25] : memref<32x9xf32, #tpu.memory_space<vmem>>, vector<32x1xf32>
    %c0_26 = arith.constant 0 : index
    %c4_27 = arith.constant 4 : index
    %21 = vector.load %arg4[%c0_26, %c4_27] : memref<32x9xf32, #tpu.memory_space<vmem>>, vector<32x1xf32>
    %c0_28 = arith.constant 0 : index
    %c5_29 = arith.constant 5 : index
    %22 = vector.load %arg4[%c0_28, %c5_29] : memref<32x9xf32, #tpu.memory_space<vmem>>, vector<32x1xf32>
    %c0_30 = arith.constant 0 : index
    %c6_31 = arith.constant 6 : index
    %23 = vector.load %arg4[%c0_30, %c6_31] : memref<32x9xf32, #tpu.memory_space<vmem>>, vector<32x1xf32>
    %c0_32 = arith.constant 0 : index
    %c7_33 = arith.constant 7 : index
    %24 = vector.load %arg4[%c0_32, %c7_33] : memref<32x9xf32, #tpu.memory_space<vmem>>, vector<32x1xf32>
    %c0_34 = arith.constant 0 : index
    %c8 = arith.constant 8 : index
    %25 = vector.load %arg4[%c0_34, %c8] : memref<32x9xf32, #tpu.memory_space<vmem>>, vector<1x1xf32>
    %c0_35 = arith.constant 0 : index
    %c0_36 = arith.constant 0 : index
    %c0_37 = arith.constant 0 : index
    %c0_38 = arith.constant 0 : index
    %26 = vector.load %arg2[%c0_35, %c0_36, %c0_37, %c0_38] : memref<8x2x32x16xbf16, #tpu.memory_space<vmem>>, vector<1x1x32x16xbf16>
    %27 = vector.shape_cast %26 : vector<1x1x32x16xbf16> to vector<32x16xbf16>
    %c0_39 = arith.constant 0 : index
    %c1_40 = arith.constant 1 : index
    %c0_41 = arith.constant 0 : index
    %c0_42 = arith.constant 0 : index
    %28 = vector.load %arg2[%c0_39, %c1_40, %c0_41, %c0_42] : memref<8x2x32x16xbf16, #tpu.memory_space<vmem>>, vector<1x1x32x16xbf16>
    %29 = vector.shape_cast %28 : vector<1x1x32x16xbf16> to vector<32x16xbf16>
    %cst = arith.constant dense<0.000000e+00> : vector<32x128xf32>
    %30 = tpu.matmul %27, %0, %cst {dimension_numbers = #tpu.dot_dimension_numbers<[1], [0], [0], [1], [0, 0, 1, 1], [], []>} : vector<32x16xbf16>, vector<16x128xbf16>, vector<32x128xf32> -> vector<32x128xf32>
    %cst_43 = arith.constant 0.000000e+00 : f32
    %31 = vector.broadcast %cst_43 : f32 to vector<32x128xf32>
    %32 = arith.maximumf %30, %31 : vector<32x128xf32>
    %33 = arith.truncf %32 : vector<32x128xf32> to vector<32x128xbf16>
    %cst_44 = arith.constant dense<0.000000e+00> : vector<32x128xf32>
    %34 = tpu.matmul %2, %33, %cst_44 {dimension_numbers = #tpu.dot_dimension_numbers<[1], [0], [0], [1], [0, 0, 1, 1], [], []>} : vector<32x32xbf16>, vector<32x128xbf16>, vector<32x128xf32> -> vector<32x128xf32>
    %35 = vector.broadcast %17 : vector<32x1xf32> to vector<32x128xf32>
    %36 = arith.addf %34, %35 : vector<32x128xf32>
    %cst_45 = arith.constant 0.000000e+00 : f32
    %37 = vector.broadcast %cst_45 : f32 to vector<32x128xf32>
    %38 = arith.maximumf %36, %37 : vector<32x128xf32>
    %39 = arith.truncf %38 : vector<32x128xf32> to vector<32x128xbf16>
    %cst_46 = arith.constant dense<0.000000e+00> : vector<32x128xf32>
    %40 = tpu.matmul %4, %39, %cst_46 {dimension_numbers = #tpu.dot_dimension_numbers<[1], [0], [0], [1], [0, 0, 1, 1], [], []>} : vector<32x32xbf16>, vector<32x128xbf16>, vector<32x128xf32> -> vector<32x128xf32>
    %41 = vector.broadcast %18 : vector<32x1xf32> to vector<32x128xf32>
    %42 = arith.addf %40, %41 : vector<32x128xf32>
    %cst_47 = arith.constant 0.000000e+00 : f32
    %43 = vector.broadcast %cst_47 : f32 to vector<32x128xf32>
    %44 = arith.maximumf %42, %43 : vector<32x128xf32>
    %45 = arith.truncf %44 : vector<32x128xf32> to vector<32x128xbf16>
    %cst_48 = arith.constant dense<0.000000e+00> : vector<32x128xf32>
    %46 = tpu.matmul %6, %45, %cst_48 {dimension_numbers = #tpu.dot_dimension_numbers<[1], [0], [0], [1], [0, 0, 1, 1], [], []>} : vector<32x32xbf16>, vector<32x128xbf16>, vector<32x128xf32> -> vector<32x128xf32>
    %47 = vector.broadcast %19 : vector<32x1xf32> to vector<32x128xf32>
    %48 = arith.addf %46, %47 : vector<32x128xf32>
    %cst_49 = arith.constant 0.000000e+00 : f32
    %49 = vector.broadcast %cst_49 : f32 to vector<32x128xf32>
    %50 = arith.maximumf %48, %49 : vector<32x128xf32>
    %51 = arith.truncf %50 : vector<32x128xf32> to vector<32x128xbf16>
    %cst_50 = arith.constant dense<0.000000e+00> : vector<32x128xf32>
    %52 = tpu.matmul %8, %51, %cst_50 {dimension_numbers = #tpu.dot_dimension_numbers<[1], [0], [0], [1], [0, 0, 1, 1], [], []>} : vector<32x32xbf16>, vector<32x128xbf16>, vector<32x128xf32> -> vector<32x128xf32>
    %cst_51 = arith.constant dense<0.000000e+00> : vector<32x128xf32>
    %53 = tpu.matmul %29, %0, %cst_51 {dimension_numbers = #tpu.dot_dimension_numbers<[1], [0], [0], [1], [0, 0, 1, 1], [], []>} : vector<32x16xbf16>, vector<16x128xbf16>, vector<32x128xf32> -> vector<32x128xf32>
    %54 = arith.addf %52, %53 : vector<32x128xf32>
    %cst_52 = arith.constant 0.000000e+00 : f32
    %55 = vector.broadcast %cst_52 : f32 to vector<32x128xf32>
    %56 = arith.maximumf %54, %55 : vector<32x128xf32>
    %57 = arith.truncf %56 : vector<32x128xf32> to vector<32x128xbf16>
    %cst_53 = arith.constant dense<0.000000e+00> : vector<32x128xf32>
    %58 = tpu.matmul %10, %57, %cst_53 {dimension_numbers = #tpu.dot_dimension_numbers<[1], [0], [0], [1], [0, 0, 1, 1], [], []>} : vector<32x32xbf16>, vector<32x128xbf16>, vector<32x128xf32> -> vector<32x128xf32>
    %59 = vector.broadcast %20 : vector<32x1xf32> to vector<32x128xf32>
    %60 = arith.addf %58, %59 : vector<32x128xf32>
    %cst_54 = arith.constant 0.000000e+00 : f32
    %61 = vector.broadcast %cst_54 : f32 to vector<32x128xf32>
    %62 = arith.maximumf %60, %61 : vector<32x128xf32>
    %63 = arith.truncf %62 : vector<32x128xf32> to vector<32x128xbf16>
    %cst_55 = arith.constant dense<0.000000e+00> : vector<32x128xf32>
    %64 = tpu.matmul %12, %63, %cst_55 {dimension_numbers = #tpu.dot_dimension_numbers<[1], [0], [0], [1], [0, 0, 1, 1], [], []>} : vector<32x32xbf16>, vector<32x128xbf16>, vector<32x128xf32> -> vector<32x128xf32>
    %65 = vector.broadcast %21 : vector<32x1xf32> to vector<32x128xf32>
    %66 = arith.addf %64, %65 : vector<32x128xf32>
    %cst_56 = arith.constant 0.000000e+00 : f32
    %67 = vector.broadcast %cst_56 : f32 to vector<32x128xf32>
    %68 = arith.maximumf %66, %67 : vector<32x128xf32>
    %69 = arith.truncf %68 : vector<32x128xf32> to vector<32x128xbf16>
    %cst_57 = arith.constant dense<0.000000e+00> : vector<32x128xf32>
    %70 = tpu.matmul %14, %69, %cst_57 {dimension_numbers = #tpu.dot_dimension_numbers<[1], [0], [0], [1], [0, 0, 1, 1], [], []>} : vector<32x32xbf16>, vector<32x128xbf16>, vector<32x128xf32> -> vector<32x128xf32>
    %71 = vector.broadcast %22 : vector<32x1xf32> to vector<32x128xf32>
    %72 = arith.addf %70, %71 : vector<32x128xf32>
    %cst_58 = arith.constant 0.000000e+00 : f32
    %73 = vector.broadcast %cst_58 : f32 to vector<32x128xf32>
    %74 = arith.maximumf %72, %73 : vector<32x128xf32>
    %75 = arith.truncf %74 : vector<32x128xf32> to vector<32x128xbf16>
    %cst_59 = arith.constant dense<0.000000e+00> : vector<32x128xf32>
    %76 = tpu.matmul %16, %75, %cst_59 {dimension_numbers = #tpu.dot_dimension_numbers<[1], [0], [0], [1], [0, 0, 1, 1], [], []>} : vector<32x32xbf16>, vector<32x128xbf16>, vector<32x128xf32> -> vector<32x128xf32>
    %77 = vector.broadcast %23 : vector<32x1xf32> to vector<32x128xf32>
    %78 = arith.addf %76, %77 : vector<32x128xf32>
    %cst_60 = arith.constant 0.000000e+00 : f32
    %79 = vector.broadcast %cst_60 : f32 to vector<32x128xf32>
    %80 = arith.maximumf %78, %79 : vector<32x128xf32>
    %81 = vector.broadcast %24 : vector<32x1xf32> to vector<32x128xf32>
    %82 = arith.mulf %80, %81 : vector<32x128xf32>
    %cst_61 = arith.constant dense<0.000000e+00> : vector<128xf32>
    %83 = vector.multi_reduction <add>, %82, %cst_61 [0] : vector<32x128xf32> to vector<128xf32>
    %84 = vector.shape_cast %83 : vector<128xf32> to vector<1x128xf32>
    %85 = vector.broadcast %25 : vector<1x1xf32> to vector<1x128xf32>
    %86 = arith.addf %84, %85 : vector<1x128xf32>
    %c1_62 = arith.constant 1 : index
    %c0_63 = arith.constant 0 : index
    %c0_64 = arith.constant 0 : index
    %c0_65 = arith.constant 0 : index
    %87 = vector.load %arg2[%c1_62, %c0_63, %c0_64, %c0_65] : memref<8x2x32x16xbf16, #tpu.memory_space<vmem>>, vector<1x1x32x16xbf16>
    %88 = vector.shape_cast %87 : vector<1x1x32x16xbf16> to vector<32x16xbf16>
    %c1_66 = arith.constant 1 : index
    %c1_67 = arith.constant 1 : index
    %c0_68 = arith.constant 0 : index
    %c0_69 = arith.constant 0 : index
    %89 = vector.load %arg2[%c1_66, %c1_67, %c0_68, %c0_69] : memref<8x2x32x16xbf16, #tpu.memory_space<vmem>>, vector<1x1x32x16xbf16>
    %90 = vector.shape_cast %89 : vector<1x1x32x16xbf16> to vector<32x16xbf16>
    %cst_70 = arith.constant dense<0.000000e+00> : vector<32x128xf32>
    %91 = tpu.matmul %88, %0, %cst_70 {dimension_numbers = #tpu.dot_dimension_numbers<[1], [0], [0], [1], [0, 0, 1, 1], [], []>} : vector<32x16xbf16>, vector<16x128xbf16>, vector<32x128xf32> -> vector<32x128xf32>
    %cst_71 = arith.constant 0.000000e+00 : f32
    %92 = vector.broadcast %cst_71 : f32 to vector<32x128xf32>
    %93 = arith.maximumf %91, %92 : vector<32x128xf32>
    %94 = arith.truncf %93 : vector<32x128xf32> to vector<32x128xbf16>
    %cst_72 = arith.constant dense<0.000000e+00> : vector<32x128xf32>
    %95 = tpu.matmul %2, %94, %cst_72 {dimension_numbers = #tpu.dot_dimension_numbers<[1], [0], [0], [1], [0, 0, 1, 1], [], []>} : vector<32x32xbf16>, vector<32x128xbf16>, vector<32x128xf32> -> vector<32x128xf32>
    %96 = vector.broadcast %17 : vector<32x1xf32> to vector<32x128xf32>
    %97 = arith.addf %95, %96 : vector<32x128xf32>
    %cst_73 = arith.constant 0.000000e+00 : f32
    %98 = vector.broadcast %cst_73 : f32 to vector<32x128xf32>
    %99 = arith.maximumf %97, %98 : vector<32x128xf32>
    %100 = arith.truncf %99 : vector<32x128xf32> to vector<32x128xbf16>
    %cst_74 = arith.constant dense<0.000000e+00> : vector<32x128xf32>
    %101 = tpu.matmul %4, %100, %cst_74 {dimension_numbers = #tpu.dot_dimension_numbers<[1], [0], [0], [1], [0, 0, 1, 1], [], []>} : vector<32x32xbf16>, vector<32x128xbf16>, vector<32x128xf32> -> vector<32x128xf32>
    %102 = vector.broadcast %18 : vector<32x1xf32> to vector<32x128xf32>
    %103 = arith.addf %101, %102 : vector<32x128xf32>
    %cst_75 = arith.constant 0.000000e+00 : f32
    %104 = vector.broadcast %cst_75 : f32 to vector<32x128xf32>
    %105 = arith.maximumf %103, %104 : vector<32x128xf32>
    %106 = arith.truncf %105 : vector<32x128xf32> to vector<32x128xbf16>
    %cst_76 = arith.constant dense<0.000000e+00> : vector<32x128xf32>
    %107 = tpu.matmul %6, %106, %cst_76 {dimension_numbers = #tpu.dot_dimension_numbers<[1], [0], [0], [1], [0, 0, 1, 1], [], []>} : vector<32x32xbf16>, vector<32x128xbf16>, vector<32x128xf32> -> vector<32x128xf32>
    %108 = vector.broadcast %19 : vector<32x1xf32> to vector<32x128xf32>
    %109 = arith.addf %107, %108 : vector<32x128xf32>
    %cst_77 = arith.constant 0.000000e+00 : f32
    %110 = vector.broadcast %cst_77 : f32 to vector<32x128xf32>
    %111 = arith.maximumf %109, %110 : vector<32x128xf32>
    %112 = arith.truncf %111 : vector<32x128xf32> to vector<32x128xbf16>
    %cst_78 = arith.constant dense<0.000000e+00> : vector<32x128xf32>
    %113 = tpu.matmul %8, %112, %cst_78 {dimension_numbers = #tpu.dot_dimension_numbers<[1], [0], [0], [1], [0, 0, 1, 1], [], []>} : vector<32x32xbf16>, vector<32x128xbf16>, vector<32x128xf32> -> vector<32x128xf32>
    %cst_79 = arith.constant dense<0.000000e+00> : vector<32x128xf32>
    %114 = tpu.matmul %90, %0, %cst_79 {dimension_numbers = #tpu.dot_dimension_numbers<[1], [0], [0], [1], [0, 0, 1, 1], [], []>} : vector<32x16xbf16>, vector<16x128xbf16>, vector<32x128xf32> -> vector<32x128xf32>
    %115 = arith.addf %113, %114 : vector<32x128xf32>
    %cst_80 = arith.constant 0.000000e+00 : f32
    %116 = vector.broadcast %cst_80 : f32 to vector<32x128xf32>
    %117 = arith.maximumf %115, %116 : vector<32x128xf32>
    %118 = arith.truncf %117 : vector<32x128xf32> to vector<32x128xbf16>
    %cst_81 = arith.constant dense<0.000000e+00> : vector<32x128xf32>
    %119 = tpu.matmul %10, %118, %cst_81 {dimension_numbers = #tpu.dot_dimension_numbers<[1], [0], [0], [1], [0, 0, 1, 1], [], []>} : vector<32x32xbf16>, vector<32x128xbf16>, vector<32x128xf32> -> vector<32x128xf32>
    %120 = vector.broadcast %20 : vector<32x1xf32> to vector<32x128xf32>
    %121 = arith.addf %119, %120 : vector<32x128xf32>
    %cst_82 = arith.constant 0.000000e+00 : f32
    %122 = vector.broadcast %cst_82 : f32 to vector<32x128xf32>
    %123 = arith.maximumf %121, %122 : vector<32x128xf32>
    %124 = arith.truncf %123 : vector<32x128xf32> to vector<32x128xbf16>
    %cst_83 = arith.constant dense<0.000000e+00> : vector<32x128xf32>
    %125 = tpu.matmul %12, %124, %cst_83 {dimension_numbers = #tpu.dot_dimension_numbers<[1], [0], [0], [1], [0, 0, 1, 1], [], []>} : vector<32x32xbf16>, vector<32x128xbf16>, vector<32x128xf32> -> vector<32x128xf32>
    %126 = vector.broadcast %21 : vector<32x1xf32> to vector<32x128xf32>
    %127 = arith.addf %125, %126 : vector<32x128xf32>
    %cst_84 = arith.constant 0.000000e+00 : f32
    %128 = vector.broadcast %cst_84 : f32 to vector<32x128xf32>
    %129 = arith.maximumf %127, %128 : vector<32x128xf32>
    %130 = arith.truncf %129 : vector<32x128xf32> to vector<32x128xbf16>
    %cst_85 = arith.constant dense<0.000000e+00> : vector<32x128xf32>
    %131 = tpu.matmul %14, %130, %cst_85 {dimension_numbers = #tpu.dot_dimension_numbers<[1], [0], [0], [1], [0, 0, 1, 1], [], []>} : vector<32x32xbf16>, vector<32x128xbf16>, vector<32x128xf32> -> vector<32x128xf32>
    %132 = vector.broadcast %22 : vector<32x1xf32> to vector<32x128xf32>
    %133 = arith.addf %131, %132 : vector<32x128xf32>
    %cst_86 = arith.constant 0.000000e+00 : f32
    %134 = vector.broadcast %cst_86 : f32 to vector<32x128xf32>
    %135 = arith.maximumf %133, %134 : vector<32x128xf32>
    %136 = arith.truncf %135 : vector<32x128xf32> to vector<32x128xbf16>
    %cst_87 = arith.constant dense<0.000000e+00> : vector<32x128xf32>
    %137 = tpu.matmul %16, %136, %cst_87 {dimension_numbers = #tpu.dot_dimension_numbers<[1], [0], [0], [1], [0, 0, 1, 1], [], []>} : vector<32x32xbf16>, vector<32x128xbf16>, vector<32x128xf32> -> vector<32x128xf32>
    %138 = vector.broadcast %23 : vector<32x1xf32> to vector<32x128xf32>
    %139 = arith.addf %137, %138 : vector<32x128xf32>
    %cst_88 = arith.constant 0.000000e+00 : f32
    %140 = vector.broadcast %cst_88 : f32 to vector<32x128xf32>
    %141 = arith.maximumf %139, %140 : vector<32x128xf32>
    %142 = vector.broadcast %24 : vector<32x1xf32> to vector<32x128xf32>
    %143 = arith.mulf %141, %142 : vector<32x128xf32>
    %cst_89 = arith.constant dense<0.000000e+00> : vector<128xf32>
    %144 = vector.multi_reduction <add>, %143, %cst_89 [0] : vector<32x128xf32> to vector<128xf32>
    %145 = vector.shape_cast %144 : vector<128xf32> to vector<1x128xf32>
    %146 = vector.broadcast %25 : vector<1x1xf32> to vector<1x128xf32>
    %147 = arith.addf %145, %146 : vector<1x128xf32>
    %c2_90 = arith.constant 2 : index
    %c0_91 = arith.constant 0 : index
    %c0_92 = arith.constant 0 : index
    %c0_93 = arith.constant 0 : index
    %148 = vector.load %arg2[%c2_90, %c0_91, %c0_92, %c0_93] : memref<8x2x32x16xbf16, #tpu.memory_space<vmem>>, vector<1x1x32x16xbf16>
    %149 = vector.shape_cast %148 : vector<1x1x32x16xbf16> to vector<32x16xbf16>
    %c2_94 = arith.constant 2 : index
    %c1_95 = arith.constant 1 : index
    %c0_96 = arith.constant 0 : index
    %c0_97 = arith.constant 0 : index
    %150 = vector.load %arg2[%c2_94, %c1_95, %c0_96, %c0_97] : memref<8x2x32x16xbf16, #tpu.memory_space<vmem>>, vector<1x1x32x16xbf16>
    %151 = vector.shape_cast %150 : vector<1x1x32x16xbf16> to vector<32x16xbf16>
    %cst_98 = arith.constant dense<0.000000e+00> : vector<32x128xf32>
    %152 = tpu.matmul %149, %0, %cst_98 {dimension_numbers = #tpu.dot_dimension_numbers<[1], [0], [0], [1], [0, 0, 1, 1], [], []>} : vector<32x16xbf16>, vector<16x128xbf16>, vector<32x128xf32> -> vector<32x128xf32>
    %cst_99 = arith.constant 0.000000e+00 : f32
    %153 = vector.broadcast %cst_99 : f32 to vector<32x128xf32>
    %154 = arith.maximumf %152, %153 : vector<32x128xf32>
    %155 = arith.truncf %154 : vector<32x128xf32> to vector<32x128xbf16>
    %cst_100 = arith.constant dense<0.000000e+00> : vector<32x128xf32>
    %156 = tpu.matmul %2, %155, %cst_100 {dimension_numbers = #tpu.dot_dimension_numbers<[1], [0], [0], [1], [0, 0, 1, 1], [], []>} : vector<32x32xbf16>, vector<32x128xbf16>, vector<32x128xf32> -> vector<32x128xf32>
    %157 = vector.broadcast %17 : vector<32x1xf32> to vector<32x128xf32>
    %158 = arith.addf %156, %157 : vector<32x128xf32>
    %cst_101 = arith.constant 0.000000e+00 : f32
    %159 = vector.broadcast %cst_101 : f32 to vector<32x128xf32>
    %160 = arith.maximumf %158, %159 : vector<32x128xf32>
    %161 = arith.truncf %160 : vector<32x128xf32> to vector<32x128xbf16>
    %cst_102 = arith.constant dense<0.000000e+00> : vector<32x128xf32>
    %162 = tpu.matmul %4, %161, %cst_102 {dimension_numbers = #tpu.dot_dimension_numbers<[1], [0], [0], [1], [0, 0, 1, 1], [], []>} : vector<32x32xbf16>, vector<32x128xbf16>, vector<32x128xf32> -> vector<32x128xf32>
    %163 = vector.broadcast %18 : vector<32x1xf32> to vector<32x128xf32>
    %164 = arith.addf %162, %163 : vector<32x128xf32>
    %cst_103 = arith.constant 0.000000e+00 : f32
    %165 = vector.broadcast %cst_103 : f32 to vector<32x128xf32>
    %166 = arith.maximumf %164, %165 : vector<32x128xf32>
    %167 = arith.truncf %166 : vector<32x128xf32> to vector<32x128xbf16>
    %cst_104 = arith.constant dense<0.000000e+00> : vector<32x128xf32>
    %168 = tpu.matmul %6, %167, %cst_104 {dimension_numbers = #tpu.dot_dimension_numbers<[1], [0], [0], [1], [0, 0, 1, 1], [], []>} : vector<32x32xbf16>, vector<32x128xbf16>, vector<32x128xf32> -> vector<32x128xf32>
    %169 = vector.broadcast %19 : vector<32x1xf32> to vector<32x128xf32>
    %170 = arith.addf %168, %169 : vector<32x128xf32>
    %cst_105 = arith.constant 0.000000e+00 : f32
    %171 = vector.broadcast %cst_105 : f32 to vector<32x128xf32>
    %172 = arith.maximumf %170, %171 : vector<32x128xf32>
    %173 = arith.truncf %172 : vector<32x128xf32> to vector<32x128xbf16>
    %cst_106 = arith.constant dense<0.000000e+00> : vector<32x128xf32>
    %174 = tpu.matmul %8, %173, %cst_106 {dimension_numbers = #tpu.dot_dimension_numbers<[1], [0], [0], [1], [0, 0, 1, 1], [], []>} : vector<32x32xbf16>, vector<32x128xbf16>, vector<32x128xf32> -> vector<32x128xf32>
    %cst_107 = arith.constant dense<0.000000e+00> : vector<32x128xf32>
    %175 = tpu.matmul %151, %0, %cst_107 {dimension_numbers = #tpu.dot_dimension_numbers<[1], [0], [0], [1], [0, 0, 1, 1], [], []>} : vector<32x16xbf16>, vector<16x128xbf16>, vector<32x128xf32> -> vector<32x128xf32>
    %176 = arith.addf %174, %175 : vector<32x128xf32>
    %cst_108 = arith.constant 0.000000e+00 : f32
    %177 = vector.broadcast %cst_108 : f32 to vector<32x128xf32>
    %178 = arith.maximumf %176, %177 : vector<32x128xf32>
    %179 = arith.truncf %178 : vector<32x128xf32> to vector<32x128xbf16>
    %cst_109 = arith.constant dense<0.000000e+00> : vector<32x128xf32>
    %180 = tpu.matmul %10, %179, %cst_109 {dimension_numbers = #tpu.dot_dimension_numbers<[1], [0], [0], [1], [0, 0, 1, 1], [], []>} : vector<32x32xbf16>, vector<32x128xbf16>, vector<32x128xf32> -> vector<32x128xf32>
    %181 = vector.broadcast %20 : vector<32x1xf32> to vector<32x128xf32>
    %182 = arith.addf %180, %181 : vector<32x128xf32>
    %cst_110 = arith.constant 0.000000e+00 : f32
    %183 = vector.broadcast %cst_110 : f32 to vector<32x128xf32>
    %184 = arith.maximumf %182, %183 : vector<32x128xf32>
    %185 = arith.truncf %184 : vector<32x128xf32> to vector<32x128xbf16>
    %cst_111 = arith.constant dense<0.000000e+00> : vector<32x128xf32>
    %186 = tpu.matmul %12, %185, %cst_111 {dimension_numbers = #tpu.dot_dimension_numbers<[1], [0], [0], [1], [0, 0, 1, 1], [], []>} : vector<32x32xbf16>, vector<32x128xbf16>, vector<32x128xf32> -> vector<32x128xf32>
    %187 = vector.broadcast %21 : vector<32x1xf32> to vector<32x128xf32>
    %188 = arith.addf %186, %187 : vector<32x128xf32>
    %cst_112 = arith.constant 0.000000e+00 : f32
    %189 = vector.broadcast %cst_112 : f32 to vector<32x128xf32>
    %190 = arith.maximumf %188, %189 : vector<32x128xf32>
    %191 = arith.truncf %190 : vector<32x128xf32> to vector<32x128xbf16>
    %cst_113 = arith.constant dense<0.000000e+00> : vector<32x128xf32>
    %192 = tpu.matmul %14, %191, %cst_113 {dimension_numbers = #tpu.dot_dimension_numbers<[1], [0], [0], [1], [0, 0, 1, 1], [], []>} : vector<32x32xbf16>, vector<32x128xbf16>, vector<32x128xf32> -> vector<32x128xf32>
    %193 = vector.broadcast %22 : vector<32x1xf32> to vector<32x128xf32>
    %194 = arith.addf %192, %193 : vector<32x128xf32>
    %cst_114 = arith.constant 0.000000e+00 : f32
    %195 = vector.broadcast %cst_114 : f32 to vector<32x128xf32>
    %196 = arith.maximumf %194, %195 : vector<32x128xf32>
    %197 = arith.truncf %196 : vector<32x128xf32> to vector<32x128xbf16>
    %cst_115 = arith.constant dense<0.000000e+00> : vector<32x128xf32>
    %198 = tpu.matmul %16, %197, %cst_115 {dimension_numbers = #tpu.dot_dimension_numbers<[1], [0], [0], [1], [0, 0, 1, 1], [], []>} : vector<32x32xbf16>, vector<32x128xbf16>, vector<32x128xf32> -> vector<32x128xf32>
    %199 = vector.broadcast %23 : vector<32x1xf32> to vector<32x128xf32>
    %200 = arith.addf %198, %199 : vector<32x128xf32>
    %cst_116 = arith.constant 0.000000e+00 : f32
    %201 = vector.broadcast %cst_116 : f32 to vector<32x128xf32>
    %202 = arith.maximumf %200, %201 : vector<32x128xf32>
    %203 = vector.broadcast %24 : vector<32x1xf32> to vector<32x128xf32>
    %204 = arith.mulf %202, %203 : vector<32x128xf32>
    %cst_117 = arith.constant dense<0.000000e+00> : vector<128xf32>
    %205 = vector.multi_reduction <add>, %204, %cst_117 [0] : vector<32x128xf32> to vector<128xf32>
    %206 = vector.shape_cast %205 : vector<128xf32> to vector<1x128xf32>
    %207 = vector.broadcast %25 : vector<1x1xf32> to vector<1x128xf32>
    %208 = arith.addf %206, %207 : vector<1x128xf32>
    %c3_118 = arith.constant 3 : index
    %c0_119 = arith.constant 0 : index
    %c0_120 = arith.constant 0 : index
    %c0_121 = arith.constant 0 : index
    %209 = vector.load %arg2[%c3_118, %c0_119, %c0_120, %c0_121] : memref<8x2x32x16xbf16, #tpu.memory_space<vmem>>, vector<1x1x32x16xbf16>
    %210 = vector.shape_cast %209 : vector<1x1x32x16xbf16> to vector<32x16xbf16>
    %c3_122 = arith.constant 3 : index
    %c1_123 = arith.constant 1 : index
    %c0_124 = arith.constant 0 : index
    %c0_125 = arith.constant 0 : index
    %211 = vector.load %arg2[%c3_122, %c1_123, %c0_124, %c0_125] : memref<8x2x32x16xbf16, #tpu.memory_space<vmem>>, vector<1x1x32x16xbf16>
    %212 = vector.shape_cast %211 : vector<1x1x32x16xbf16> to vector<32x16xbf16>
    %cst_126 = arith.constant dense<0.000000e+00> : vector<32x128xf32>
    %213 = tpu.matmul %210, %0, %cst_126 {dimension_numbers = #tpu.dot_dimension_numbers<[1], [0], [0], [1], [0, 0, 1, 1], [], []>} : vector<32x16xbf16>, vector<16x128xbf16>, vector<32x128xf32> -> vector<32x128xf32>
    %cst_127 = arith.constant 0.000000e+00 : f32
    %214 = vector.broadcast %cst_127 : f32 to vector<32x128xf32>
    %215 = arith.maximumf %213, %214 : vector<32x128xf32>
    %216 = arith.truncf %215 : vector<32x128xf32> to vector<32x128xbf16>
    %cst_128 = arith.constant dense<0.000000e+00> : vector<32x128xf32>
    %217 = tpu.matmul %2, %216, %cst_128 {dimension_numbers = #tpu.dot_dimension_numbers<[1], [0], [0], [1], [0, 0, 1, 1], [], []>} : vector<32x32xbf16>, vector<32x128xbf16>, vector<32x128xf32> -> vector<32x128xf32>
    %218 = vector.broadcast %17 : vector<32x1xf32> to vector<32x128xf32>
    %219 = arith.addf %217, %218 : vector<32x128xf32>
    %cst_129 = arith.constant 0.000000e+00 : f32
    %220 = vector.broadcast %cst_129 : f32 to vector<32x128xf32>
    %221 = arith.maximumf %219, %220 : vector<32x128xf32>
    %222 = arith.truncf %221 : vector<32x128xf32> to vector<32x128xbf16>
    %cst_130 = arith.constant dense<0.000000e+00> : vector<32x128xf32>
    %223 = tpu.matmul %4, %222, %cst_130 {dimension_numbers = #tpu.dot_dimension_numbers<[1], [0], [0], [1], [0, 0, 1, 1], [], []>} : vector<32x32xbf16>, vector<32x128xbf16>, vector<32x128xf32> -> vector<32x128xf32>
    %224 = vector.broadcast %18 : vector<32x1xf32> to vector<32x128xf32>
    %225 = arith.addf %223, %224 : vector<32x128xf32>
    %cst_131 = arith.constant 0.000000e+00 : f32
    %226 = vector.broadcast %cst_131 : f32 to vector<32x128xf32>
    %227 = arith.maximumf %225, %226 : vector<32x128xf32>
    %228 = arith.truncf %227 : vector<32x128xf32> to vector<32x128xbf16>
    %cst_132 = arith.constant dense<0.000000e+00> : vector<32x128xf32>
    %229 = tpu.matmul %6, %228, %cst_132 {dimension_numbers = #tpu.dot_dimension_numbers<[1], [0], [0], [1], [0, 0, 1, 1], [], []>} : vector<32x32xbf16>, vector<32x128xbf16>, vector<32x128xf32> -> vector<32x128xf32>
    %230 = vector.broadcast %19 : vector<32x1xf32> to vector<32x128xf32>
    %231 = arith.addf %229, %230 : vector<32x128xf32>
    %cst_133 = arith.constant 0.000000e+00 : f32
    %232 = vector.broadcast %cst_133 : f32 to vector<32x128xf32>
    %233 = arith.maximumf %231, %232 : vector<32x128xf32>
    %234 = arith.truncf %233 : vector<32x128xf32> to vector<32x128xbf16>
    %cst_134 = arith.constant dense<0.000000e+00> : vector<32x128xf32>
    %235 = tpu.matmul %8, %234, %cst_134 {dimension_numbers = #tpu.dot_dimension_numbers<[1], [0], [0], [1], [0, 0, 1, 1], [], []>} : vector<32x32xbf16>, vector<32x128xbf16>, vector<32x128xf32> -> vector<32x128xf32>
    %cst_135 = arith.constant dense<0.000000e+00> : vector<32x128xf32>
    %236 = tpu.matmul %212, %0, %cst_135 {dimension_numbers = #tpu.dot_dimension_numbers<[1], [0], [0], [1], [0, 0, 1, 1], [], []>} : vector<32x16xbf16>, vector<16x128xbf16>, vector<32x128xf32> -> vector<32x128xf32>
    %237 = arith.addf %235, %236 : vector<32x128xf32>
    %cst_136 = arith.constant 0.000000e+00 : f32
    %238 = vector.broadcast %cst_136 : f32 to vector<32x128xf32>
    %239 = arith.maximumf %237, %238 : vector<32x128xf32>
    %240 = arith.truncf %239 : vector<32x128xf32> to vector<32x128xbf16>
    %cst_137 = arith.constant dense<0.000000e+00> : vector<32x128xf32>
    %241 = tpu.matmul %10, %240, %cst_137 {dimension_numbers = #tpu.dot_dimension_numbers<[1], [0], [0], [1], [0, 0, 1, 1], [], []>} : vector<32x32xbf16>, vector<32x128xbf16>, vector<32x128xf32> -> vector<32x128xf32>
    %242 = vector.broadcast %20 : vector<32x1xf32> to vector<32x128xf32>
    %243 = arith.addf %241, %242 : vector<32x128xf32>
    %cst_138 = arith.constant 0.000000e+00 : f32
    %244 = vector.broadcast %cst_138 : f32 to vector<32x128xf32>
    %245 = arith.maximumf %243, %244 : vector<32x128xf32>
    %246 = arith.truncf %245 : vector<32x128xf32> to vector<32x128xbf16>
    %cst_139 = arith.constant dense<0.000000e+00> : vector<32x128xf32>
    %247 = tpu.matmul %12, %246, %cst_139 {dimension_numbers = #tpu.dot_dimension_numbers<[1], [0], [0], [1], [0, 0, 1, 1], [], []>} : vector<32x32xbf16>, vector<32x128xbf16>, vector<32x128xf32> -> vector<32x128xf32>
    %248 = vector.broadcast %21 : vector<32x1xf32> to vector<32x128xf32>
    %249 = arith.addf %247, %248 : vector<32x128xf32>
    %cst_140 = arith.constant 0.000000e+00 : f32
    %250 = vector.broadcast %cst_140 : f32 to vector<32x128xf32>
    %251 = arith.maximumf %249, %250 : vector<32x128xf32>
    %252 = arith.truncf %251 : vector<32x128xf32> to vector<32x128xbf16>
    %cst_141 = arith.constant dense<0.000000e+00> : vector<32x128xf32>
    %253 = tpu.matmul %14, %252, %cst_141 {dimension_numbers = #tpu.dot_dimension_numbers<[1], [0], [0], [1], [0, 0, 1, 1], [], []>} : vector<32x32xbf16>, vector<32x128xbf16>, vector<32x128xf32> -> vector<32x128xf32>
    %254 = vector.broadcast %22 : vector<32x1xf32> to vector<32x128xf32>
    %255 = arith.addf %253, %254 : vector<32x128xf32>
    %cst_142 = arith.constant 0.000000e+00 : f32
    %256 = vector.broadcast %cst_142 : f32 to vector<32x128xf32>
    %257 = arith.maximumf %255, %256 : vector<32x128xf32>
    %258 = arith.truncf %257 : vector<32x128xf32> to vector<32x128xbf16>
    %cst_143 = arith.constant dense<0.000000e+00> : vector<32x128xf32>
    %259 = tpu.matmul %16, %258, %cst_143 {dimension_numbers = #tpu.dot_dimension_numbers<[1], [0], [0], [1], [0, 0, 1, 1], [], []>} : vector<32x32xbf16>, vector<32x128xbf16>, vector<32x128xf32> -> vector<32x128xf32>
    %260 = vector.broadcast %23 : vector<32x1xf32> to vector<32x128xf32>
    %261 = arith.addf %259, %260 : vector<32x128xf32>
    %cst_144 = arith.constant 0.000000e+00 : f32
    %262 = vector.broadcast %cst_144 : f32 to vector<32x128xf32>
    %263 = arith.maximumf %261, %262 : vector<32x128xf32>
    %264 = vector.broadcast %24 : vector<32x1xf32> to vector<32x128xf32>
    %265 = arith.mulf %263, %264 : vector<32x128xf32>
    %cst_145 = arith.constant dense<0.000000e+00> : vector<128xf32>
    %266 = vector.multi_reduction <add>, %265, %cst_145 [0] : vector<32x128xf32> to vector<128xf32>
    %267 = vector.shape_cast %266 : vector<128xf32> to vector<1x128xf32>
    %268 = vector.broadcast %25 : vector<1x1xf32> to vector<1x128xf32>
    %269 = arith.addf %267, %268 : vector<1x128xf32>
    %c4_146 = arith.constant 4 : index
    %c0_147 = arith.constant 0 : index
    %c0_148 = arith.constant 0 : index
    %c0_149 = arith.constant 0 : index
    %270 = vector.load %arg2[%c4_146, %c0_147, %c0_148, %c0_149] : memref<8x2x32x16xbf16, #tpu.memory_space<vmem>>, vector<1x1x32x16xbf16>
    %271 = vector.shape_cast %270 : vector<1x1x32x16xbf16> to vector<32x16xbf16>
    %c4_150 = arith.constant 4 : index
    %c1_151 = arith.constant 1 : index
    %c0_152 = arith.constant 0 : index
    %c0_153 = arith.constant 0 : index
    %272 = vector.load %arg2[%c4_150, %c1_151, %c0_152, %c0_153] : memref<8x2x32x16xbf16, #tpu.memory_space<vmem>>, vector<1x1x32x16xbf16>
    %273 = vector.shape_cast %272 : vector<1x1x32x16xbf16> to vector<32x16xbf16>
    %cst_154 = arith.constant dense<0.000000e+00> : vector<32x128xf32>
    %274 = tpu.matmul %271, %0, %cst_154 {dimension_numbers = #tpu.dot_dimension_numbers<[1], [0], [0], [1], [0, 0, 1, 1], [], []>} : vector<32x16xbf16>, vector<16x128xbf16>, vector<32x128xf32> -> vector<32x128xf32>
    %cst_155 = arith.constant 0.000000e+00 : f32
    %275 = vector.broadcast %cst_155 : f32 to vector<32x128xf32>
    %276 = arith.maximumf %274, %275 : vector<32x128xf32>
    %277 = arith.truncf %276 : vector<32x128xf32> to vector<32x128xbf16>
    %cst_156 = arith.constant dense<0.000000e+00> : vector<32x128xf32>
    %278 = tpu.matmul %2, %277, %cst_156 {dimension_numbers = #tpu.dot_dimension_numbers<[1], [0], [0], [1], [0, 0, 1, 1], [], []>} : vector<32x32xbf16>, vector<32x128xbf16>, vector<32x128xf32> -> vector<32x128xf32>
    %279 = vector.broadcast %17 : vector<32x1xf32> to vector<32x128xf32>
    %280 = arith.addf %278, %279 : vector<32x128xf32>
    %cst_157 = arith.constant 0.000000e+00 : f32
    %281 = vector.broadcast %cst_157 : f32 to vector<32x128xf32>
    %282 = arith.maximumf %280, %281 : vector<32x128xf32>
    %283 = arith.truncf %282 : vector<32x128xf32> to vector<32x128xbf16>
    %cst_158 = arith.constant dense<0.000000e+00> : vector<32x128xf32>
    %284 = tpu.matmul %4, %283, %cst_158 {dimension_numbers = #tpu.dot_dimension_numbers<[1], [0], [0], [1], [0, 0, 1, 1], [], []>} : vector<32x32xbf16>, vector<32x128xbf16>, vector<32x128xf32> -> vector<32x128xf32>
    %285 = vector.broadcast %18 : vector<32x1xf32> to vector<32x128xf32>
    %286 = arith.addf %284, %285 : vector<32x128xf32>
    %cst_159 = arith.constant 0.000000e+00 : f32
    %287 = vector.broadcast %cst_159 : f32 to vector<32x128xf32>
    %288 = arith.maximumf %286, %287 : vector<32x128xf32>
    %289 = arith.truncf %288 : vector<32x128xf32> to vector<32x128xbf16>
    %cst_160 = arith.constant dense<0.000000e+00> : vector<32x128xf32>
    %290 = tpu.matmul %6, %289, %cst_160 {dimension_numbers = #tpu.dot_dimension_numbers<[1], [0], [0], [1], [0, 0, 1, 1], [], []>} : vector<32x32xbf16>, vector<32x128xbf16>, vector<32x128xf32> -> vector<32x128xf32>
    %291 = vector.broadcast %19 : vector<32x1xf32> to vector<32x128xf32>
    %292 = arith.addf %290, %291 : vector<32x128xf32>
    %cst_161 = arith.constant 0.000000e+00 : f32
    %293 = vector.broadcast %cst_161 : f32 to vector<32x128xf32>
    %294 = arith.maximumf %292, %293 : vector<32x128xf32>
    %295 = arith.truncf %294 : vector<32x128xf32> to vector<32x128xbf16>
    %cst_162 = arith.constant dense<0.000000e+00> : vector<32x128xf32>
    %296 = tpu.matmul %8, %295, %cst_162 {dimension_numbers = #tpu.dot_dimension_numbers<[1], [0], [0], [1], [0, 0, 1, 1], [], []>} : vector<32x32xbf16>, vector<32x128xbf16>, vector<32x128xf32> -> vector<32x128xf32>
    %cst_163 = arith.constant dense<0.000000e+00> : vector<32x128xf32>
    %297 = tpu.matmul %273, %0, %cst_163 {dimension_numbers = #tpu.dot_dimension_numbers<[1], [0], [0], [1], [0, 0, 1, 1], [], []>} : vector<32x16xbf16>, vector<16x128xbf16>, vector<32x128xf32> -> vector<32x128xf32>
    %298 = arith.addf %296, %297 : vector<32x128xf32>
    %cst_164 = arith.constant 0.000000e+00 : f32
    %299 = vector.broadcast %cst_164 : f32 to vector<32x128xf32>
    %300 = arith.maximumf %298, %299 : vector<32x128xf32>
    %301 = arith.truncf %300 : vector<32x128xf32> to vector<32x128xbf16>
    %cst_165 = arith.constant dense<0.000000e+00> : vector<32x128xf32>
    %302 = tpu.matmul %10, %301, %cst_165 {dimension_numbers = #tpu.dot_dimension_numbers<[1], [0], [0], [1], [0, 0, 1, 1], [], []>} : vector<32x32xbf16>, vector<32x128xbf16>, vector<32x128xf32> -> vector<32x128xf32>
    %303 = vector.broadcast %20 : vector<32x1xf32> to vector<32x128xf32>
    %304 = arith.addf %302, %303 : vector<32x128xf32>
    %cst_166 = arith.constant 0.000000e+00 : f32
    %305 = vector.broadcast %cst_166 : f32 to vector<32x128xf32>
    %306 = arith.maximumf %304, %305 : vector<32x128xf32>
    %307 = arith.truncf %306 : vector<32x128xf32> to vector<32x128xbf16>
    %cst_167 = arith.constant dense<0.000000e+00> : vector<32x128xf32>
    %308 = tpu.matmul %12, %307, %cst_167 {dimension_numbers = #tpu.dot_dimension_numbers<[1], [0], [0], [1], [0, 0, 1, 1], [], []>} : vector<32x32xbf16>, vector<32x128xbf16>, vector<32x128xf32> -> vector<32x128xf32>
    %309 = vector.broadcast %21 : vector<32x1xf32> to vector<32x128xf32>
    %310 = arith.addf %308, %309 : vector<32x128xf32>
    %cst_168 = arith.constant 0.000000e+00 : f32
    %311 = vector.broadcast %cst_168 : f32 to vector<32x128xf32>
    %312 = arith.maximumf %310, %311 : vector<32x128xf32>
    %313 = arith.truncf %312 : vector<32x128xf32> to vector<32x128xbf16>
    %cst_169 = arith.constant dense<0.000000e+00> : vector<32x128xf32>
    %314 = tpu.matmul %14, %313, %cst_169 {dimension_numbers = #tpu.dot_dimension_numbers<[1], [0], [0], [1], [0, 0, 1, 1], [], []>} : vector<32x32xbf16>, vector<32x128xbf16>, vector<32x128xf32> -> vector<32x128xf32>
    %315 = vector.broadcast %22 : vector<32x1xf32> to vector<32x128xf32>
    %316 = arith.addf %314, %315 : vector<32x128xf32>
    %cst_170 = arith.constant 0.000000e+00 : f32
    %317 = vector.broadcast %cst_170 : f32 to vector<32x128xf32>
    %318 = arith.maximumf %316, %317 : vector<32x128xf32>
    %319 = arith.truncf %318 : vector<32x128xf32> to vector<32x128xbf16>
    %cst_171 = arith.constant dense<0.000000e+00> : vector<32x128xf32>
    %320 = tpu.matmul %16, %319, %cst_171 {dimension_numbers = #tpu.dot_dimension_numbers<[1], [0], [0], [1], [0, 0, 1, 1], [], []>} : vector<32x32xbf16>, vector<32x128xbf16>, vector<32x128xf32> -> vector<32x128xf32>
    %321 = vector.broadcast %23 : vector<32x1xf32> to vector<32x128xf32>
    %322 = arith.addf %320, %321 : vector<32x128xf32>
    %cst_172 = arith.constant 0.000000e+00 : f32
    %323 = vector.broadcast %cst_172 : f32 to vector<32x128xf32>
    %324 = arith.maximumf %322, %323 : vector<32x128xf32>
    %325 = vector.broadcast %24 : vector<32x1xf32> to vector<32x128xf32>
    %326 = arith.mulf %324, %325 : vector<32x128xf32>
    %cst_173 = arith.constant dense<0.000000e+00> : vector<128xf32>
    %327 = vector.multi_reduction <add>, %326, %cst_173 [0] : vector<32x128xf32> to vector<128xf32>
    %328 = vector.shape_cast %327 : vector<128xf32> to vector<1x128xf32>
    %329 = vector.broadcast %25 : vector<1x1xf32> to vector<1x128xf32>
    %330 = arith.addf %328, %329 : vector<1x128xf32>
    %c5_174 = arith.constant 5 : index
    %c0_175 = arith.constant 0 : index
    %c0_176 = arith.constant 0 : index
    %c0_177 = arith.constant 0 : index
    %331 = vector.load %arg2[%c5_174, %c0_175, %c0_176, %c0_177] : memref<8x2x32x16xbf16, #tpu.memory_space<vmem>>, vector<1x1x32x16xbf16>
    %332 = vector.shape_cast %331 : vector<1x1x32x16xbf16> to vector<32x16xbf16>
    %c5_178 = arith.constant 5 : index
    %c1_179 = arith.constant 1 : index
    %c0_180 = arith.constant 0 : index
    %c0_181 = arith.constant 0 : index
    %333 = vector.load %arg2[%c5_178, %c1_179, %c0_180, %c0_181] : memref<8x2x32x16xbf16, #tpu.memory_space<vmem>>, vector<1x1x32x16xbf16>
    %334 = vector.shape_cast %333 : vector<1x1x32x16xbf16> to vector<32x16xbf16>
    %cst_182 = arith.constant dense<0.000000e+00> : vector<32x128xf32>
    %335 = tpu.matmul %332, %0, %cst_182 {dimension_numbers = #tpu.dot_dimension_numbers<[1], [0], [0], [1], [0, 0, 1, 1], [], []>} : vector<32x16xbf16>, vector<16x128xbf16>, vector<32x128xf32> -> vector<32x128xf32>
    %cst_183 = arith.constant 0.000000e+00 : f32
    %336 = vector.broadcast %cst_183 : f32 to vector<32x128xf32>
    %337 = arith.maximumf %335, %336 : vector<32x128xf32>
    %338 = arith.truncf %337 : vector<32x128xf32> to vector<32x128xbf16>
    %cst_184 = arith.constant dense<0.000000e+00> : vector<32x128xf32>
    %339 = tpu.matmul %2, %338, %cst_184 {dimension_numbers = #tpu.dot_dimension_numbers<[1], [0], [0], [1], [0, 0, 1, 1], [], []>} : vector<32x32xbf16>, vector<32x128xbf16>, vector<32x128xf32> -> vector<32x128xf32>
    %340 = vector.broadcast %17 : vector<32x1xf32> to vector<32x128xf32>
    %341 = arith.addf %339, %340 : vector<32x128xf32>
    %cst_185 = arith.constant 0.000000e+00 : f32
    %342 = vector.broadcast %cst_185 : f32 to vector<32x128xf32>
    %343 = arith.maximumf %341, %342 : vector<32x128xf32>
    %344 = arith.truncf %343 : vector<32x128xf32> to vector<32x128xbf16>
    %cst_186 = arith.constant dense<0.000000e+00> : vector<32x128xf32>
    %345 = tpu.matmul %4, %344, %cst_186 {dimension_numbers = #tpu.dot_dimension_numbers<[1], [0], [0], [1], [0, 0, 1, 1], [], []>} : vector<32x32xbf16>, vector<32x128xbf16>, vector<32x128xf32> -> vector<32x128xf32>
    %346 = vector.broadcast %18 : vector<32x1xf32> to vector<32x128xf32>
    %347 = arith.addf %345, %346 : vector<32x128xf32>
    %cst_187 = arith.constant 0.000000e+00 : f32
    %348 = vector.broadcast %cst_187 : f32 to vector<32x128xf32>
    %349 = arith.maximumf %347, %348 : vector<32x128xf32>
    %350 = arith.truncf %349 : vector<32x128xf32> to vector<32x128xbf16>
    %cst_188 = arith.constant dense<0.000000e+00> : vector<32x128xf32>
    %351 = tpu.matmul %6, %350, %cst_188 {dimension_numbers = #tpu.dot_dimension_numbers<[1], [0], [0], [1], [0, 0, 1, 1], [], []>} : vector<32x32xbf16>, vector<32x128xbf16>, vector<32x128xf32> -> vector<32x128xf32>
    %352 = vector.broadcast %19 : vector<32x1xf32> to vector<32x128xf32>
    %353 = arith.addf %351, %352 : vector<32x128xf32>
    %cst_189 = arith.constant 0.000000e+00 : f32
    %354 = vector.broadcast %cst_189 : f32 to vector<32x128xf32>
    %355 = arith.maximumf %353, %354 : vector<32x128xf32>
    %356 = arith.truncf %355 : vector<32x128xf32> to vector<32x128xbf16>
    %cst_190 = arith.constant dense<0.000000e+00> : vector<32x128xf32>
    %357 = tpu.matmul %8, %356, %cst_190 {dimension_numbers = #tpu.dot_dimension_numbers<[1], [0], [0], [1], [0, 0, 1, 1], [], []>} : vector<32x32xbf16>, vector<32x128xbf16>, vector<32x128xf32> -> vector<32x128xf32>
    %cst_191 = arith.constant dense<0.000000e+00> : vector<32x128xf32>
    %358 = tpu.matmul %334, %0, %cst_191 {dimension_numbers = #tpu.dot_dimension_numbers<[1], [0], [0], [1], [0, 0, 1, 1], [], []>} : vector<32x16xbf16>, vector<16x128xbf16>, vector<32x128xf32> -> vector<32x128xf32>
    %359 = arith.addf %357, %358 : vector<32x128xf32>
    %cst_192 = arith.constant 0.000000e+00 : f32
    %360 = vector.broadcast %cst_192 : f32 to vector<32x128xf32>
    %361 = arith.maximumf %359, %360 : vector<32x128xf32>
    %362 = arith.truncf %361 : vector<32x128xf32> to vector<32x128xbf16>
    %cst_193 = arith.constant dense<0.000000e+00> : vector<32x128xf32>
    %363 = tpu.matmul %10, %362, %cst_193 {dimension_numbers = #tpu.dot_dimension_numbers<[1], [0], [0], [1], [0, 0, 1, 1], [], []>} : vector<32x32xbf16>, vector<32x128xbf16>, vector<32x128xf32> -> vector<32x128xf32>
    %364 = vector.broadcast %20 : vector<32x1xf32> to vector<32x128xf32>
    %365 = arith.addf %363, %364 : vector<32x128xf32>
    %cst_194 = arith.constant 0.000000e+00 : f32
    %366 = vector.broadcast %cst_194 : f32 to vector<32x128xf32>
    %367 = arith.maximumf %365, %366 : vector<32x128xf32>
    %368 = arith.truncf %367 : vector<32x128xf32> to vector<32x128xbf16>
    %cst_195 = arith.constant dense<0.000000e+00> : vector<32x128xf32>
    %369 = tpu.matmul %12, %368, %cst_195 {dimension_numbers = #tpu.dot_dimension_numbers<[1], [0], [0], [1], [0, 0, 1, 1], [], []>} : vector<32x32xbf16>, vector<32x128xbf16>, vector<32x128xf32> -> vector<32x128xf32>
    %370 = vector.broadcast %21 : vector<32x1xf32> to vector<32x128xf32>
    %371 = arith.addf %369, %370 : vector<32x128xf32>
    %cst_196 = arith.constant 0.000000e+00 : f32
    %372 = vector.broadcast %cst_196 : f32 to vector<32x128xf32>
    %373 = arith.maximumf %371, %372 : vector<32x128xf32>
    %374 = arith.truncf %373 : vector<32x128xf32> to vector<32x128xbf16>
    %cst_197 = arith.constant dense<0.000000e+00> : vector<32x128xf32>
    %375 = tpu.matmul %14, %374, %cst_197 {dimension_numbers = #tpu.dot_dimension_numbers<[1], [0], [0], [1], [0, 0, 1, 1], [], []>} : vector<32x32xbf16>, vector<32x128xbf16>, vector<32x128xf32> -> vector<32x128xf32>
    %376 = vector.broadcast %22 : vector<32x1xf32> to vector<32x128xf32>
    %377 = arith.addf %375, %376 : vector<32x128xf32>
    %cst_198 = arith.constant 0.000000e+00 : f32
    %378 = vector.broadcast %cst_198 : f32 to vector<32x128xf32>
    %379 = arith.maximumf %377, %378 : vector<32x128xf32>
    %380 = arith.truncf %379 : vector<32x128xf32> to vector<32x128xbf16>
    %cst_199 = arith.constant dense<0.000000e+00> : vector<32x128xf32>
    %381 = tpu.matmul %16, %380, %cst_199 {dimension_numbers = #tpu.dot_dimension_numbers<[1], [0], [0], [1], [0, 0, 1, 1], [], []>} : vector<32x32xbf16>, vector<32x128xbf16>, vector<32x128xf32> -> vector<32x128xf32>
    %382 = vector.broadcast %23 : vector<32x1xf32> to vector<32x128xf32>
    %383 = arith.addf %381, %382 : vector<32x128xf32>
    %cst_200 = arith.constant 0.000000e+00 : f32
    %384 = vector.broadcast %cst_200 : f32 to vector<32x128xf32>
    %385 = arith.maximumf %383, %384 : vector<32x128xf32>
    %386 = vector.broadcast %24 : vector<32x1xf32> to vector<32x128xf32>
    %387 = arith.mulf %385, %386 : vector<32x128xf32>
    %cst_201 = arith.constant dense<0.000000e+00> : vector<128xf32>
    %388 = vector.multi_reduction <add>, %387, %cst_201 [0] : vector<32x128xf32> to vector<128xf32>
    %389 = vector.shape_cast %388 : vector<128xf32> to vector<1x128xf32>
    %390 = vector.broadcast %25 : vector<1x1xf32> to vector<1x128xf32>
    %391 = arith.addf %389, %390 : vector<1x128xf32>
    %c6_202 = arith.constant 6 : index
    %c0_203 = arith.constant 0 : index
    %c0_204 = arith.constant 0 : index
    %c0_205 = arith.constant 0 : index
    %392 = vector.load %arg2[%c6_202, %c0_203, %c0_204, %c0_205] : memref<8x2x32x16xbf16, #tpu.memory_space<vmem>>, vector<1x1x32x16xbf16>
    %393 = vector.shape_cast %392 : vector<1x1x32x16xbf16> to vector<32x16xbf16>
    %c6_206 = arith.constant 6 : index
    %c1_207 = arith.constant 1 : index
    %c0_208 = arith.constant 0 : index
    %c0_209 = arith.constant 0 : index
    %394 = vector.load %arg2[%c6_206, %c1_207, %c0_208, %c0_209] : memref<8x2x32x16xbf16, #tpu.memory_space<vmem>>, vector<1x1x32x16xbf16>
    %395 = vector.shape_cast %394 : vector<1x1x32x16xbf16> to vector<32x16xbf16>
    %cst_210 = arith.constant dense<0.000000e+00> : vector<32x128xf32>
    %396 = tpu.matmul %393, %0, %cst_210 {dimension_numbers = #tpu.dot_dimension_numbers<[1], [0], [0], [1], [0, 0, 1, 1], [], []>} : vector<32x16xbf16>, vector<16x128xbf16>, vector<32x128xf32> -> vector<32x128xf32>
    %cst_211 = arith.constant 0.000000e+00 : f32
    %397 = vector.broadcast %cst_211 : f32 to vector<32x128xf32>
    %398 = arith.maximumf %396, %397 : vector<32x128xf32>
    %399 = arith.truncf %398 : vector<32x128xf32> to vector<32x128xbf16>
    %cst_212 = arith.constant dense<0.000000e+00> : vector<32x128xf32>
    %400 = tpu.matmul %2, %399, %cst_212 {dimension_numbers = #tpu.dot_dimension_numbers<[1], [0], [0], [1], [0, 0, 1, 1], [], []>} : vector<32x32xbf16>, vector<32x128xbf16>, vector<32x128xf32> -> vector<32x128xf32>
    %401 = vector.broadcast %17 : vector<32x1xf32> to vector<32x128xf32>
    %402 = arith.addf %400, %401 : vector<32x128xf32>
    %cst_213 = arith.constant 0.000000e+00 : f32
    %403 = vector.broadcast %cst_213 : f32 to vector<32x128xf32>
    %404 = arith.maximumf %402, %403 : vector<32x128xf32>
    %405 = arith.truncf %404 : vector<32x128xf32> to vector<32x128xbf16>
    %cst_214 = arith.constant dense<0.000000e+00> : vector<32x128xf32>
    %406 = tpu.matmul %4, %405, %cst_214 {dimension_numbers = #tpu.dot_dimension_numbers<[1], [0], [0], [1], [0, 0, 1, 1], [], []>} : vector<32x32xbf16>, vector<32x128xbf16>, vector<32x128xf32> -> vector<32x128xf32>
    %407 = vector.broadcast %18 : vector<32x1xf32> to vector<32x128xf32>
    %408 = arith.addf %406, %407 : vector<32x128xf32>
    %cst_215 = arith.constant 0.000000e+00 : f32
    %409 = vector.broadcast %cst_215 : f32 to vector<32x128xf32>
    %410 = arith.maximumf %408, %409 : vector<32x128xf32>
    %411 = arith.truncf %410 : vector<32x128xf32> to vector<32x128xbf16>
    %cst_216 = arith.constant dense<0.000000e+00> : vector<32x128xf32>
    %412 = tpu.matmul %6, %411, %cst_216 {dimension_numbers = #tpu.dot_dimension_numbers<[1], [0], [0], [1], [0, 0, 1, 1], [], []>} : vector<32x32xbf16>, vector<32x128xbf16>, vector<32x128xf32> -> vector<32x128xf32>
    %413 = vector.broadcast %19 : vector<32x1xf32> to vector<32x128xf32>
    %414 = arith.addf %412, %413 : vector<32x128xf32>
    %cst_217 = arith.constant 0.000000e+00 : f32
    %415 = vector.broadcast %cst_217 : f32 to vector<32x128xf32>
    %416 = arith.maximumf %414, %415 : vector<32x128xf32>
    %417 = arith.truncf %416 : vector<32x128xf32> to vector<32x128xbf16>
    %cst_218 = arith.constant dense<0.000000e+00> : vector<32x128xf32>
    %418 = tpu.matmul %8, %417, %cst_218 {dimension_numbers = #tpu.dot_dimension_numbers<[1], [0], [0], [1], [0, 0, 1, 1], [], []>} : vector<32x32xbf16>, vector<32x128xbf16>, vector<32x128xf32> -> vector<32x128xf32>
    %cst_219 = arith.constant dense<0.000000e+00> : vector<32x128xf32>
    %419 = tpu.matmul %395, %0, %cst_219 {dimension_numbers = #tpu.dot_dimension_numbers<[1], [0], [0], [1], [0, 0, 1, 1], [], []>} : vector<32x16xbf16>, vector<16x128xbf16>, vector<32x128xf32> -> vector<32x128xf32>
    %420 = arith.addf %418, %419 : vector<32x128xf32>
    %cst_220 = arith.constant 0.000000e+00 : f32
    %421 = vector.broadcast %cst_220 : f32 to vector<32x128xf32>
    %422 = arith.maximumf %420, %421 : vector<32x128xf32>
    %423 = arith.truncf %422 : vector<32x128xf32> to vector<32x128xbf16>
    %cst_221 = arith.constant dense<0.000000e+00> : vector<32x128xf32>
    %424 = tpu.matmul %10, %423, %cst_221 {dimension_numbers = #tpu.dot_dimension_numbers<[1], [0], [0], [1], [0, 0, 1, 1], [], []>} : vector<32x32xbf16>, vector<32x128xbf16>, vector<32x128xf32> -> vector<32x128xf32>
    %425 = vector.broadcast %20 : vector<32x1xf32> to vector<32x128xf32>
    %426 = arith.addf %424, %425 : vector<32x128xf32>
    %cst_222 = arith.constant 0.000000e+00 : f32
    %427 = vector.broadcast %cst_222 : f32 to vector<32x128xf32>
    %428 = arith.maximumf %426, %427 : vector<32x128xf32>
    %429 = arith.truncf %428 : vector<32x128xf32> to vector<32x128xbf16>
    %cst_223 = arith.constant dense<0.000000e+00> : vector<32x128xf32>
    %430 = tpu.matmul %12, %429, %cst_223 {dimension_numbers = #tpu.dot_dimension_numbers<[1], [0], [0], [1], [0, 0, 1, 1], [], []>} : vector<32x32xbf16>, vector<32x128xbf16>, vector<32x128xf32> -> vector<32x128xf32>
    %431 = vector.broadcast %21 : vector<32x1xf32> to vector<32x128xf32>
    %432 = arith.addf %430, %431 : vector<32x128xf32>
    %cst_224 = arith.constant 0.000000e+00 : f32
    %433 = vector.broadcast %cst_224 : f32 to vector<32x128xf32>
    %434 = arith.maximumf %432, %433 : vector<32x128xf32>
    %435 = arith.truncf %434 : vector<32x128xf32> to vector<32x128xbf16>
    %cst_225 = arith.constant dense<0.000000e+00> : vector<32x128xf32>
    %436 = tpu.matmul %14, %435, %cst_225 {dimension_numbers = #tpu.dot_dimension_numbers<[1], [0], [0], [1], [0, 0, 1, 1], [], []>} : vector<32x32xbf16>, vector<32x128xbf16>, vector<32x128xf32> -> vector<32x128xf32>
    %437 = vector.broadcast %22 : vector<32x1xf32> to vector<32x128xf32>
    %438 = arith.addf %436, %437 : vector<32x128xf32>
    %cst_226 = arith.constant 0.000000e+00 : f32
    %439 = vector.broadcast %cst_226 : f32 to vector<32x128xf32>
    %440 = arith.maximumf %438, %439 : vector<32x128xf32>
    %441 = arith.truncf %440 : vector<32x128xf32> to vector<32x128xbf16>
    %cst_227 = arith.constant dense<0.000000e+00> : vector<32x128xf32>
    %442 = tpu.matmul %16, %441, %cst_227 {dimension_numbers = #tpu.dot_dimension_numbers<[1], [0], [0], [1], [0, 0, 1, 1], [], []>} : vector<32x32xbf16>, vector<32x128xbf16>, vector<32x128xf32> -> vector<32x128xf32>
    %443 = vector.broadcast %23 : vector<32x1xf32> to vector<32x128xf32>
    %444 = arith.addf %442, %443 : vector<32x128xf32>
    %cst_228 = arith.constant 0.000000e+00 : f32
    %445 = vector.broadcast %cst_228 : f32 to vector<32x128xf32>
    %446 = arith.maximumf %444, %445 : vector<32x128xf32>
    %447 = vector.broadcast %24 : vector<32x1xf32> to vector<32x128xf32>
    %448 = arith.mulf %446, %447 : vector<32x128xf32>
    %cst_229 = arith.constant dense<0.000000e+00> : vector<128xf32>
    %449 = vector.multi_reduction <add>, %448, %cst_229 [0] : vector<32x128xf32> to vector<128xf32>
    %450 = vector.shape_cast %449 : vector<128xf32> to vector<1x128xf32>
    %451 = vector.broadcast %25 : vector<1x1xf32> to vector<1x128xf32>
    %452 = arith.addf %450, %451 : vector<1x128xf32>
    %c7_230 = arith.constant 7 : index
    %c0_231 = arith.constant 0 : index
    %c0_232 = arith.constant 0 : index
    %c0_233 = arith.constant 0 : index
    %453 = vector.load %arg2[%c7_230, %c0_231, %c0_232, %c0_233] : memref<8x2x32x16xbf16, #tpu.memory_space<vmem>>, vector<1x1x32x16xbf16>
    %454 = vector.shape_cast %453 : vector<1x1x32x16xbf16> to vector<32x16xbf16>
    %c7_234 = arith.constant 7 : index
    %c1_235 = arith.constant 1 : index
    %c0_236 = arith.constant 0 : index
    %c0_237 = arith.constant 0 : index
    %455 = vector.load %arg2[%c7_234, %c1_235, %c0_236, %c0_237] : memref<8x2x32x16xbf16, #tpu.memory_space<vmem>>, vector<1x1x32x16xbf16>
    %456 = vector.shape_cast %455 : vector<1x1x32x16xbf16> to vector<32x16xbf16>
    %cst_238 = arith.constant dense<0.000000e+00> : vector<32x128xf32>
    %457 = tpu.matmul %454, %0, %cst_238 {dimension_numbers = #tpu.dot_dimension_numbers<[1], [0], [0], [1], [0, 0, 1, 1], [], []>} : vector<32x16xbf16>, vector<16x128xbf16>, vector<32x128xf32> -> vector<32x128xf32>
    %cst_239 = arith.constant 0.000000e+00 : f32
    %458 = vector.broadcast %cst_239 : f32 to vector<32x128xf32>
    %459 = arith.maximumf %457, %458 : vector<32x128xf32>
    %460 = arith.truncf %459 : vector<32x128xf32> to vector<32x128xbf16>
    %cst_240 = arith.constant dense<0.000000e+00> : vector<32x128xf32>
    %461 = tpu.matmul %2, %460, %cst_240 {dimension_numbers = #tpu.dot_dimension_numbers<[1], [0], [0], [1], [0, 0, 1, 1], [], []>} : vector<32x32xbf16>, vector<32x128xbf16>, vector<32x128xf32> -> vector<32x128xf32>
    %462 = vector.broadcast %17 : vector<32x1xf32> to vector<32x128xf32>
    %463 = arith.addf %461, %462 : vector<32x128xf32>
    %cst_241 = arith.constant 0.000000e+00 : f32
    %464 = vector.broadcast %cst_241 : f32 to vector<32x128xf32>
    %465 = arith.maximumf %463, %464 : vector<32x128xf32>
    %466 = arith.truncf %465 : vector<32x128xf32> to vector<32x128xbf16>
    %cst_242 = arith.constant dense<0.000000e+00> : vector<32x128xf32>
    %467 = tpu.matmul %4, %466, %cst_242 {dimension_numbers = #tpu.dot_dimension_numbers<[1], [0], [0], [1], [0, 0, 1, 1], [], []>} : vector<32x32xbf16>, vector<32x128xbf16>, vector<32x128xf32> -> vector<32x128xf32>
    %468 = vector.broadcast %18 : vector<32x1xf32> to vector<32x128xf32>
    %469 = arith.addf %467, %468 : vector<32x128xf32>
    %cst_243 = arith.constant 0.000000e+00 : f32
    %470 = vector.broadcast %cst_243 : f32 to vector<32x128xf32>
    %471 = arith.maximumf %469, %470 : vector<32x128xf32>
    %472 = arith.truncf %471 : vector<32x128xf32> to vector<32x128xbf16>
    %cst_244 = arith.constant dense<0.000000e+00> : vector<32x128xf32>
    %473 = tpu.matmul %6, %472, %cst_244 {dimension_numbers = #tpu.dot_dimension_numbers<[1], [0], [0], [1], [0, 0, 1, 1], [], []>} : vector<32x32xbf16>, vector<32x128xbf16>, vector<32x128xf32> -> vector<32x128xf32>
    %474 = vector.broadcast %19 : vector<32x1xf32> to vector<32x128xf32>
    %475 = arith.addf %473, %474 : vector<32x128xf32>
    %cst_245 = arith.constant 0.000000e+00 : f32
    %476 = vector.broadcast %cst_245 : f32 to vector<32x128xf32>
    %477 = arith.maximumf %475, %476 : vector<32x128xf32>
    %478 = arith.truncf %477 : vector<32x128xf32> to vector<32x128xbf16>
    %cst_246 = arith.constant dense<0.000000e+00> : vector<32x128xf32>
    %479 = tpu.matmul %8, %478, %cst_246 {dimension_numbers = #tpu.dot_dimension_numbers<[1], [0], [0], [1], [0, 0, 1, 1], [], []>} : vector<32x32xbf16>, vector<32x128xbf16>, vector<32x128xf32> -> vector<32x128xf32>
    %cst_247 = arith.constant dense<0.000000e+00> : vector<32x128xf32>
    %480 = tpu.matmul %456, %0, %cst_247 {dimension_numbers = #tpu.dot_dimension_numbers<[1], [0], [0], [1], [0, 0, 1, 1], [], []>} : vector<32x16xbf16>, vector<16x128xbf16>, vector<32x128xf32> -> vector<32x128xf32>
    %481 = arith.addf %479, %480 : vector<32x128xf32>
    %cst_248 = arith.constant 0.000000e+00 : f32
    %482 = vector.broadcast %cst_248 : f32 to vector<32x128xf32>
    %483 = arith.maximumf %481, %482 : vector<32x128xf32>
    %484 = arith.truncf %483 : vector<32x128xf32> to vector<32x128xbf16>
    %cst_249 = arith.constant dense<0.000000e+00> : vector<32x128xf32>
    %485 = tpu.matmul %10, %484, %cst_249 {dimension_numbers = #tpu.dot_dimension_numbers<[1], [0], [0], [1], [0, 0, 1, 1], [], []>} : vector<32x32xbf16>, vector<32x128xbf16>, vector<32x128xf32> -> vector<32x128xf32>
    %486 = vector.broadcast %20 : vector<32x1xf32> to vector<32x128xf32>
    %487 = arith.addf %485, %486 : vector<32x128xf32>
    %cst_250 = arith.constant 0.000000e+00 : f32
    %488 = vector.broadcast %cst_250 : f32 to vector<32x128xf32>
    %489 = arith.maximumf %487, %488 : vector<32x128xf32>
    %490 = arith.truncf %489 : vector<32x128xf32> to vector<32x128xbf16>
    %cst_251 = arith.constant dense<0.000000e+00> : vector<32x128xf32>
    %491 = tpu.matmul %12, %490, %cst_251 {dimension_numbers = #tpu.dot_dimension_numbers<[1], [0], [0], [1], [0, 0, 1, 1], [], []>} : vector<32x32xbf16>, vector<32x128xbf16>, vector<32x128xf32> -> vector<32x128xf32>
    %492 = vector.broadcast %21 : vector<32x1xf32> to vector<32x128xf32>
    %493 = arith.addf %491, %492 : vector<32x128xf32>
    %cst_252 = arith.constant 0.000000e+00 : f32
    %494 = vector.broadcast %cst_252 : f32 to vector<32x128xf32>
    %495 = arith.maximumf %493, %494 : vector<32x128xf32>
    %496 = arith.truncf %495 : vector<32x128xf32> to vector<32x128xbf16>
    %cst_253 = arith.constant dense<0.000000e+00> : vector<32x128xf32>
    %497 = tpu.matmul %14, %496, %cst_253 {dimension_numbers = #tpu.dot_dimension_numbers<[1], [0], [0], [1], [0, 0, 1, 1], [], []>} : vector<32x32xbf16>, vector<32x128xbf16>, vector<32x128xf32> -> vector<32x128xf32>
    %498 = vector.broadcast %22 : vector<32x1xf32> to vector<32x128xf32>
    %499 = arith.addf %497, %498 : vector<32x128xf32>
    %cst_254 = arith.constant 0.000000e+00 : f32
    %500 = vector.broadcast %cst_254 : f32 to vector<32x128xf32>
    %501 = arith.maximumf %499, %500 : vector<32x128xf32>
    %502 = arith.truncf %501 : vector<32x128xf32> to vector<32x128xbf16>
    %cst_255 = arith.constant dense<0.000000e+00> : vector<32x128xf32>
    %503 = tpu.matmul %16, %502, %cst_255 {dimension_numbers = #tpu.dot_dimension_numbers<[1], [0], [0], [1], [0, 0, 1, 1], [], []>} : vector<32x32xbf16>, vector<32x128xbf16>, vector<32x128xf32> -> vector<32x128xf32>
    %504 = vector.broadcast %23 : vector<32x1xf32> to vector<32x128xf32>
    %505 = arith.addf %503, %504 : vector<32x128xf32>
    %cst_256 = arith.constant 0.000000e+00 : f32
    %506 = vector.broadcast %cst_256 : f32 to vector<32x128xf32>
    %507 = arith.maximumf %505, %506 : vector<32x128xf32>
    %508 = vector.broadcast %24 : vector<32x1xf32> to vector<32x128xf32>
    %509 = arith.mulf %507, %508 : vector<32x128xf32>
    %cst_257 = arith.constant dense<0.000000e+00> : vector<128xf32>
    %510 = vector.multi_reduction <add>, %509, %cst_257 [0] : vector<32x128xf32> to vector<128xf32>
    %511 = vector.shape_cast %510 : vector<128xf32> to vector<1x128xf32>
    %512 = vector.broadcast %25 : vector<1x1xf32> to vector<1x128xf32>
    %513 = arith.addf %511, %512 : vector<1x128xf32>
    %514 = tpu.concatenate %86, %147, %208, %269, %330, %391, %452, %513 in 0 : vector<1x128xf32>, vector<1x128xf32>, vector<1x128xf32>, vector<1x128xf32>, vector<1x128xf32>, vector<1x128xf32>, vector<1x128xf32>, vector<1x128xf32> -> vector<8x128xf32>
    %515 = arith.truncf %514 : vector<8x128xf32> to vector<8x128xbf16>
    %c0_258 = arith.constant 0 : index
    %c0_259 = arith.constant 0 : index
    %516 = vector.load %arg5[%c0_258, %c0_259] : memref<8x128xbf16, #tpu.memory_space<vmem>>, vector<8x128xbf16>
    tpu.vector_store %arg5[%c0_258, %c0_259], %515 {strides = array<i32>} : memref<8x128xbf16, #tpu.memory_space<vmem>>, vector<8x128xbf16>,
    %cst_260 = arith.constant dense<0.000000e+00> : vector<128xf32>
    %517 = vector.multi_reduction <add>, %514, %cst_260 [0] : vector<8x128xf32> to vector<128xf32>
    %518 = vector.shape_cast %517 : vector<128xf32> to vector<1x128xf32>
    %cst_261 = arith.constant 1.250000e-01 : f32
    %519 = vector.broadcast %cst_261 : f32 to vector<1x128xf32>
    %520 = arith.mulf %518, %519 : vector<1x128xf32>
    %c0_262 = arith.constant 0 : index
    %c0_263 = arith.constant 0 : index
    %521 = vector.load %arg6[%c0_262, %c0_263] : memref<1x128xf32, #tpu.memory_space<vmem>>, vector<1x128xf32>
    tpu.vector_store %arg6[%c0_262, %c0_263], %520 {strides = array<i32>} : memref<1x128xf32, #tpu.memory_space<vmem>>, vector<1x128xf32>,
    return
  }
  func.func @transform_0(%arg0: i32) -> (i32, i32) {
    %c0_i32 = arith.constant 0 : i32
    %c0_i32_0 = arith.constant 0 : i32
    return %c0_i32, %arg0 : i32, i32
  }
  func.func @transform_1(%arg0: i32) -> (i32, i32, i32, i32) {
    %c0_i32 = arith.constant 0 : i32
    %c0_i32_0 = arith.constant 0 : i32
    %c0_i32_1 = arith.constant 0 : i32
    %c0_i32_2 = arith.constant 0 : i32
    %c0_i32_3 = arith.constant 0 : i32
    return %c0_i32, %c0_i32_0, %c0_i32_1, %c0_i32_2 : i32, i32, i32, i32
  }
  func.func @transform_2(%arg0: i32) -> (i32, i32, i32) {
    %c0_i32 = arith.constant 0 : i32
    %c0_i32_0 = arith.constant 0 : i32
    %c0_i32_1 = arith.constant 0 : i32
    %c0_i32_2 = arith.constant 0 : i32
    return %c0_i32, %c0_i32_0, %c0_i32_1 : i32, i32, i32
  }
  func.func @transform_3(%arg0: i32) -> (i32, i32) {
    %c0_i32 = arith.constant 0 : i32
    %c0_i32_0 = arith.constant 0 : i32
    %c0_i32_1 = arith.constant 0 : i32
    return %c0_i32, %c0_i32_0 : i32, i32
  }
  func.func @transform_4(%arg0: i32) -> (i32, i32) {
    %c0_i32 = arith.constant 0 : i32
    %c0_i32_0 = arith.constant 0 : i32
    return %c0_i32, %arg0 : i32, i32
  }
  func.func @transform_5(%arg0: i32) -> (i32, i32) {
    %c0_i32 = arith.constant 0 : i32
    %c0_i32_0 = arith.constant 0 : i32
    return %c0_i32, %arg0 : i32, i32
  }
}

</mosaic_0001>

<llo_original>
// kernel: tpu_custom_call.1
$region0: #{tpu_custom_call.1}
  #allocation0 [shape = 'u32[]', space=smem, size = 0x4, offset = 0x4, fixed_abs, tag = 'smem constant byte address 0x4 - core index']
  #allocation1 [shape = 'u32[72,128]{1,0:T(1,128)}', space=vmem, size = 0x9000, scoped, tag = 'internal scratch']
  %s0 = inlined_call_operand.vmem [shape: bf16[16,128], index: 0, kind: input, shape index: {}]
  %s1 = inlined_call_operand.vmem [shape: bf16[8,2,32,16], index: 1, kind: input, shape index: {}]
  %s2 = inlined_call_operand.vmem [shape: bf16[8,32,32], index: 2, kind: input, shape index: {}]
  %s3 = inlined_call_operand.vmem [shape: f32[32,9], index: 3, kind: input, shape index: {}]
  %s4 = inlined_call_operand.hbm [shape: bf16[8,128], index: 4, kind: output, shape index: {0}]
  %s5 = inlined_call_operand.hbm [shape: f32[1,128], index: 5, kind: output, shape index: {1}]
  %6 = xla_tuple %s4, %s5
  %s7 = sld [smem:[#allocation0]]
  $region34: #{tpu_custom_call.1} parent=0
    _
  %s9 = ssub.s32 1, %s7
  %s10 = scalar_select 0, %s9, %s7
  $region1: #{tpu_custom_call.1} parent=0
    #allocation2 [shape = 'u8[2048]{0}', space=vmem, size = 0x800, scoped, tag = 'output window, operand 0, single buffered']
    #allocation3 [shape = 's32[1]{0}', space=sflag, size = 0x4, scoped, tag = 'scoped memory for tpu_custom_call.1']
    #allocation4 [shape = 'u8[512]{0}', space=vmem, size = 0x400, scoped, tag = 'output window, operand 1, single buffered']
    #allocation5 [shape = 's32[1]{0}', space=sflag, size = 0x4, scoped, tag = 'scoped memory for tpu_custom_call.1']
    %11 = vsyncpa [#allocation3], 0
    %12 = vsyncpa [#allocation5], 0
    // Predicated region
    $region2: #{tpu_custom_call.1} parent=1 // pred_check
      _
    $region3: #{tpu_custom_call.1} parent=1 // pred_check_branch
      %14 = sbr.rel (0) target = $region5
    $region4: #{tpu_custom_call.1} parent=1 // pred_region
      _
    $region5: #{tpu_custom_call.1} parent=1 // pred_fallthru
      _
    // Predicated region
    $region6: #{tpu_custom_call.1} parent=1 // pred_check
      _
    $region7: #{tpu_custom_call.1} parent=1 // pred_check_branch
      %16 = sbr.rel (0) target = $region9
    $region8: #{tpu_custom_call.1} parent=1 // pred_region
      _
    $region9: #{tpu_custom_call.1} parent=1 // pred_fallthru
      _
    // Predicated region
    $region10: #{tpu_custom_call.1} parent=1 // pred_check
      _
    $region11: #{tpu_custom_call.1} parent=1 // pred_check_branch
      %18 = sbr.rel (0) target = $region13
    $region12: #{tpu_custom_call.1} parent=1 // pred_region
      _
    $region13: #{tpu_custom_call.1} parent=1 // pred_fallthru
      _
    // Predicated region
    $region14: #{tpu_custom_call.1} parent=1 // pred_check
      _
    $region15: #{tpu_custom_call.1} parent=1 // pred_check_branch
      %20 = sbr.rel (0) target = $region17
    $region16: #{tpu_custom_call.1} parent=1 // pred_region
      _
    $region17: #{tpu_custom_call.1} parent=1 // pred_fallthru
      _
    %v22 = vld [vmem:[%s0] sm:$0xf]
    %v23 = vld [vmem:[%s0 + $0x4] sm:$0xf]
    %v24 = vld [vmem:[%s2] sm:$0xf]
    %v25 = vld [vmem:[%s2 + $0x4] sm:$0xf]
    %v26 = vld [vmem:[%s2 + $0x8] sm:$0xf]
    %v27 = vld [vmem:[%s2 + $0xc] sm:$0xf]
    %s28 = scalar_lea.vmem %s2, 16
    %v29 = vld [vmem:[%s28] sm:$0xf]
    %v30 = vld [vmem:[%s28 + $0x4] sm:$0xf]
    %v31 = vld [vmem:[%s28 + $0x8] sm:$0xf]
    %v32 = vld [vmem:[%s28 + $0xc] sm:$0xf]
    %s33 = scalar_lea.vmem %s2, 32
    %v34 = vld [vmem:[%s33] sm:$0xf]
    %v35 = vld [vmem:[%s33 + $0x4] sm:$0xf]
    %v36 = vld [vmem:[%s33 + $0x8] sm:$0xf]
    %v37 = vld [vmem:[%s33 + $0xc] sm:$0xf]
    %s38 = scalar_lea.vmem %s2, 48
    %v39 = vld [vmem:[%s38] sm:$0xf]
    %v40 = vld [vmem:[%s38 + $0x4] sm:$0xf]
    %v41 = vld [vmem:[%s38 + $0x8] sm:$0xf]
    %v42 = vld [vmem:[%s38 + $0xc] sm:$0xf]
    %s43 = scalar_lea.vmem %s2, 64
    %v44 = vld [vmem:[%s43] sm:$0xf]
    %v45 = vld [vmem:[%s43 + $0x4] sm:$0xf]
    %v46 = vld [vmem:[%s43 + $0x8] sm:$0xf]
    %v47 = vld [vmem:[%s43 + $0xc] sm:$0xf]
    %s48 = scalar_lea.vmem %s2, 80
    %v49 = vld [vmem:[%s48] sm:$0xf]
    %v50 = vld [vmem:[%s48 + $0x4] sm:$0xf]
    %v51 = vld [vmem:[%s48 + $0x8] sm:$0xf]
    %v52 = vld [vmem:[%s48 + $0xc] sm:$0xf]
    %s53 = scalar_lea.vmem %s2, 96
    %v54 = vld [vmem:[%s53] sm:$0xf]
    %v55 = vld [vmem:[%s53 + $0x4] sm:$0xf]
    %v56 = vld [vmem:[%s53 + $0x8] sm:$0xf]
    %v57 = vld [vmem:[%s53 + $0xc] sm:$0xf]
    %s58 = scalar_lea.vmem %s2, 112
    %v59 = vld [vmem:[%s58] sm:$0xf]
    %v60 = vld [vmem:[%s58 + $0x4] sm:$0xf]
    %v61 = vld [vmem:[%s58 + $0x8] sm:$0xf]
    %v62 = vld [vmem:[%s58 + $0xc] sm:$0xf]
    %v63 = vld [vmem:[%s3] sm:$0xff]
    %v64 = vld [vmem:[%s3 + $0x8] sm:$0xff]
    %v65 = vld [vmem:[%s3 + $0x10] sm:$0xff]
    %v66 = vld [vmem:[%s3 + $0x18] sm:$0xff]
    %v67 = vld [vmem:[%s3] sm:$0x1]
    %v68 = vld [vmem:[%s1] sm:$0xf]
    %v69 = vld [vmem:[%s1 + $0x4] sm:$0xf]
    %v70 = vld [vmem:[%s1 + $0x8] sm:$0xf]
    %v71 = vld [vmem:[%s1 + $0xc] sm:$0xf]
    %s72 = scalar_lea.vmem %s1, 16
    %v73 = vld [vmem:[%s72] sm:$0xf]
    %v74 = vld [vmem:[%s72 + $0x4] sm:$0xf]
    %v75 = vld [vmem:[%s72 + $0x8] sm:$0xf]
    %v76 = vld [vmem:[%s72 + $0xc] sm:$0xf]
    %v81 = vunpack.c.l.b16 %v68
    %v82 = vunpack.c.l.b16 %v69
    %v83 = vunpack.c.l.b16 %v70
    %v84 = vunpack.c.l.b16 %v71
    %v85 = vpack.c.b16 %v82, %v81
    %v86 = vpack.c.b16 %v84, %v83
    %v89 = vunpack.c.l.b16 %v22
    %v90 = vunpack.c.l.b16 %v23
    %v91 = vpack.c.b16 %v90, %v89
    %vm93 = vcmask 130048
    %v95 = vsel %vm93, %v85, 0
    %v98 = vsel %vm93, %v86, 0
    %100 = vmatpush.bf16.msra.mxu0 0
    %101 = vmatpush.bf16.msra.mxu0 0
    %102 = vmatpush.bf16.msra.mxu0 0
    %103 = vmatpush.bf16.msra.mxu0 0
    %104 = vmatpush.bf16.msra.mxu0 0
    %105 = vmatpush.bf16.msra.mxu0 0
    %106 = vmatpush.bf16.msra.mxu0 0
    %107 = vmatpush.bf16.msra.mxu0 %v91
    %108 = vmatmul.bf16.gmra.mxu0 %v95
    %v109 = vpop.f32.mrf.mxu0
    %v110 = vadd.f32 0.0, %v109
    %v111 = vpop.f32.mrf.mxu0
    %v112 = vadd.f32 0.0, %v111
    %113 = vmatmul.bf16.gmra.mxu0 %v98
    %v114 = vpop.f32.mrf.mxu0
    %v115 = vadd.f32 0.0, %v114
    %v116 = vpop.f32.mrf.mxu0
    %v117 = vadd.f32 0.0, %v116
    %118 = vdwg.mxu0
    %v119 = vmax.f32 %v110, 0.0
    %v120 = vmax.f32 %v112, 0.0
    %v121 = vmax.f32 %v115, 0.0
    %v122 = vmax.f32 %v117, 0.0
    %v123 = vpack.c.bf16 %v120, %v119
    %v124 = vpack.c.bf16 %v122, %v121
    %126 = vset.pattern.permute.xlu0 0
    %127 = vperm.xlu0 %126, %v63
    %v128 = vpop.permute.xlu0 %127
    %131 = vset.pattern.permute.xlu0 0
    %132 = vperm.xlu0 %131, %v64
    %v133 = vpop.permute.xlu0 %132
    %136 = vset.pattern.permute.xlu0 0
    %137 = vperm.xlu0 %136, %v65
    %v138 = vpop.permute.xlu0 %137
    %141 = vset.pattern.permute.xlu0 0
    %142 = vperm.xlu0 %141, %v66
    %v143 = vpop.permute.xlu0 %142
    %v149 = vunpack.c.l.b16 %v24
    %v150 = vunpack.c.l.b16 %v25
    %v151 = vunpack.c.l.b16 %v26
    %v152 = vunpack.c.l.b16 %v27
    %v153 = vpack.c.b16 %v150, %v149
    %v154 = vpack.c.b16 %v152, %v151
    %vm155 = vcmask 261120
    %v157 = vsel %vm155, %v153, 0
    %v160 = vsel %vm155, %v154, 0
    %162 = vmatpush.bf16.msra.mxu0 0
    %163 = vmatpush.bf16.msra.mxu0 0
    %164 = vmatpush.bf16.msra.mxu0 0
    %165 = vmatpush.bf16.msra.mxu0 0
    %166 = vmatpush.bf16.msra.mxu0 0
    %167 = vmatpush.bf16.msra.mxu0 0
    %168 = vmatpush.bf16.msra.mxu0 %v124
    %169 = vmatpush.bf16.msra.mxu0 %v123
    %170 = vmatmul.bf16.gmra.mxu0 %v157
    %v171 = vpop.f32.mrf.mxu0
    %v172 = vadd.f32 %v128, %v171
    %v173 = vpop.f32.mrf.mxu0
    %v174 = vadd.f32 %v133, %v173
    %175 = vmatmul.bf16.gmra.mxu0 %v160
    %v176 = vpop.f32.mrf.mxu0
    %v177 = vadd.f32 %v138, %v176
    %v178 = vpop.f32.mrf.mxu0
    %v179 = vadd.f32 %v143, %v178
    %180 = vdwg.mxu0
    %v181 = vmax.f32 %v172, 0.0
    %v182 = vmax.f32 %v174, 0.0
    %v183 = vmax.f32 %v177, 0.0
    %v184 = vmax.f32 %v179, 0.0
    %v185 = vpack.c.bf16 %v182, %v181
    %v186 = vpack.c.bf16 %v184, %v183
    %187 = vset.pattern.permute.xlu0 1
    %188 = vperm.xlu0 %187, %v63
    %v189 = vpop.permute.xlu0 %188
    %191 = vset.pattern.permute.xlu0 1
    %192 = vperm.xlu0 %191, %v64
    %v193 = vpop.permute.xlu0 %192
    %195 = vset.pattern.permute.xlu0 1
    %196 = vperm.xlu0 %195, %v65
    %v197 = vpop.permute.xlu0 %196
    %199 = vset.pattern.permute.xlu0 1
    %200 = vperm.xlu0 %199, %v66
    %v201 = vpop.permute.xlu0 %200
    %v207 = vunpack.c.l.b16 %v29
    %v208 = vunpack.c.l.b16 %v30
    %v209 = vunpack.c.l.b16 %v31
    %v210 = vunpack.c.l.b16 %v32
    %v211 = vpack.c.b16 %v208, %v207
    %v212 = vpack.c.b16 %v210, %v209
    %v214 = vsel %vm155, %v211, 0
    %v217 = vsel %vm155, %v212, 0
    %219 = vmatpush.bf16.msra.mxu0 0
    %220 = vmatpush.bf16.msra.mxu0 0
    %221 = vmatpush.bf16.msra.mxu0 0
    %222 = vmatpush.bf16.msra.mxu0 0
    %223 = vmatpush.bf16.msra.mxu0 0
    %224 = vmatpush.bf16.msra.mxu0 0
    %225 = vmatpush.bf16.msra.mxu0 %v186
    %226 = vmatpush.bf16.msra.mxu0 %v185
    %227 = vmatmul.bf16.gmra.mxu0 %v214
    %v228 = vpop.f32.mrf.mxu0
    %v229 = vadd.f32 %v189, %v228
    %v230 = vpop.f32.mrf.mxu0
    %v231 = vadd.f32 %v193, %v230
    %232 = vmatmul.bf16.gmra.mxu0 %v217
    %v233 = vpop.f32.mrf.mxu0
    %v234 = vadd.f32 %v197, %v233
    %v235 = vpop.f32.mrf.mxu0
    %v236 = vadd.f32 %v201, %v235
    %237 = vdwg.mxu0
    %v238 = vmax.f32 %v229, 0.0
    %v239 = vmax.f32 %v231, 0.0
    %v240 = vmax.f32 %v234, 0.0
    %v241 = vmax.f32 %v236, 0.0
    %v242 = vpack.c.bf16 %v239, %v238
    %v243 = vpack.c.bf16 %v241, %v240
    %244 = vset.pattern.permute.xlu0 2
    %245 = vperm.xlu0 %244, %v63
    %v246 = vpop.permute.xlu0 %245
    %248 = vset.pattern.permute.xlu0 2
    %249 = vperm.xlu0 %248, %v64
    %v250 = vpop.permute.xlu0 %249
    %252 = vset.pattern.permute.xlu0 2
    %253 = vperm.xlu0 %252, %v65
    %v254 = vpop.permute.xlu0 %253
    %256 = vset.pattern.permute.xlu0 2
    %257 = vperm.xlu0 %256, %v66
    %v258 = vpop.permute.xlu0 %257
    %v264 = vunpack.c.l.b16 %v34
    %v265 = vunpack.c.l.b16 %v35
    %v266 = vunpack.c.l.b16 %v36
    %v267 = vunpack.c.l.b16 %v37
    %v268 = vpack.c.b16 %v265, %v264
    %v269 = vpack.c.b16 %v267, %v266
    %v271 = vsel %vm155, %v268, 0
    %v274 = vsel %vm155, %v269, 0
    %276 = vmatpush.bf16.msra.mxu0 0
    %277 = vmatpush.bf16.msra.mxu0 0
    %278 = vmatpush.bf16.msra.mxu0 0
    %279 = vmatpush.bf16.msra.mxu0 0
    %280 = vmatpush.bf16.msra.mxu0 0
    %281 = vmatpush.bf16.msra.mxu0 0
    %282 = vmatpush.bf16.msra.mxu0 %v243
    %283 = vmatpush.bf16.msra.mxu0 %v242
    %284 = vmatmul.bf16.gmra.mxu0 %v271
    %v285 = vpop.f32.mrf.mxu0
    %v286 = vadd.f32 %v246, %v285
    %v287 = vpop.f32.mrf.mxu0
    %v288 = vadd.f32 %v250, %v287
    %289 = vmatmul.bf16.gmra.mxu0 %v274
    %v290 = vpop.f32.mrf.mxu0
    %v291 = vadd.f32 %v254, %v290
    %v292 = vpop.f32.mrf.mxu0
    %v293 = vadd.f32 %v258, %v292
    %294 = vdwg.mxu0
    %v295 = vmax.f32 %v286, 0.0
    %v296 = vmax.f32 %v288, 0.0
    %v297 = vmax.f32 %v291, 0.0
    %v298 = vmax.f32 %v293, 0.0
    %v299 = vpack.c.bf16 %v296, %v295
    %v300 = vpack.c.bf16 %v298, %v297
    %v305 = vunpack.c.l.b16 %v73
    %v306 = vunpack.c.l.b16 %v74
    %v307 = vunpack.c.l.b16 %v75
    %v308 = vunpack.c.l.b16 %v76
    %v309 = vpack.c.b16 %v306, %v305
    %v310 = vpack.c.b16 %v308, %v307
    %v312 = vsel %vm93, %v309, 0
    %v315 = vsel %vm93, %v310, 0
    %317 = vmatpush.bf16.msra.mxu0 0
    %318 = vmatpush.bf16.msra.mxu0 0
    %319 = vmatpush.bf16.msra.mxu0 0
    %320 = vmatpush.bf16.msra.mxu0 0
    %321 = vmatpush.bf16.msra.mxu0 0
    %322 = vmatpush.bf16.msra.mxu0 0
    %323 = vmatpush.bf16.msra.mxu0 0
    %324 = vmatpush.bf16.msra.mxu0 %v91
    %325 = vmatmul.bf16.gmra.mxu0 %v312
    %v326 = vpop.f32.mrf.mxu0
    %v327 = vadd.f32 0.0, %v326
    %v328 = vpop.f32.mrf.mxu0
    %v329 = vadd.f32 0.0, %v328
    %330 = vmatmul.bf16.gmra.mxu0 %v315
    %v331 = vpop.f32.mrf.mxu0
    %v332 = vadd.f32 0.0, %v331
    %v333 = vpop.f32.mrf.mxu0
    %v334 = vadd.f32 0.0, %v333
    %335 = vdwg.mxu0
    %v340 = vunpack.c.l.b16 %v39
    %v341 = vunpack.c.l.b16 %v40
    %v342 = vunpack.c.l.b16 %v41
    %v343 = vunpack.c.l.b16 %v42
    %v344 = vpack.c.b16 %v341, %v340
    %v345 = vpack.c.b16 %v343, %v342
    %v347 = vsel %vm155, %v344, 0
    %v350 = vsel %vm155, %v345, 0
    %352 = vmatpush.bf16.msra.mxu0 0
    %353 = vmatpush.bf16.msra.mxu0 0
    %354 = vmatpush.bf16.msra.mxu0 0
    %355 = vmatpush.bf16.msra.mxu0 0
    %356 = vmatpush.bf16.msra.mxu0 0
    %357 = vmatpush.bf16.msra.mxu0 0
    %358 = vmatpush.bf16.msra.mxu0 %v300
    %359 = vmatpush.bf16.msra.mxu0 %v299
    %360 = vmatmul.bf16.gmra.mxu0 %v347
    %v361 = vpop.f32.mrf.mxu0
    %v362 = vadd.f32 %v327, %v361
    %v363 = vpop.f32.mrf.mxu0
    %v364 = vadd.f32 %v329, %v363
    %365 = vmatmul.bf16.gmra.mxu0 %v350
    %v366 = vpop.f32.mrf.mxu0
    %v367 = vadd.f32 %v332, %v366
    %v368 = vpop.f32.mrf.mxu0
    %v369 = vadd.f32 %v334, %v368
    %370 = vdwg.mxu0
    %v371 = vmax.f32 %v362, 0.0
    %v372 = vmax.f32 %v364, 0.0
    %v373 = vmax.f32 %v367, 0.0
    %v374 = vmax.f32 %v369, 0.0
    %v375 = vpack.c.bf16 %v372, %v371
    %v376 = vpack.c.bf16 %v374, %v373
    %377 = vset.pattern.permute.xlu0 3
    %378 = vperm.xlu0 %377, %v63
    %v379 = vpop.permute.xlu0 %378
    %381 = vset.pattern.permute.xlu0 3
    %382 = vperm.xlu0 %381, %v64
    %v383 = vpop.permute.xlu0 %382
    %385 = vset.pattern.permute.xlu0 3
    %386 = vperm.xlu0 %385, %v65
    %v387 = vpop.permute.xlu0 %386
    %389 = vset.pattern.permute.xlu0 3
    %390 = vperm.xlu0 %389, %v66
    %v391 = vpop.permute.xlu0 %390
    %v397 = vunpack.c.l.b16 %v44
    %v398 = vunpack.c.l.b16 %v45
    %v399 = vunpack.c.l.b16 %v46
    %v400 = vunpack.c.l.b16 %v47
    %v401 = vpack.c.b16 %v398, %v397
    %v402 = vpack.c.b16 %v400, %v399
    %v404 = vsel %vm155, %v401, 0
    %v407 = vsel %vm155, %v402, 0
    %409 = vmatpush.bf16.msra.mxu0 0
    %410 = vmatpush.bf16.msra.mxu0 0
    %411 = vmatpush.bf16.msra.mxu0 0
    %412 = vmatpush.bf16.msra.mxu0 0
    %413 = vmatpush.bf16.msra.mxu0 0
    %414 = vmatpush.bf16.msra.mxu0 0
    %415 = vmatpush.bf16.msra.mxu0 %v376
    %416 = vmatpush.bf16.msra.mxu0 %v375
    %417 = vmatmul.bf16.gmra.mxu0 %v404
    %v418 = vpop.f32.mrf.mxu0
    %v419 = vadd.f32 %v379, %v418
    %v420 = vpop.f32.mrf.mxu0
    %v421 = vadd.f32 %v383, %v420
    %422 = vmatmul.bf16.gmra.mxu0 %v407
    %v423 = vpop.f32.mrf.mxu0
    %v424 = vadd.f32 %v387, %v423
    %v425 = vpop.f32.mrf.mxu0
    %v426 = vadd.f32 %v391, %v425
    %427 = vdwg.mxu0
    %v428 = vmax.f32 %v419, 0.0
    %v429 = vmax.f32 %v421, 0.0
    %v430 = vmax.f32 %v424, 0.0
    %v431 = vmax.f32 %v426, 0.0
    %v432 = vpack.c.bf16 %v429, %v428
    %v433 = vpack.c.bf16 %v431, %v430
    %434 = vset.pattern.permute.xlu0 4
    %435 = vperm.xlu0 %434, %v63
    %v436 = vpop.permute.xlu0 %435
    %438 = vset.pattern.permute.xlu0 4
    %439 = vperm.xlu0 %438, %v64
    %v440 = vpop.permute.xlu0 %439
    %442 = vset.pattern.permute.xlu0 4
    %443 = vperm.xlu0 %442, %v65
    %v444 = vpop.permute.xlu0 %443
    %446 = vset.pattern.permute.xlu0 4
    %447 = vperm.xlu0 %446, %v66
    %v448 = vpop.permute.xlu0 %447
    %v454 = vunpack.c.l.b16 %v49
    %v455 = vunpack.c.l.b16 %v50
    %v456 = vunpack.c.l.b16 %v51
    %v457 = vunpack.c.l.b16 %v52
    %v458 = vpack.c.b16 %v455, %v454
    %v459 = vpack.c.b16 %v457, %v456
    %v461 = vsel %vm155, %v458, 0
    %v464 = vsel %vm155, %v459, 0
    %466 = vmatpush.bf16.msra.mxu0 0
    %467 = vmatpush.bf16.msra.mxu0 0
    %468 = vmatpush.bf16.msra.mxu0 0
    %469 = vmatpush.bf16.msra.mxu0 0
    %470 = vmatpush.bf16.msra.mxu0 0
    %471 = vmatpush.bf16.msra.mxu0 0
    %472 = vmatpush.bf16.msra.mxu0 %v433
    %473 = vmatpush.bf16.msra.mxu0 %v432
    %474 = vmatmul.bf16.gmra.mxu0 %v461
    %v475 = vpop.f32.mrf.mxu0
    %v476 = vadd.f32 %v436, %v475
    %v477 = vpop.f32.mrf.mxu0
    %v478 = vadd.f32 %v440, %v477
    %479 = vmatmul.bf16.gmra.mxu0 %v464
    %v480 = vpop.f32.mrf.mxu0
    %v481 = vadd.f32 %v444, %v480
    %v482 = vpop.f32.mrf.mxu0
    %v483 = vadd.f32 %v448, %v482
    %484 = vdwg.mxu0
    %v485 = vmax.f32 %v476, 0.0
    %v486 = vmax.f32 %v478, 0.0
    %v487 = vmax.f32 %v481, 0.0
    %v488 = vmax.f32 %v483, 0.0
    %v489 = vpack.c.bf16 %v486, %v485
    %v490 = vpack.c.bf16 %v488, %v487
    %491 = vset.pattern.permute.xlu0 5
    %492 = vperm.xlu0 %491, %v63
    %v493 = vpop.permute.xlu0 %492
    %495 = vset.pattern.permute.xlu0 5
    %496 = vperm.xlu0 %495, %v64
    %v497 = vpop.permute.xlu0 %496
    %499 = vset.pattern.permute.xlu0 5
    %500 = vperm.xlu0 %499, %v65
    %v501 = vpop.permute.xlu0 %500
    %503 = vset.pattern.permute.xlu0 5
    %504 = vperm.xlu0 %503, %v66
    %v505 = vpop.permute.xlu0 %504
    %v511 = vunpack.c.l.b16 %v54
    %v512 = vunpack.c.l.b16 %v55
    %v513 = vunpack.c.l.b16 %v56
    %v514 = vunpack.c.l.b16 %v57
    %v515 = vpack.c.b16 %v512, %v511
    %v516 = vpack.c.b16 %v514, %v513
    %v518 = vsel %vm155, %v515, 0
    %v521 = vsel %vm155, %v516, 0
    %523 = vmatpush.bf16.msra.mxu0 0
    %524 = vmatpush.bf16.msra.mxu0 0
    %525 = vmatpush.bf16.msra.mxu0 0
    %526 = vmatpush.bf16.msra.mxu0 0
    %527 = vmatpush.bf16.msra.mxu0 0
    %528 = vmatpush.bf16.msra.mxu0 0
    %529 = vmatpush.bf16.msra.mxu0 %v490
    %530 = vmatpush.bf16.msra.mxu0 %v489
    %531 = vmatmul.bf16.gmra.mxu0 %v518
    %v532 = vpop.f32.mrf.mxu0
    %v533 = vadd.f32 %v493, %v532
    %v534 = vpop.f32.mrf.mxu0
    %v535 = vadd.f32 %v497, %v534
    %536 = vmatmul.bf16.gmra.mxu0 %v521
    %v537 = vpop.f32.mrf.mxu0
    %v538 = vadd.f32 %v501, %v537
    %v539 = vpop.f32.mrf.mxu0
    %v540 = vadd.f32 %v505, %v539
    %541 = vdwg.mxu0
    %v542 = vmax.f32 %v533, 0.0
    %v543 = vmax.f32 %v535, 0.0
    %v544 = vmax.f32 %v538, 0.0
    %v545 = vmax.f32 %v540, 0.0
    %v546 = vpack.c.bf16 %v543, %v542
    %v547 = vpack.c.bf16 %v545, %v544
    %548 = vset.pattern.permute.xlu0 6
    %549 = vperm.xlu0 %548, %v63
    %v550 = vpop.permute.xlu0 %549
    %552 = vset.pattern.permute.xlu0 6
    %553 = vperm.xlu0 %552, %v64
    %v554 = vpop.permute.xlu0 %553
    %556 = vset.pattern.permute.xlu0 6
    %557 = vperm.xlu0 %556, %v65
    %v558 = vpop.permute.xlu0 %557
    %560 = vset.pattern.permute.xlu0 6
    %561 = vperm.xlu0 %560, %v66
    %v562 = vpop.permute.xlu0 %561
    %v568 = vunpack.c.l.b16 %v59
    %v569 = vunpack.c.l.b16 %v60
    %v570 = vunpack.c.l.b16 %v61
    %v571 = vunpack.c.l.b16 %v62
    %v572 = vpack.c.b16 %v569, %v568
    %v573 = vpack.c.b16 %v571, %v570
    %v575 = vsel %vm155, %v572, 0
    %v578 = vsel %vm155, %v573, 0
    %580 = vmatpush.bf16.msra.mxu0 0
    %581 = vmatpush.bf16.msra.mxu0 0
    %582 = vmatpush.bf16.msra.mxu0 0
    %583 = vmatpush.bf16.msra.mxu0 0
    %584 = vmatpush.bf16.msra.mxu0 0
    %585 = vmatpush.bf16.msra.mxu0 0
    %586 = vmatpush.bf16.msra.mxu0 %v547
    %587 = vmatpush.bf16.msra.mxu0 %v546
    %588 = vmatmul.bf16.gmra.mxu0 %v575
    %v589 = vpop.f32.mrf.mxu0
    %v590 = vadd.f32 %v550, %v589
    %v591 = vpop.f32.mrf.mxu0
    %v592 = vadd.f32 %v554, %v591
    %593 = vmatmul.bf16.gmra.mxu0 %v578
    %v594 = vpop.f32.mrf.mxu0
    %v595 = vadd.f32 %v558, %v594
    %v596 = vpop.f32.mrf.mxu0
    %v597 = vadd.f32 %v562, %v596
    %598 = vdwg.mxu0
    %v599 = vmax.f32 %v590, 0.0
    %v600 = vmax.f32 %v592, 0.0
    %v601 = vmax.f32 %v595, 0.0
    %v602 = vmax.f32 %v597, 0.0
    %603 = vset.pattern.permute.xlu0 7
    %604 = vperm.xlu0 %603, %v63
    %v605 = vpop.permute.xlu0 %604
    %607 = vset.pattern.permute.xlu0 7
    %608 = vperm.xlu0 %607, %v64
    %v609 = vpop.permute.xlu0 %608
    %611 = vset.pattern.permute.xlu0 7
    %612 = vperm.xlu0 %611, %v65
    %v613 = vpop.permute.xlu0 %612
    %615 = vset.pattern.permute.xlu0 7
    %616 = vperm.xlu0 %615, %v66
    %v617 = vpop.permute.xlu0 %616
    %v619 = vmul.f32 %v599, %v605
    %v620 = vmul.f32 %v600, %v609
    %v621 = vmul.f32 %v601, %v613
    %v622 = vmul.f32 %v602, %v617
    %v623 = vadd.f32 %v619, %v620
    %v624 = vadd.f32 %v623, %v621
    %v625 = vadd.f32 %v624, %v622
    %v626 = vrot.slane %v625, 4
    %v627 = vadd.f32 %v625, %v626
    %v628 = vrot.slane %v627, 2
    %v629 = vadd.f32 %v627, %v628
    %v630 = vrot.slane %v629, 1
    %v631 = vadd.f32 %v629, %v630
    %633 = vset.pattern.permute.xlu0 8
    %634 = vperm.xlu0 %633, %v67
    %v635 = vpop.permute.xlu0 %634
    %v637 = vadd.f32 %v631, %v635
    %s638 = scalar_lea.vmem %s1, 32
    %v639 = vld [vmem:[%s638] sm:$0xf]
    %v640 = vld [vmem:[%s638 + $0x4] sm:$0xf]
    %v641 = vld [vmem:[%s638 + $0x8] sm:$0xf]
    %v642 = vld [vmem:[%s638 + $0xc] sm:$0xf]
    %s643 = scalar_lea.vmem %s1, 48
    %v644 = vld [vmem:[%s643] sm:$0xf]
    %v645 = vld [vmem:[%s643 + $0x4] sm:$0xf]
    %v646 = vld [vmem:[%s643 + $0x8] sm:$0xf]
    %v647 = vld [vmem:[%s643 + $0xc] sm:$0xf]
    %v652 = vunpack.c.l.b16 %v639
    %v653 = vunpack.c.l.b16 %v640
    %v654 = vunpack.c.l.b16 %v641
    %v655 = vunpack.c.l.b16 %v642
    %v656 = vpack.c.b16 %v653, %v652
    %v657 = vpack.c.b16 %v655, %v654
    %v659 = vsel %vm93, %v656, 0
    %v662 = vsel %vm93, %v657, 0
    %664 = vmatpush.bf16.msra.mxu0 0
    %665 = vmatpush.bf16.msra.mxu0 0
    %666 = vmatpush.bf16.msra.mxu0 0
    %667 = vmatpush.bf16.msra.mxu0 0
    %668 = vmatpush.bf16.msra.mxu0 0
    %669 = vmatpush.bf16.msra.mxu0 0
    %670 = vmatpush.bf16.msra.mxu0 0
    %671 = vmatpush.bf16.msra.mxu0 %v91
    %672 = vmatmul.bf16.gmra.mxu0 %v659
    %v673 = vpop.f32.mrf.mxu0
    %v674 = vadd.f32 0.0, %v673
    %v675 = vpop.f32.mrf.mxu0
    %v676 = vadd.f32 0.0, %v675
    %677 = vmatmul.bf16.gmra.mxu0 %v662
    %v678 = vpop.f32.mrf.mxu0
    %v679 = vadd.f32 0.0, %v678
    %v680 = vpop.f32.mrf.mxu0
    %v681 = vadd.f32 0.0, %v680
    %682 = vdwg.mxu0
    %v683 = vmax.f32 %v674, 0.0
    %v684 = vmax.f32 %v676, 0.0
    %v685 = vmax.f32 %v679, 0.0
    %v686 = vmax.f32 %v681, 0.0
    %v687 = vpack.c.bf16 %v684, %v683
    %v688 = vpack.c.bf16 %v686, %v685
    %689 = vmatpush.bf16.msra.mxu0 0
    %690 = vmatpush.bf16.msra.mxu0 0
    %691 = vmatpush.bf16.msra.mxu0 0
    %692 = vmatpush.bf16.msra.mxu0 0
    %693 = vmatpush.bf16.msra.mxu0 0
    %694 = vmatpush.bf16.msra.mxu0 0
    %695 = vmatpush.bf16.msra.mxu0 %v688
    %696 = vmatpush.bf16.msra.mxu0 %v687
    %697 = vmatmul.bf16.gmra.mxu0 %v157
    %v698 = vpop.f32.mrf.mxu0
    %v699 = vadd.f32 %v128, %v698
    %v700 = vpop.f32.mrf.mxu0
    %v701 = vadd.f32 %v133, %v700
    %702 = vmatmul.bf16.gmra.mxu0 %v160
    %v703 = vpop.f32.mrf.mxu0
    %v704 = vadd.f32 %v138, %v703
    %v705 = vpop.f32.mrf.mxu0
    %v706 = vadd.f32 %v143, %v705
    %707 = vdwg.mxu0
    %v708 = vmax.f32 %v699, 0.0
    %v709 = vmax.f32 %v701, 0.0
    %v710 = vmax.f32 %v704, 0.0
    %v711 = vmax.f32 %v706, 0.0
    %v712 = vpack.c.bf16 %v709, %v708
    %v713 = vpack.c.bf16 %v711, %v710
    %714 = vmatpush.bf16.msra.mxu0 0
    %715 = vmatpush.bf16.msra.mxu0 0
    %716 = vmatpush.bf16.msra.mxu0 0
    %717 = vmatpush.bf16.msra.mxu0 0
    %718 = vmatpush.bf16.msra.mxu0 0
    %719 = vmatpush.bf16.msra.mxu0 0
    %720 = vmatpush.bf16.msra.mxu0 %v713
    %721 = vmatpush.bf16.msra.mxu0 %v712
    %722 = vmatmul.bf16.gmra.mxu0 %v214
    %v723 = vpop.f32.mrf.mxu0
    %v724 = vadd.f32 %v189, %v723
    %v725 = vpop.f32.mrf.mxu0
    %v726 = vadd.f32 %v193, %v725
    %727 = vmatmul.bf16.gmra.mxu0 %v217
    %v728 = vpop.f32.mrf.mxu0
    %v729 = vadd.f32 %v197, %v728
    %v730 = vpop.f32.mrf.mxu0
    %v731 = vadd.f32 %v201, %v730
    %732 = vdwg.mxu0
    %v733 = vmax.f32 %v724, 0.0
    %v734 = vmax.f32 %v726, 0.0
    %v735 = vmax.f32 %v729, 0.0
    %v736 = vmax.f32 %v731, 0.0
    %v737 = vpack.c.bf16 %v734, %v733
    %v738 = vpack.c.bf16 %v736, %v735
    %739 = vmatpush.bf16.msra.mxu0 0
    %740 = vmatpush.bf16.msra.mxu0 0
    %741 = vmatpush.bf16.msra.mxu0 0
    %742 = vmatpush.bf16.msra.mxu0 0
    %743 = vmatpush.bf16.msra.mxu0 0
    %744 = vmatpush.bf16.msra.mxu0 0
    %745 = vmatpush.bf16.msra.mxu0 %v738
    %746 = vmatpush.bf16.msra.mxu0 %v737
    %747 = vmatmul.bf16.gmra.mxu0 %v271
    %v748 = vpop.f32.mrf.mxu0
    %v749 = vadd.f32 %v246, %v748
    %v750 = vpop.f32.mrf.mxu0
    %v751 = vadd.f32 %v250, %v750
    %752 = vmatmul.bf16.gmra.mxu0 %v274
    %v753 = vpop.f32.mrf.mxu0
    %v754 = vadd.f32 %v254, %v753
    %v755 = vpop.f32.mrf.mxu0
    %v756 = vadd.f32 %v258, %v755
    %757 = vdwg.mxu0
    %v758 = vmax.f32 %v749, 0.0
    %v759 = vmax.f32 %v751, 0.0
    %v760 = vmax.f32 %v754, 0.0
    %v761 = vmax.f32 %v756, 0.0
    %v762 = vpack.c.bf16 %v759, %v758
    %v763 = vpack.c.bf16 %v761, %v760
    %v768 = vunpack.c.l.b16 %v644
    %v769 = vunpack.c.l.b16 %v645
    %v770 = vunpack.c.l.b16 %v646
    %v771 = vunpack.c.l.b16 %v647
    %v772 = vpack.c.b16 %v769, %v768
    %v773 = vpack.c.b16 %v771, %v770
    %v775 = vsel %vm93, %v772, 0
    %v778 = vsel %vm93, %v773, 0
    %780 = vmatpush.bf16.msra.mxu0 0
    %781 = vmatpush.bf16.msra.mxu0 0
    %782 = vmatpush.bf16.msra.mxu0 0
    %783 = vmatpush.bf16.msra.mxu0 0
    %784 = vmatpush.bf16.msra.mxu0 0
    %785 = vmatpush.bf16.msra.mxu0 0
    %786 = vmatpush.bf16.msra.mxu0 0
    %787 = vmatpush.bf16.msra.mxu0 %v91
    %788 = vmatmul.bf16.gmra.mxu0 %v775
    %v789 = vpop.f32.mrf.mxu0
    %v790 = vadd.f32 0.0, %v789
    %v791 = vpop.f32.mrf.mxu0
    %v792 = vadd.f32 0.0, %v791
    %793 = vmatmul.bf16.gmra.mxu0 %v778
    %v794 = vpop.f32.mrf.mxu0
    %v795 = vadd.f32 0.0, %v794
    %v796 = vpop.f32.mrf.mxu0
    %v797 = vadd.f32 0.0, %v796
    %798 = vdwg.mxu0
    %799 = vmatpush.bf16.msra.mxu0 0
    %800 = vmatpush.bf16.msra.mxu0 0
    %801 = vmatpush.bf16.msra.mxu0 0
    %802 = vmatpush.bf16.msra.mxu0 0
    %803 = vmatpush.bf16.msra.mxu0 0
    %804 = vmatpush.bf16.msra.mxu0 0
    %805 = vmatpush.bf16.msra.mxu0 %v763
    %806 = vmatpush.bf16.msra.mxu0 %v762
    %807 = vmatmul.bf16.gmra.mxu0 %v347
    %v808 = vpop.f32.mrf.mxu0
    %v809 = vadd.f32 %v790, %v808
    %v810 = vpop.f32.mrf.mxu0
    %v811 = vadd.f32 %v792, %v810
    %812 = vmatmul.bf16.gmra.mxu0 %v350
    %v813 = vpop.f32.mrf.mxu0
    %v814 = vadd.f32 %v795, %v813
    %v815 = vpop.f32.mrf.mxu0
    %v816 = vadd.f32 %v797, %v815
    %817 = vdwg.mxu0
    %v818 = vmax.f32 %v809, 0.0
    %v819 = vmax.f32 %v811, 0.0
    %v820 = vmax.f32 %v814, 0.0
    %v821 = vmax.f32 %v816, 0.0
    %v822 = vpack.c.bf16 %v819, %v818
    %v823 = vpack.c.bf16 %v821, %v820
    %824 = vmatpush.bf16.msra.mxu0 0
    %825 = vmatpush.bf16.msra.mxu0 0
    %826 = vmatpush.bf16.msra.mxu0 0
    %827 = vmatpush.bf16.msra.mxu0 0
    %828 = vmatpush.bf16.msra.mxu0 0
    %829 = vmatpush.bf16.msra.mxu0 0
    %830 = vmatpush.bf16.msra.mxu0 %v823
    %831 = vmatpush.bf16.msra.mxu0 %v822
    %832 = vmatmul.bf16.gmra.mxu0 %v404
    %v833 = vpop.f32.mrf.mxu0
    %v834 = vadd.f32 %v379, %v833
    %v835 = vpop.f32.mrf.mxu0
    %v836 = vadd.f32 %v383, %v835
    %837 = vmatmul.bf16.gmra.mxu0 %v407
    %v838 = vpop.f32.mrf.mxu0
    %v839 = vadd.f32 %v387, %v838
    %v840 = vpop.f32.mrf.mxu0
    %v841 = vadd.f32 %v391, %v840
    %842 = vdwg.mxu0
    %v843 = vmax.f32 %v834, 0.0
    %v844 = vmax.f32 %v836, 0.0
    %v845 = vmax.f32 %v839, 0.0
    %v846 = vmax.f32 %v841, 0.0
    %v847 = vpack.c.bf16 %v844, %v843
    %v848 = vpack.c.bf16 %v846, %v845
    %849 = vmatpush.bf16.msra.mxu0 0
    %850 = vmatpush.bf16.msra.mxu0 0
    %851 = vmatpush.bf16.msra.mxu0 0
    %852 = vmatpush.bf16.msra.mxu0 0
    %853 = vmatpush.bf16.msra.mxu0 0
    %854 = vmatpush.bf16.msra.mxu0 0
    %855 = vmatpush.bf16.msra.mxu0 %v848
    %856 = vmatpush.bf16.msra.mxu0 %v847
    %857 = vmatmul.bf16.gmra.mxu0 %v461
    %v858 = vpop.f32.mrf.mxu0
    %v859 = vadd.f32 %v436, %v858
    %v860 = vpop.f32.mrf.mxu0
    %v861 = vadd.f32 %v440, %v860
    %862 = vmatmul.bf16.gmra.mxu0 %v464
    %v863 = vpop.f32.mrf.mxu0
    %v864 = vadd.f32 %v444, %v863
    %v865 = vpop.f32.mrf.mxu0
    %v866 = vadd.f32 %v448, %v865
    %867 = vdwg.mxu0
    %v868 = vmax.f32 %v859, 0.0
    %v869 = vmax.f32 %v861, 0.0
    %v870 = vmax.f32 %v864, 0.0
    %v871 = vmax.f32 %v866, 0.0
    %v872 = vpack.c.bf16 %v869, %v868
    %v873 = vpack.c.bf16 %v871, %v870
    %874 = vmatpush.bf16.msra.mxu0 0
    %875 = vmatpush.bf16.msra.mxu0 0
    %876 = vmatpush.bf16.msra.mxu0 0
    %877 = vmatpush.bf16.msra.mxu0 0
    %878 = vmatpush.bf16.msra.mxu0 0
    %879 = vmatpush.bf16.msra.mxu0 0
    %880 = vmatpush.bf16.msra.mxu0 %v873
    %881 = vmatpush.bf16.msra.mxu0 %v872
    %882 = vmatmul.bf16.gmra.mxu0 %v518
    %v883 = vpop.f32.mrf.mxu0
    %v884 = vadd.f32 %v493, %v883
    %v885 = vpop.f32.mrf.mxu0
    %v886 = vadd.f32 %v497, %v885
    %887 = vmatmul.bf16.gmra.mxu0 %v521
    %v888 = vpop.f32.mrf.mxu0
    %v889 = vadd.f32 %v501, %v888
    %v890 = vpop.f32.mrf.mxu0
    %v891 = vadd.f32 %v505, %v890
    %892 = vdwg.mxu0
    %v893 = vmax.f32 %v884, 0.0
    %v894 = vmax.f32 %v886, 0.0
    %v895 = vmax.f32 %v889, 0.0
    %v896 = vmax.f32 %v891, 0.0
    %v897 = vpack.c.bf16 %v894, %v893
    %v898 = vpack.c.bf16 %v896, %v895
    %899 = vmatpush.bf16.msra.mxu0 0
    %900 = vmatpush.bf16.msra.mxu0 0
    %901 = vmatpush.bf16.msra.mxu0 0
    %902 = vmatpush.bf16.msra.mxu0 0
    %903 = vmatpush.bf16.msra.mxu0 0
    %904 = vmatpush.bf16.msra.mxu0 0
    %905 = vmatpush.bf16.msra.mxu0 %v898
    %906 = vmatpush.bf16.msra.mxu0 %v897
    %907 = vmatmul.bf16.gmra.mxu0 %v575
    %v908 = vpop.f32.mrf.mxu0
    %v909 = vadd.f32 %v550, %v908
    %v910 = vpop.f32.mrf.mxu0
    %v911 = vadd.f32 %v554, %v910
    %912 = vmatmul.bf16.gmra.mxu0 %v578
    %v913 = vpop.f32.mrf.mxu0
    %v914 = vadd.f32 %v558, %v913
    %v915 = vpop.f32.mrf.mxu0
    %v916 = vadd.f32 %v562, %v915
    %917 = vdwg.mxu0
    %v918 = vmax.f32 %v909, 0.0
    %v919 = vmax.f32 %v911, 0.0
    %v920 = vmax.f32 %v914, 0.0
    %v921 = vmax.f32 %v916, 0.0
    %v922 = vmul.f32 %v918, %v605
    %v923 = vmul.f32 %v919, %v609
    %v924 = vmul.f32 %v920, %v613
    %v925 = vmul.f32 %v921, %v617
    %v926 = vadd.f32 %v922, %v923
    %v927 = vadd.f32 %v926, %v924
    %v928 = vadd.f32 %v927, %v925
    %v929 = vrot.slane %v928, 4
    %v930 = vadd.f32 %v928, %v929
    %v931 = vrot.slane %v930, 2
    %v932 = vadd.f32 %v930, %v931
    %v933 = vrot.slane %v932, 1
    %v934 = vadd.f32 %v932, %v933
    %v935 = vadd.f32 %v934, %v635
    %s936 = scalar_lea.vmem %s1, 64
    %v937 = vld [vmem:[%s936] sm:$0xf]
    %v938 = vld [vmem:[%s936 + $0x4] sm:$0xf]
    %v939 = vld [vmem:[%s936 + $0x8] sm:$0xf]
    %v940 = vld [vmem:[%s936 + $0xc] sm:$0xf]
    %s941 = scalar_lea.vmem %s1, 80
    %v942 = vld [vmem:[%s941] sm:$0xf]
    %v943 = vld [vmem:[%s941 + $0x4] sm:$0xf]
    %v944 = vld [vmem:[%s941 + $0x8] sm:$0xf]
    %v945 = vld [vmem:[%s941 + $0xc] sm:$0xf]
    %v950 = vunpack.c.l.b16 %v937
    %v951 = vunpack.c.l.b16 %v938
    %v952 = vunpack.c.l.b16 %v939
    %v953 = vunpack.c.l.b16 %v940
    %v954 = vpack.c.b16 %v951, %v950
    %v955 = vpack.c.b16 %v953, %v952
    %v957 = vsel %vm93, %v954, 0
    %v960 = vsel %vm93, %v955, 0
    %962 = vmatpush.bf16.msra.mxu0 0
    %963 = vmatpush.bf16.msra.mxu0 0
    %964 = vmatpush.bf16.msra.mxu0 0
    %965 = vmatpush.bf16.msra.mxu0 0
    %966 = vmatpush.bf16.msra.mxu0 0
    %967 = vmatpush.bf16.msra.mxu0 0
    %968 = vmatpush.bf16.msra.mxu0 0
    %969 = vmatpush.bf16.msra.mxu0 %v91
    %970 = vmatmul.bf16.gmra.mxu0 %v957
    %v971 = vpop.f32.mrf.mxu0
    %v972 = vadd.f32 0.0, %v971
    %v973 = vpop.f32.mrf.mxu0
    %v974 = vadd.f32 0.0, %v973
    %975 = vmatmul.bf16.gmra.mxu0 %v960
    %v976 = vpop.f32.mrf.mxu0
    %v977 = vadd.f32 0.0, %v976
    %v978 = vpop.f32.mrf.mxu0
    %v979 = vadd.f32 0.0, %v978
    %980 = vdwg.mxu0
    %v981 = vmax.f32 %v972, 0.0
    %v982 = vmax.f32 %v974, 0.0
    %v983 = vmax.f32 %v977, 0.0
    %v984 = vmax.f32 %v979, 0.0
    %v985 = vpack.c.bf16 %v982, %v981
    %v986 = vpack.c.bf16 %v984, %v983
    %987 = vmatpush.bf16.msra.mxu0 0
    %988 = vmatpush.bf16.msra.mxu0 0
    %989 = vmatpush.bf16.msra.mxu0 0
    %990 = vmatpush.bf16.msra.mxu0 0
    %991 = vmatpush.bf16.msra.mxu0 0
    %992 = vmatpush.bf16.msra.mxu0 0
    %993 = vmatpush.bf16.msra.mxu0 %v986
    %994 = vmatpush.bf16.msra.mxu0 %v985
    %995 = vmatmul.bf16.gmra.mxu0 %v157
    %v996 = vpop.f32.mrf.mxu0
    %v997 = vadd.f32 %v128, %v996
    %v998 = vpop.f32.mrf.mxu0
    %v999 = vadd.f32 %v133, %v998
    %1000 = vmatmul.bf16.gmra.mxu0 %v160
    %v1001 = vpop.f32.mrf.mxu0
    %v1002 = vadd.f32 %v138, %v1001
    %v1003 = vpop.f32.mrf.mxu0
    %v1004 = vadd.f32 %v143, %v1003
    %1005 = vdwg.mxu0
    %v1006 = vmax.f32 %v997, 0.0
    %v1007 = vmax.f32 %v999, 0.0
    %v1008 = vmax.f32 %v1002, 0.0
    %v1009 = vmax.f32 %v1004, 0.0
    %v1010 = vpack.c.bf16 %v1007, %v1006
    %v1011 = vpack.c.bf16 %v1009, %v1008
    %1012 = vmatpush.bf16.msra.mxu0 0
    %1013 = vmatpush.bf16.msra.mxu0 0
    %1014 = vmatpush.bf16.msra.mxu0 0
    %1015 = vmatpush.bf16.msra.mxu0 0
    %1016 = vmatpush.bf16.msra.mxu0 0
    %1017 = vmatpush.bf16.msra.mxu0 0
    %1018 = vmatpush.bf16.msra.mxu0 %v1011
    %1019 = vmatpush.bf16.msra.mxu0 %v1010
    %1020 = vmatmul.bf16.gmra.mxu0 %v214
    %v1021 = vpop.f32.mrf.mxu0
    %v1022 = vadd.f32 %v189, %v1021
    %v1023 = vpop.f32.mrf.mxu0
    %v1024 = vadd.f32 %v193, %v1023
    %1025 = vmatmul.bf16.gmra.mxu0 %v217
    %v1026 = vpop.f32.mrf.mxu0
    %v1027 = vadd.f32 %v197, %v1026
    %v1028 = vpop.f32.mrf.mxu0
    %v1029 = vadd.f32 %v201, %v1028
    %1030 = vdwg.mxu0
    %v1031 = vmax.f32 %v1022, 0.0
    %v1032 = vmax.f32 %v1024, 0.0
    %v1033 = vmax.f32 %v1027, 0.0
    %v1034 = vmax.f32 %v1029, 0.0
    %v1035 = vpack.c.bf16 %v1032, %v1031
    %v1036 = vpack.c.bf16 %v1034, %v1033
    %1037 = vmatpush.bf16.msra.mxu0 0
    %1038 = vmatpush.bf16.msra.mxu0 0
    %1039 = vmatpush.bf16.msra.mxu0 0
    %1040 = vmatpush.bf16.msra.mxu0 0
    %1041 = vmatpush.bf16.msra.mxu0 0
    %1042 = vmatpush.bf16.msra.mxu0 0
    %1043 = vmatpush.bf16.msra.mxu0 %v1036
    %1044 = vmatpush.bf16.msra.mxu0 %v1035
    %1045 = vmatmul.bf16.gmra.mxu0 %v271
    %v1046 = vpop.f32.mrf.mxu0
    %v1047 = vadd.f32 %v246, %v1046
    %v1048 = vpop.f32.mrf.mxu0
    %v1049 = vadd.f32 %v250, %v1048
    %1050 = vmatmul.bf16.gmra.mxu0 %v274
    %v1051 = vpop.f32.mrf.mxu0
    %v1052 = vadd.f32 %v254, %v1051
    %v1053 = vpop.f32.mrf.mxu0
    %v1054 = vadd.f32 %v258, %v1053
    %1055 = vdwg.mxu0
    %v1056 = vmax.f32 %v1047, 0.0
    %v1057 = vmax.f32 %v1049, 0.0
    %v1058 = vmax.f32 %v1052, 0.0
    %v1059 = vmax.f32 %v1054, 0.0
    %v1060 = vpack.c.bf16 %v1057, %v1056
    %v1061 = vpack.c.bf16 %v1059, %v1058
    %v1066 = vunpack.c.l.b16 %v942
    %v1067 = vunpack.c.l.b16 %v943
    %v1068 = vunpack.c.l.b16 %v944
    %v1069 = vunpack.c.l.b16 %v945
    %v1070 = vpack.c.b16 %v1067, %v1066
    %v1071 = vpack.c.b16 %v1069, %v1068
    %v1073 = vsel %vm93, %v1070, 0
    %v1076 = vsel %vm93, %v1071, 0
    %1078 = vmatpush.bf16.msra.mxu0 0
    %1079 = vmatpush.bf16.msra.mxu0 0
    %1080 = vmatpush.bf16.msra.mxu0 0
    %1081 = vmatpush.bf16.msra.mxu0 0
    %1082 = vmatpush.bf16.msra.mxu0 0
    %1083 = vmatpush.bf16.msra.mxu0 0
    %1084 = vmatpush.bf16.msra.mxu0 0
    %1085 = vmatpush.bf16.msra.mxu0 %v91
    %1086 = vmatmul.bf16.gmra.mxu0 %v1073
    %v1087 = vpop.f32.mrf.mxu0
    %v1088 = vadd.f32 0.0, %v1087
    %v1089 = vpop.f32.mrf.mxu0
    %v1090 = vadd.f32 0.0, %v1089
    %1091 = vmatmul.bf16.gmra.mxu0 %v1076
    %v1092 = vpop.f32.mrf.mxu0
    %v1093 = vadd.f32 0.0, %v1092
    %v1094 = vpop.f32.mrf.mxu0
    %v1095 = vadd.f32 0.0, %v1094
    %1096 = vdwg.mxu0
    %1097 = vmatpush.bf16.msra.mxu0 0
    %1098 = vmatpush.bf16.msra.mxu0 0
    %1099 = vmatpush.bf16.msra.mxu0 0
    %1100 = vmatpush.bf16.msra.mxu0 0
    %1101 = vmatpush.bf16.msra.mxu0 0
    %1102 = vmatpush.bf16.msra.mxu0 0
    %1103 = vmatpush.bf16.msra.mxu0 %v1061
    %1104 = vmatpush.bf16.msra.mxu0 %v1060
    %1105 = vmatmul.bf16.gmra.mxu0 %v347
    %v1106 = vpop.f32.mrf.mxu0
    %v1107 = vadd.f32 %v1088, %v1106
    %v1108 = vpop.f32.mrf.mxu0
    %v1109 = vadd.f32 %v1090, %v1108
    %1110 = vmatmul.bf16.gmra.mxu0 %v350
    %v1111 = vpop.f32.mrf.mxu0
    %v1112 = vadd.f32 %v1093, %v1111
    %v1113 = vpop.f32.mrf.mxu0
    %v1114 = vadd.f32 %v1095, %v1113
    %1115 = vdwg.mxu0
    %v1116 = vmax.f32 %v1107, 0.0
    %v1117 = vmax.f32 %v1109, 0.0
    %v1118 = vmax.f32 %v1112, 0.0
    %v1119 = vmax.f32 %v1114, 0.0
    %v1120 = vpack.c.bf16 %v1117, %v1116
    %v1121 = vpack.c.bf16 %v1119, %v1118
    %1122 = vmatpush.bf16.msra.mxu0 0
    %1123 = vmatpush.bf16.msra.mxu0 0
    %1124 = vmatpush.bf16.msra.mxu0 0
    %1125 = vmatpush.bf16.msra.mxu0 0
    %1126 = vmatpush.bf16.msra.mxu0 0
    %1127 = vmatpush.bf16.msra.mxu0 0
    %1128 = vmatpush.bf16.msra.mxu0 %v1121
    %1129 = vmatpush.bf16.msra.mxu0 %v1120
    %1130 = vmatmul.bf16.gmra.mxu0 %v404
    %v1131 = vpop.f32.mrf.mxu0
    %v1132 = vadd.f32 %v379, %v1131
    %v1133 = vpop.f32.mrf.mxu0
    %v1134 = vadd.f32 %v383, %v1133
    %1135 = vmatmul.bf16.gmra.mxu0 %v407
    %v1136 = vpop.f32.mrf.mxu0
    %v1137 = vadd.f32 %v387, %v1136
    %v1138 = vpop.f32.mrf.mxu0
    %v1139 = vadd.f32 %v391, %v1138
    %1140 = vdwg.mxu0
    %v1141 = vmax.f32 %v1132, 0.0
    %v1142 = vmax.f32 %v1134, 0.0
    %v1143 = vmax.f32 %v1137, 0.0
    %v1144 = vmax.f32 %v1139, 0.0
    %v1145 = vpack.c.bf16 %v1142, %v1141
    %v1146 = vpack.c.bf16 %v1144, %v1143
    %1147 = vmatpush.bf16.msra.mxu0 0
    %1148 = vmatpush.bf16.msra.mxu0 0
    %1149 = vmatpush.bf16.msra.mxu0 0
    %1150 = vmatpush.bf16.msra.mxu0 0
    %1151 = vmatpush.bf16.msra.mxu0 0
    %1152 = vmatpush.bf16.msra.mxu0 0
    %1153 = vmatpush.bf16.msra.mxu0 %v1146
    %1154 = vmatpush.bf16.msra.mxu0 %v1145
    %1155 = vmatmul.bf16.gmra.mxu0 %v461
    %v1156 = vpop.f32.mrf.mxu0
    %v1157 = vadd.f32 %v436, %v1156
    %v1158 = vpop.f32.mrf.mxu0
    %v1159 = vadd.f32 %v440, %v1158
    %1160 = vmatmul.bf16.gmra.mxu0 %v464
    %v1161 = vpop.f32.mrf.mxu0
    %v1162 = vadd.f32 %v444, %v1161
    %v1163 = vpop.f32.mrf.mxu0
    %v1164 = vadd.f32 %v448, %v1163
    %1165 = vdwg.mxu0
    %v1166 = vmax.f32 %v1157, 0.0
    %v1167 = vmax.f32 %v1159, 0.0
    %v1168 = vmax.f32 %v1162, 0.0
    %v1169 = vmax.f32 %v1164, 0.0
    %v1170 = vpack.c.bf16 %v1167, %v1166
    %v1171 = vpack.c.bf16 %v1169, %v1168
    %1172 = vmatpush.bf16.msra.mxu0 0
    %1173 = vmatpush.bf16.msra.mxu0 0
    %1174 = vmatpush.bf16.msra.mxu0 0
    %1175 = vmatpush.bf16.msra.mxu0 0
    %1176 = vmatpush.bf16.msra.mxu0 0
    %1177 = vmatpush.bf16.msra.mxu0 0
    %1178 = vmatpush.bf16.msra.mxu0 %v1171
    %1179 = vmatpush.bf16.msra.mxu0 %v1170
    %1180 = vmatmul.bf16.gmra.mxu0 %v518
    %v1181 = vpop.f32.mrf.mxu0
    %v1182 = vadd.f32 %v493, %v1181
    %v1183 = vpop.f32.mrf.mxu0
    %v1184 = vadd.f32 %v497, %v1183
    %1185 = vmatmul.bf16.gmra.mxu0 %v521
    %v1186 = vpop.f32.mrf.mxu0
    %v1187 = vadd.f32 %v501, %v1186
    %v1188 = vpop.f32.mrf.mxu0
    %v1189 = vadd.f32 %v505, %v1188
    %1190 = vdwg.mxu0
    %v1191 = vmax.f32 %v1182, 0.0
    %v1192 = vmax.f32 %v1184, 0.0
    %v1193 = vmax.f32 %v1187, 0.0
    %v1194 = vmax.f32 %v1189, 0.0
    %v1195 = vpack.c.bf16 %v1192, %v1191
    %v1196 = vpack.c.bf16 %v1194, %v1193
    %1197 = vmatpush.bf16.msra.mxu0 0
    %1198 = vmatpush.bf16.msra.mxu0 0
    %1199 = vmatpush.bf16.msra.mxu0 0
    %1200 = vmatpush.bf16.msra.mxu0 0
    %1201 = vmatpush.bf16.msra.mxu0 0
    %1202 = vmatpush.bf16.msra.mxu0 0
    %1203 = vmatpush.bf16.msra.mxu0 %v1196
    %1204 = vmatpush.bf16.msra.mxu0 %v1195
    %1205 = vmatmul.bf16.gmra.mxu0 %v575
    %v1206 = vpop.f32.mrf.mxu0
    %v1207 = vadd.f32 %v550, %v1206
    %v1208 = vpop.f32.mrf.mxu0
    %v1209 = vadd.f32 %v554, %v1208
    %1210 = vmatmul.bf16.gmra.mxu0 %v578
    %v1211 = vpop.f32.mrf.mxu0
    %v1212 = vadd.f32 %v558, %v1211
    %v1213 = vpop.f32.mrf.mxu0
    %v1214 = vadd.f32 %v562, %v1213
    %1215 = vdwg.mxu0
    %v1216 = vmax.f32 %v1207, 0.0
    %v1217 = vmax.f32 %v1209, 0.0
    %v1218 = vmax.f32 %v1212, 0.0
    %v1219 = vmax.f32 %v1214, 0.0
    %v1220 = vmul.f32 %v1216, %v605
    %v1221 = vmul.f32 %v1217, %v609
    %v1222 = vmul.f32 %v1218, %v613
    %v1223 = vmul.f32 %v1219, %v617
    %v1224 = vadd.f32 %v1220, %v1221
    %v1225 = vadd.f32 %v1224, %v1222
    %v1226 = vadd.f32 %v1225, %v1223
    %v1227 = vrot.slane %v1226, 4
    %v1228 = vadd.f32 %v1226, %v1227
    %v1229 = vrot.slane %v1228, 2
    %v1230 = vadd.f32 %v1228, %v1229
    %v1231 = vrot.slane %v1230, 1
    %v1232 = vadd.f32 %v1230, %v1231
    %v1233 = vadd.f32 %v1232, %v635
    %s1234 = scalar_lea.vmem %s1, 96
    %v1235 = vld [vmem:[%s1234] sm:$0xf]
    %v1236 = vld [vmem:[%s1234 + $0x4] sm:$0xf]
    %v1237 = vld [vmem:[%s1234 + $0x8] sm:$0xf]
    %v1238 = vld [vmem:[%s1234 + $0xc] sm:$0xf]
    %s1239 = scalar_lea.vmem %s1, 112
    %v1240 = vld [vmem:[%s1239] sm:$0xf]
    %v1241 = vld [vmem:[%s1239 + $0x4] sm:$0xf]
    %v1242 = vld [vmem:[%s1239 + $0x8] sm:$0xf]
    %v1243 = vld [vmem:[%s1239 + $0xc] sm:$0xf]
    %v1248 = vunpack.c.l.b16 %v1235
    %v1249 = vunpack.c.l.b16 %v1236
    %v1250 = vunpack.c.l.b16 %v1237
    %v1251 = vunpack.c.l.b16 %v1238
    %v1252 = vpack.c.b16 %v1249, %v1248
    %v1253 = vpack.c.b16 %v1251, %v1250
    %v1255 = vsel %vm93, %v1252, 0
    %v1258 = vsel %vm93, %v1253, 0
    %1260 = vmatpush.bf16.msra.mxu0 0
    %1261 = vmatpush.bf16.msra.mxu0 0
    %1262 = vmatpush.bf16.msra.mxu0 0
    %1263 = vmatpush.bf16.msra.mxu0 0
    %1264 = vmatpush.bf16.msra.mxu0 0
    %1265 = vmatpush.bf16.msra.mxu0 0
    %1266 = vmatpush.bf16.msra.mxu0 0
    %1267 = vmatpush.bf16.msra.mxu0 %v91
    %1268 = vmatmul.bf16.gmra.mxu0 %v1255
    %v1269 = vpop.f32.mrf.mxu0
    %v1270 = vadd.f32 0.0, %v1269
    %v1271 = vpop.f32.mrf.mxu0
    %v1272 = vadd.f32 0.0, %v1271
    %1273 = vmatmul.bf16.gmra.mxu0 %v1258
    %v1274 = vpop.f32.mrf.mxu0
    %v1275 = vadd.f32 0.0, %v1274
    %v1276 = vpop.f32.mrf.mxu0
    %v1277 = vadd.f32 0.0, %v1276
    %1278 = vdwg.mxu0
    %v1279 = vmax.f32 %v1270, 0.0
    %v1280 = vmax.f32 %v1272, 0.0
    %v1281 = vmax.f32 %v1275, 0.0
    %v1282 = vmax.f32 %v1277, 0.0
    %v1283 = vpack.c.bf16 %v1280, %v1279
    %v1284 = vpack.c.bf16 %v1282, %v1281
    %1285 = vmatpush.bf16.msra.mxu0 0
    %1286 = vmatpush.bf16.msra.mxu0 0
    %1287 = vmatpush.bf16.msra.mxu0 0
    %1288 = vmatpush.bf16.msra.mxu0 0
    %1289 = vmatpush.bf16.msra.mxu0 0
    %1290 = vmatpush.bf16.msra.mxu0 0
    %1291 = vmatpush.bf16.msra.mxu0 %v1284
    %1292 = vmatpush.bf16.msra.mxu0 %v1283
    %1293 = vmatmul.bf16.gmra.mxu0 %v157
    %v1294 = vpop.f32.mrf.mxu0
    %v1295 = vadd.f32 %v128, %v1294
    %v1296 = vpop.f32.mrf.mxu0
    %v1297 = vadd.f32 %v133, %v1296
    %1298 = vmatmul.bf16.gmra.mxu0 %v160
    %v1299 = vpop.f32.mrf.mxu0
    %v1300 = vadd.f32 %v138, %v1299
    %v1301 = vpop.f32.mrf.mxu0
    %v1302 = vadd.f32 %v143, %v1301
    %1303 = vdwg.mxu0
    %v1304 = vmax.f32 %v1295, 0.0
    %v1305 = vmax.f32 %v1297, 0.0
    %v1306 = vmax.f32 %v1300, 0.0
    %v1307 = vmax.f32 %v1302, 0.0
    %v1308 = vpack.c.bf16 %v1305, %v1304
    %v1309 = vpack.c.bf16 %v1307, %v1306
    %1310 = vmatpush.bf16.msra.mxu0 0
    %1311 = vmatpush.bf16.msra.mxu0 0
    %1312 = vmatpush.bf16.msra.mxu0 0
    %1313 = vmatpush.bf16.msra.mxu0 0
    %1314 = vmatpush.bf16.msra.mxu0 0
    %1315 = vmatpush.bf16.msra.mxu0 0
    %1316 = vmatpush.bf16.msra.mxu0 %v1309
    %1317 = vmatpush.bf16.msra.mxu0 %v1308
    %1318 = vmatmul.bf16.gmra.mxu0 %v214
    %v1319 = vpop.f32.mrf.mxu0
    %v1320 = vadd.f32 %v189, %v1319
    %v1321 = vpop.f32.mrf.mxu0
    %v1322 = vadd.f32 %v193, %v1321
    %1323 = vmatmul.bf16.gmra.mxu0 %v217
    %v1324 = vpop.f32.mrf.mxu0
    %v1325 = vadd.f32 %v197, %v1324
    %v1326 = vpop.f32.mrf.mxu0
    %v1327 = vadd.f32 %v201, %v1326
    %1328 = vdwg.mxu0
    %v1329 = vmax.f32 %v1320, 0.0
    %v1330 = vmax.f32 %v1322, 0.0
    %v1331 = vmax.f32 %v1325, 0.0
    %v1332 = vmax.f32 %v1327, 0.0
    %v1333 = vpack.c.bf16 %v1330, %v1329
    %v1334 = vpack.c.bf16 %v1332, %v1331
    %1335 = vmatpush.bf16.msra.mxu0 0
    %1336 = vmatpush.bf16.msra.mxu0 0
    %1337 = vmatpush.bf16.msra.mxu0 0
    %1338 = vmatpush.bf16.msra.mxu0 0
    %1339 = vmatpush.bf16.msra.mxu0 0
    %1340 = vmatpush.bf16.msra.mxu0 0
    %1341 = vmatpush.bf16.msra.mxu0 %v1334
    %1342 = vmatpush.bf16.msra.mxu0 %v1333
    %1343 = vmatmul.bf16.gmra.mxu0 %v271
    %v1344 = vpop.f32.mrf.mxu0
    %v1345 = vadd.f32 %v246, %v1344
    %v1346 = vpop.f32.mrf.mxu0
    %v1347 = vadd.f32 %v250, %v1346
    %1348 = vmatmul.bf16.gmra.mxu0 %v274
    %v1349 = vpop.f32.mrf.mxu0
    %v1350 = vadd.f32 %v254, %v1349
    %v1351 = vpop.f32.mrf.mxu0
    %v1352 = vadd.f32 %v258, %v1351
    %1353 = vdwg.mxu0
    %v1354 = vmax.f32 %v1345, 0.0
    %v1355 = vmax.f32 %v1347, 0.0
    %v1356 = vmax.f32 %v1350, 0.0
    %v1357 = vmax.f32 %v1352, 0.0
    %v1358 = vpack.c.bf16 %v1355, %v1354
    %v1359 = vpack.c.bf16 %v1357, %v1356
    %v1364 = vunpack.c.l.b16 %v1240
    %v1365 = vunpack.c.l.b16 %v1241
    %v1366 = vunpack.c.l.b16 %v1242
    %v1367 = vunpack.c.l.b16 %v1243
    %v1368 = vpack.c.b16 %v1365, %v1364
    %v1369 = vpack.c.b16 %v1367, %v1366
    %v1371 = vsel %vm93, %v1368, 0
    %v1374 = vsel %vm93, %v1369, 0
    %1376 = vmatpush.bf16.msra.mxu0 0
    %1377 = vmatpush.bf16.msra.mxu0 0
    %1378 = vmatpush.bf16.msra.mxu0 0
    %1379 = vmatpush.bf16.msra.mxu0 0
    %1380 = vmatpush.bf16.msra.mxu0 0
    %1381 = vmatpush.bf16.msra.mxu0 0
    %1382 = vmatpush.bf16.msra.mxu0 0
    %1383 = vmatpush.bf16.msra.mxu0 %v91
    %1384 = vmatmul.bf16.gmra.mxu0 %v1371
    %v1385 = vpop.f32.mrf.mxu0
    %v1386 = vadd.f32 0.0, %v1385
    %v1387 = vpop.f32.mrf.mxu0
    %v1388 = vadd.f32 0.0, %v1387
    %1389 = vmatmul.bf16.gmra.mxu0 %v1374
    %v1390 = vpop.f32.mrf.mxu0
    %v1391 = vadd.f32 0.0, %v1390
    %v1392 = vpop.f32.mrf.mxu0
    %v1393 = vadd.f32 0.0, %v1392
    %1394 = vdwg.mxu0
    %1395 = vmatpush.bf16.msra.mxu0 0
    %1396 = vmatpush.bf16.msra.mxu0 0
    %1397 = vmatpush.bf16.msra.mxu0 0
    %1398 = vmatpush.bf16.msra.mxu0 0
    %1399 = vmatpush.bf16.msra.mxu0 0
    %1400 = vmatpush.bf16.msra.mxu0 0
    %1401 = vmatpush.bf16.msra.mxu0 %v1359
    %1402 = vmatpush.bf16.msra.mxu0 %v1358
    %1403 = vmatmul.bf16.gmra.mxu0 %v347
    %v1404 = vpop.f32.mrf.mxu0
    %v1405 = vadd.f32 %v1386, %v1404
    %v1406 = vpop.f32.mrf.mxu0
    %v1407 = vadd.f32 %v1388, %v1406
    %1408 = vmatmul.bf16.gmra.mxu0 %v350
    %v1409 = vpop.f32.mrf.mxu0
    %v1410 = vadd.f32 %v1391, %v1409
    %v1411 = vpop.f32.mrf.mxu0
    %v1412 = vadd.f32 %v1393, %v1411
    %1413 = vdwg.mxu0
    %v1414 = vmax.f32 %v1405, 0.0
    %v1415 = vmax.f32 %v1407, 0.0
    %v1416 = vmax.f32 %v1410, 0.0
    %v1417 = vmax.f32 %v1412, 0.0
    %v1418 = vpack.c.bf16 %v1415, %v1414
    %v1419 = vpack.c.bf16 %v1417, %v1416
    %1420 = vmatpush.bf16.msra.mxu0 0
    %1421 = vmatpush.bf16.msra.mxu0 0
    %1422 = vmatpush.bf16.msra.mxu0 0
    %1423 = vmatpush.bf16.msra.mxu0 0
    %1424 = vmatpush.bf16.msra.mxu0 0
    %1425 = vmatpush.bf16.msra.mxu0 0
    %1426 = vmatpush.bf16.msra.mxu0 %v1419
    %1427 = vmatpush.bf16.msra.mxu0 %v1418
    %1428 = vmatmul.bf16.gmra.mxu0 %v404
    %v1429 = vpop.f32.mrf.mxu0
    %v1430 = vadd.f32 %v379, %v1429
    %v1431 = vpop.f32.mrf.mxu0
    %v1432 = vadd.f32 %v383, %v1431
    %1433 = vmatmul.bf16.gmra.mxu0 %v407
    %v1434 = vpop.f32.mrf.mxu0
    %v1435 = vadd.f32 %v387, %v1434
    %v1436 = vpop.f32.mrf.mxu0
    %v1437 = vadd.f32 %v391, %v1436
    %1438 = vdwg.mxu0
    %v1439 = vmax.f32 %v1430, 0.0
    %v1440 = vmax.f32 %v1432, 0.0
    %v1441 = vmax.f32 %v1435, 0.0
    %v1442 = vmax.f32 %v1437, 0.0
    %v1443 = vpack.c.bf16 %v1440, %v1439
    %v1444 = vpack.c.bf16 %v1442, %v1441
    %1445 = vmatpush.bf16.msra.mxu0 0
    %1446 = vmatpush.bf16.msra.mxu0 0
    %1447 = vmatpush.bf16.msra.mxu0 0
    %1448 = vmatpush.bf16.msra.mxu0 0
    %1449 = vmatpush.bf16.msra.mxu0 0
    %1450 = vmatpush.bf16.msra.mxu0 0
    %1451 = vmatpush.bf16.msra.mxu0 %v1444
    %1452 = vmatpush.bf16.msra.mxu0 %v1443
    %1453 = vmatmul.bf16.gmra.mxu0 %v461
    %v1454 = vpop.f32.mrf.mxu0
    %v1455 = vadd.f32 %v436, %v1454
    %v1456 = vpop.f32.mrf.mxu0
    %v1457 = vadd.f32 %v440, %v1456
    %1458 = vmatmul.bf16.gmra.mxu0 %v464
    %v1459 = vpop.f32.mrf.mxu0
    %v1460 = vadd.f32 %v444, %v1459
    %v1461 = vpop.f32.mrf.mxu0
    %v1462 = vadd.f32 %v448, %v1461
    %1463 = vdwg.mxu0
    %v1464 = vmax.f32 %v1455, 0.0
    %v1465 = vmax.f32 %v1457, 0.0
    %v1466 = vmax.f32 %v1460, 0.0
    %v1467 = vmax.f32 %v1462, 0.0
    %v1468 = vpack.c.bf16 %v1465, %v1464
    %v1469 = vpack.c.bf16 %v1467, %v1466
    %1470 = vmatpush.bf16.msra.mxu0 0
    %1471 = vmatpush.bf16.msra.mxu0 0
    %1472 = vmatpush.bf16.msra.mxu0 0
    %1473 = vmatpush.bf16.msra.mxu0 0
    %1474 = vmatpush.bf16.msra.mxu0 0
    %1475 = vmatpush.bf16.msra.mxu0 0
    %1476 = vmatpush.bf16.msra.mxu0 %v1469
    %1477 = vmatpush.bf16.msra.mxu0 %v1468
    %1478 = vmatmul.bf16.gmra.mxu0 %v518
    %v1479 = vpop.f32.mrf.mxu0
    %v1480 = vadd.f32 %v493, %v1479
    %v1481 = vpop.f32.mrf.mxu0
    %v1482 = vadd.f32 %v497, %v1481
    %1483 = vmatmul.bf16.gmra.mxu0 %v521
    %v1484 = vpop.f32.mrf.mxu0
    %v1485 = vadd.f32 %v501, %v1484
    %v1486 = vpop.f32.mrf.mxu0
    %v1487 = vadd.f32 %v505, %v1486
    %1488 = vdwg.mxu0
    %v1489 = vmax.f32 %v1480, 0.0
    %v1490 = vmax.f32 %v1482, 0.0
    %v1491 = vmax.f32 %v1485, 0.0
    %v1492 = vmax.f32 %v1487, 0.0
    %v1493 = vpack.c.bf16 %v1490, %v1489
    %v1494 = vpack.c.bf16 %v1492, %v1491
    %1495 = vmatpush.bf16.msra.mxu0 0
    %1496 = vmatpush.bf16.msra.mxu0 0
    %1497 = vmatpush.bf16.msra.mxu0 0
    %1498 = vmatpush.bf16.msra.mxu0 0
    %1499 = vmatpush.bf16.msra.mxu0 0
    %1500 = vmatpush.bf16.msra.mxu0 0
    %1501 = vmatpush.bf16.msra.mxu0 %v1494
    %1502 = vmatpush.bf16.msra.mxu0 %v1493
    %1503 = vmatmul.bf16.gmra.mxu0 %v575
    %v1504 = vpop.f32.mrf.mxu0
    %v1505 = vadd.f32 %v550, %v1504
    %v1506 = vpop.f32.mrf.mxu0
    %v1507 = vadd.f32 %v554, %v1506
    %1508 = vmatmul.bf16.gmra.mxu0 %v578
    %v1509 = vpop.f32.mrf.mxu0
    %v1510 = vadd.f32 %v558, %v1509
    %v1511 = vpop.f32.mrf.mxu0
    %v1512 = vadd.f32 %v562, %v1511
    %1513 = vdwg.mxu0
    %v1514 = vmax.f32 %v1505, 0.0
    %v1515 = vmax.f32 %v1507, 0.0
    %v1516 = vmax.f32 %v1510, 0.0
    %v1517 = vmax.f32 %v1512, 0.0
    %v1518 = vmul.f32 %v1514, %v605
    %v1519 = vmul.f32 %v1515, %v609
    %v1520 = vmul.f32 %v1516, %v613
    %v1521 = vmul.f32 %v1517, %v617
    %v1522 = vadd.f32 %v1518, %v1519
    %v1523 = vadd.f32 %v1522, %v1520
    %v1524 = vadd.f32 %v1523, %v1521
    %v1525 = vrot.slane %v1524, 4
    %v1526 = vadd.f32 %v1524, %v1525
    %v1527 = vrot.slane %v1526, 2
    %v1528 = vadd.f32 %v1526, %v1527
    %v1529 = vrot.slane %v1528, 1
    %v1530 = vadd.f32 %v1528, %v1529
    %v1531 = vadd.f32 %v1530, %v635
    %s1532 = scalar_lea.vmem %s1, 128
    %v1533 = vld [vmem:[%s1532] sm:$0xf]
    %v1534 = vld [vmem:[%s1532 + $0x4] sm:$0xf]
    %v1535 = vld [vmem:[%s1532 + $0x8] sm:$0xf]
    %v1536 = vld [vmem:[%s1532 + $0xc] sm:$0xf]
    %s1537 = scalar_lea.vmem %s1, 144
    %v1538 = vld [vmem:[%s1537] sm:$0xf]
    %v1539 = vld [vmem:[%s1537 + $0x4] sm:$0xf]
    %v1540 = vld [vmem:[%s1537 + $0x8] sm:$0xf]
    %v1541 = vld [vmem:[%s1537 + $0xc] sm:$0xf]
    %v1546 = vunpack.c.l.b16 %v1533
    %v1547 = vunpack.c.l.b16 %v1534
    %v1548 = vunpack.c.l.b16 %v1535
    %v1549 = vunpack.c.l.b16 %v1536
    %v1550 = vpack.c.b16 %v1547, %v1546
    %v1551 = vpack.c.b16 %v1549, %v1548
    %v1553 = vsel %vm93, %v1550, 0
    %v1556 = vsel %vm93, %v1551, 0
    %1558 = vmatpush.bf16.msra.mxu0 0
    %1559 = vmatpush.bf16.msra.mxu0 0
    %1560 = vmatpush.bf16.msra.mxu0 0
    %1561 = vmatpush.bf16.msra.mxu0 0
    %1562 = vmatpush.bf16.msra.mxu0 0
    %1563 = vmatpush.bf16.msra.mxu0 0
    %1564 = vmatpush.bf16.msra.mxu0 0
    %1565 = vmatpush.bf16.msra.mxu0 %v91
    %1566 = vmatmul.bf16.gmra.mxu0 %v1553
    %v1567 = vpop.f32.mrf.mxu0
    %v1568 = vadd.f32 0.0, %v1567
    %v1569 = vpop.f32.mrf.mxu0
    %v1570 = vadd.f32 0.0, %v1569
    %1571 = vmatmul.bf16.gmra.mxu0 %v1556
    %v1572 = vpop.f32.mrf.mxu0
    %v1573 = vadd.f32 0.0, %v1572
    %v1574 = vpop.f32.mrf.mxu0
    %v1575 = vadd.f32 0.0, %v1574
    %1576 = vdwg.mxu0
    %v1577 = vmax.f32 %v1568, 0.0
    %v1578 = vmax.f32 %v1570, 0.0
    %v1579 = vmax.f32 %v1573, 0.0
    %v1580 = vmax.f32 %v1575, 0.0
    %v1581 = vpack.c.bf16 %v1578, %v1577
    %v1582 = vpack.c.bf16 %v1580, %v1579
    %1583 = vmatpush.bf16.msra.mxu0 0
    %1584 = vmatpush.bf16.msra.mxu0 0
    %1585 = vmatpush.bf16.msra.mxu0 0
    %1586 = vmatpush.bf16.msra.mxu0 0
    %1587 = vmatpush.bf16.msra.mxu0 0
    %1588 = vmatpush.bf16.msra.mxu0 0
    %1589 = vmatpush.bf16.msra.mxu0 %v1582
    %1590 = vmatpush.bf16.msra.mxu0 %v1581
    %1591 = vmatmul.bf16.gmra.mxu0 %v157
    %v1592 = vpop.f32.mrf.mxu0
    %v1593 = vadd.f32 %v128, %v1592
    %v1594 = vpop.f32.mrf.mxu0
    %v1595 = vadd.f32 %v133, %v1594
    %1596 = vmatmul.bf16.gmra.mxu0 %v160
    %v1597 = vpop.f32.mrf.mxu0
    %v1598 = vadd.f32 %v138, %v1597
    %v1599 = vpop.f32.mrf.mxu0
    %v1600 = vadd.f32 %v143, %v1599
    %1601 = vdwg.mxu0
    %v1602 = vmax.f32 %v1593, 0.0
    %v1603 = vmax.f32 %v1595, 0.0
    %v1604 = vmax.f32 %v1598, 0.0
    %v1605 = vmax.f32 %v1600, 0.0
    %v1606 = vpack.c.bf16 %v1603, %v1602
    %v1607 = vpack.c.bf16 %v1605, %v1604
    %1608 = vmatpush.bf16.msra.mxu0 0
    %1609 = vmatpush.bf16.msra.mxu0 0
    %1610 = vmatpush.bf16.msra.mxu0 0
    %1611 = vmatpush.bf16.msra.mxu0 0
    %1612 = vmatpush.bf16.msra.mxu0 0
    %1613 = vmatpush.bf16.msra.mxu0 0
    %1614 = vmatpush.bf16.msra.mxu0 %v1607
    %1615 = vmatpush.bf16.msra.mxu0 %v1606
    %1616 = vmatmul.bf16.gmra.mxu0 %v214
    %v1617 = vpop.f32.mrf.mxu0
    %v1618 = vadd.f32 %v189, %v1617
    %v1619 = vpop.f32.mrf.mxu0
    %v1620 = vadd.f32 %v193, %v1619
    %1621 = vmatmul.bf16.gmra.mxu0 %v217
    %v1622 = vpop.f32.mrf.mxu0
    %v1623 = vadd.f32 %v197, %v1622
    %v1624 = vpop.f32.mrf.mxu0
    %v1625 = vadd.f32 %v201, %v1624
    %1626 = vdwg.mxu0
    %v1627 = vmax.f32 %v1618, 0.0
    %v1628 = vmax.f32 %v1620, 0.0
    %v1629 = vmax.f32 %v1623, 0.0
    %v1630 = vmax.f32 %v1625, 0.0
    %v1631 = vpack.c.bf16 %v1628, %v1627
    %v1632 = vpack.c.bf16 %v1630, %v1629
    %1633 = vmatpush.bf16.msra.mxu0 0
    %1634 = vmatpush.bf16.msra.mxu0 0
    %1635 = vmatpush.bf16.msra.mxu0 0
    %1636 = vmatpush.bf16.msra.mxu0 0
    %1637 = vmatpush.bf16.msra.mxu0 0
    %1638 = vmatpush.bf16.msra.mxu0 0
    %1639 = vmatpush.bf16.msra.mxu0 %v1632
    %1640 = vmatpush.bf16.msra.mxu0 %v1631
    %1641 = vmatmul.bf16.gmra.mxu0 %v271
    %v1642 = vpop.f32.mrf.mxu0
    %v1643 = vadd.f32 %v246, %v1642
    %v1644 = vpop.f32.mrf.mxu0
    %v1645 = vadd.f32 %v250, %v1644
    %1646 = vmatmul.bf16.gmra.mxu0 %v274
    %v1647 = vpop.f32.mrf.mxu0
    %v1648 = vadd.f32 %v254, %v1647
    %v1649 = vpop.f32.mrf.mxu0
    %v1650 = vadd.f32 %v258, %v1649
    %1651 = vdwg.mxu0
    %v1652 = vmax.f32 %v1643, 0.0
    %v1653 = vmax.f32 %v1645, 0.0
    %v1654 = vmax.f32 %v1648, 0.0
    %v1655 = vmax.f32 %v1650, 0.0
    %v1656 = vpack.c.bf16 %v1653, %v1652
    %v1657 = vpack.c.bf16 %v1655, %v1654
    %v1662 = vunpack.c.l.b16 %v1538
    %v1663 = vunpack.c.l.b16 %v1539
    %v1664 = vunpack.c.l.b16 %v1540
    %v1665 = vunpack.c.l.b16 %v1541
    %v1666 = vpack.c.b16 %v1663, %v1662
    %v1667 = vpack.c.b16 %v1665, %v1664
    %v1669 = vsel %vm93, %v1666, 0
    %v1672 = vsel %vm93, %v1667, 0
    %1674 = vmatpush.bf16.msra.mxu0 0
    %1675 = vmatpush.bf16.msra.mxu0 0
    %1676 = vmatpush.bf16.msra.mxu0 0
    %1677 = vmatpush.bf16.msra.mxu0 0
    %1678 = vmatpush.bf16.msra.mxu0 0
    %1679 = vmatpush.bf16.msra.mxu0 0
    %1680 = vmatpush.bf16.msra.mxu0 0
    %1681 = vmatpush.bf16.msra.mxu0 %v91
    %1682 = vmatmul.bf16.gmra.mxu0 %v1669
    %v1683 = vpop.f32.mrf.mxu0
    %v1684 = vadd.f32 0.0, %v1683
    %v1685 = vpop.f32.mrf.mxu0
    %v1686 = vadd.f32 0.0, %v1685
    %1687 = vmatmul.bf16.gmra.mxu0 %v1672
    %v1688 = vpop.f32.mrf.mxu0
    %v1689 = vadd.f32 0.0, %v1688
    %v1690 = vpop.f32.mrf.mxu0
    %v1691 = vadd.f32 0.0, %v1690
    %1692 = vdwg.mxu0
    %1693 = vmatpush.bf16.msra.mxu0 0
    %1694 = vmatpush.bf16.msra.mxu0 0
    %1695 = vmatpush.bf16.msra.mxu0 0
    %1696 = vmatpush.bf16.msra.mxu0 0
    %1697 = vmatpush.bf16.msra.mxu0 0
    %1698 = vmatpush.bf16.msra.mxu0 0
    %1699 = vmatpush.bf16.msra.mxu0 %v1657
    %1700 = vmatpush.bf16.msra.mxu0 %v1656
    %1701 = vmatmul.bf16.gmra.mxu0 %v347
    %v1702 = vpop.f32.mrf.mxu0
    %v1703 = vadd.f32 %v1684, %v1702
    %v1704 = vpop.f32.mrf.mxu0
    %v1705 = vadd.f32 %v1686, %v1704
    %1706 = vmatmul.bf16.gmra.mxu0 %v350
    %v1707 = vpop.f32.mrf.mxu0
    %v1708 = vadd.f32 %v1689, %v1707
    %v1709 = vpop.f32.mrf.mxu0
    %v1710 = vadd.f32 %v1691, %v1709
    %1711 = vdwg.mxu0
    %v1712 = vmax.f32 %v1703, 0.0
    %v1713 = vmax.f32 %v1705, 0.0
    %v1714 = vmax.f32 %v1708, 0.0
    %v1715 = vmax.f32 %v1710, 0.0
    %v1716 = vpack.c.bf16 %v1713, %v1712
    %v1717 = vpack.c.bf16 %v1715, %v1714
    %1718 = vmatpush.bf16.msra.mxu0 0
    %1719 = vmatpush.bf16.msra.mxu0 0
    %1720 = vmatpush.bf16.msra.mxu0 0
    %1721 = vmatpush.bf16.msra.mxu0 0
    %1722 = vmatpush.bf16.msra.mxu0 0
    %1723 = vmatpush.bf16.msra.mxu0 0
    %1724 = vmatpush.bf16.msra.mxu0 %v1717
    %1725 = vmatpush.bf16.msra.mxu0 %v1716
    %1726 = vmatmul.bf16.gmra.mxu0 %v404
    %v1727 = vpop.f32.mrf.mxu0
    %v1728 = vadd.f32 %v379, %v1727
    %v1729 = vpop.f32.mrf.mxu0
    %v1730 = vadd.f32 %v383, %v1729
    %1731 = vmatmul.bf16.gmra.mxu0 %v407
    %v1732 = vpop.f32.mrf.mxu0
    %v1733 = vadd.f32 %v387, %v1732
    %v1734 = vpop.f32.mrf.mxu0
    %v1735 = vadd.f32 %v391, %v1734
    %1736 = vdwg.mxu0
    %v1737 = vmax.f32 %v1728, 0.0
    %v1738 = vmax.f32 %v1730, 0.0
    %v1739 = vmax.f32 %v1733, 0.0
    %v1740 = vmax.f32 %v1735, 0.0
    %v1741 = vpack.c.bf16 %v1738, %v1737
    %v1742 = vpack.c.bf16 %v1740, %v1739
    %1743 = vmatpush.bf16.msra.mxu0 0
    %1744 = vmatpush.bf16.msra.mxu0 0
    %1745 = vmatpush.bf16.msra.mxu0 0
    %1746 = vmatpush.bf16.msra.mxu0 0
    %1747 = vmatpush.bf16.msra.mxu0 0
    %1748 = vmatpush.bf16.msra.mxu0 0
    %1749 = vmatpush.bf16.msra.mxu0 %v1742
    %1750 = vmatpush.bf16.msra.mxu0 %v1741
    %1751 = vmatmul.bf16.gmra.mxu0 %v461
    %v1752 = vpop.f32.mrf.mxu0
    %v1753 = vadd.f32 %v436, %v1752
    %v1754 = vpop.f32.mrf.mxu0
    %v1755 = vadd.f32 %v440, %v1754
    %1756 = vmatmul.bf16.gmra.mxu0 %v464
    %v1757 = vpop.f32.mrf.mxu0
    %v1758 = vadd.f32 %v444, %v1757
    %v1759 = vpop.f32.mrf.mxu0
    %v1760 = vadd.f32 %v448, %v1759
    %1761 = vdwg.mxu0
    %v1762 = vmax.f32 %v1753, 0.0
    %v1763 = vmax.f32 %v1755, 0.0
    %v1764 = vmax.f32 %v1758, 0.0
    %v1765 = vmax.f32 %v1760, 0.0
    %v1766 = vpack.c.bf16 %v1763, %v1762
    %v1767 = vpack.c.bf16 %v1765, %v1764
    %1768 = vmatpush.bf16.msra.mxu0 0
    %1769 = vmatpush.bf16.msra.mxu0 0
    %1770 = vmatpush.bf16.msra.mxu0 0
    %1771 = vmatpush.bf16.msra.mxu0 0
    %1772 = vmatpush.bf16.msra.mxu0 0
    %1773 = vmatpush.bf16.msra.mxu0 0
    %1774 = vmatpush.bf16.msra.mxu0 %v1767
    %1775 = vmatpush.bf16.msra.mxu0 %v1766
    %1776 = vmatmul.bf16.gmra.mxu0 %v518
    %v1777 = vpop.f32.mrf.mxu0
    %v1778 = vadd.f32 %v493, %v1777
    %v1779 = vpop.f32.mrf.mxu0
    %v1780 = vadd.f32 %v497, %v1779
    %1781 = vmatmul.bf16.gmra.mxu0 %v521
    %v1782 = vpop.f32.mrf.mxu0
    %v1783 = vadd.f32 %v501, %v1782
    %v1784 = vpop.f32.mrf.mxu0
    %v1785 = vadd.f32 %v505, %v1784
    %1786 = vdwg.mxu0
    %v1787 = vmax.f32 %v1778, 0.0
    %v1788 = vmax.f32 %v1780, 0.0
    %v1789 = vmax.f32 %v1783, 0.0
    %v1790 = vmax.f32 %v1785, 0.0
    %v1791 = vpack.c.bf16 %v1788, %v1787
    %v1792 = vpack.c.bf16 %v1790, %v1789
    %1793 = vmatpush.bf16.msra.mxu0 0
    %1794 = vmatpush.bf16.msra.mxu0 0
    %1795 = vmatpush.bf16.msra.mxu0 0
    %1796 = vmatpush.bf16.msra.mxu0 0
    %1797 = vmatpush.bf16.msra.mxu0 0
    %1798 = vmatpush.bf16.msra.mxu0 0
    %1799 = vmatpush.bf16.msra.mxu0 %v1792
    %1800 = vmatpush.bf16.msra.mxu0 %v1791
    %1801 = vmatmul.bf16.gmra.mxu0 %v575
    %v1802 = vpop.f32.mrf.mxu0
    %v1803 = vadd.f32 %v550, %v1802
    %v1804 = vpop.f32.mrf.mxu0
    %v1805 = vadd.f32 %v554, %v1804
    %1806 = vmatmul.bf16.gmra.mxu0 %v578
    %v1807 = vpop.f32.mrf.mxu0
    %v1808 = vadd.f32 %v558, %v1807
    %v1809 = vpop.f32.mrf.mxu0
    %v1810 = vadd.f32 %v562, %v1809
    %1811 = vdwg.mxu0
    %v1812 = vmax.f32 %v1803, 0.0
    %v1813 = vmax.f32 %v1805, 0.0
    %v1814 = vmax.f32 %v1808, 0.0
    %v1815 = vmax.f32 %v1810, 0.0
    %v1816 = vmul.f32 %v1812, %v605
    %v1817 = vmul.f32 %v1813, %v609
    %v1818 = vmul.f32 %v1814, %v613
    %v1819 = vmul.f32 %v1815, %v617
    %v1820 = vadd.f32 %v1816, %v1817
    %v1821 = vadd.f32 %v1820, %v1818
    %v1822 = vadd.f32 %v1821, %v1819
    %v1823 = vrot.slane %v1822, 4
    %v1824 = vadd.f32 %v1822, %v1823
    %v1825 = vrot.slane %v1824, 2
    %v1826 = vadd.f32 %v1824, %v1825
    %v1827 = vrot.slane %v1826, 1
    %v1828 = vadd.f32 %v1826, %v1827
    %v1829 = vadd.f32 %v1828, %v635
    %s1830 = scalar_lea.vmem %s1, 160
    %v1831 = vld [vmem:[%s1830] sm:$0xf]
    %v1832 = vld [vmem:[%s1830 + $0x4] sm:$0xf]
    %v1833 = vld [vmem:[%s1830 + $0x8] sm:$0xf]
    %v1834 = vld [vmem:[%s1830 + $0xc] sm:$0xf]
    %s1835 = scalar_lea.vmem %s1, 176
    %v1836 = vld [vmem:[%s1835] sm:$0xf]
    %v1837 = vld [vmem:[%s1835 + $0x4] sm:$0xf]
    %v1838 = vld [vmem:[%s1835 + $0x8] sm:$0xf]
    %v1839 = vld [vmem:[%s1835 + $0xc] sm:$0xf]
    %v1844 = vunpack.c.l.b16 %v1831
    %v1845 = vunpack.c.l.b16 %v1832
    %v1846 = vunpack.c.l.b16 %v1833
    %v1847 = vunpack.c.l.b16 %v1834
    %v1848 = vpack.c.b16 %v1845, %v1844
    %v1849 = vpack.c.b16 %v1847, %v1846
    %v1851 = vsel %vm93, %v1848, 0
    %v1854 = vsel %vm93, %v1849, 0
    %1856 = vmatpush.bf16.msra.mxu0 0
    %1857 = vmatpush.bf16.msra.mxu0 0
    %1858 = vmatpush.bf16.msra.mxu0 0
    %1859 = vmatpush.bf16.msra.mxu0 0
    %1860 = vmatpush.bf16.msra.mxu0 0
    %1861 = vmatpush.bf16.msra.mxu0 0
    %1862 = vmatpush.bf16.msra.mxu0 0
    %1863 = vmatpush.bf16.msra.mxu0 %v91
    %1864 = vmatmul.bf16.gmra.mxu0 %v1851
    %v1865 = vpop.f32.mrf.mxu0
    %v1866 = vadd.f32 0.0, %v1865
    %v1867 = vpop.f32.mrf.mxu0
    %v1868 = vadd.f32 0.0, %v1867
    %1869 = vmatmul.bf16.gmra.mxu0 %v1854
    %v1870 = vpop.f32.mrf.mxu0
    %v1871 = vadd.f32 0.0, %v1870
    %v1872 = vpop.f32.mrf.mxu0
    %v1873 = vadd.f32 0.0, %v1872
    %1874 = vdwg.mxu0
    %v1875 = vmax.f32 %v1866, 0.0
    %v1876 = vmax.f32 %v1868, 0.0
    %v1877 = vmax.f32 %v1871, 0.0
    %v1878 = vmax.f32 %v1873, 0.0
    %v1879 = vpack.c.bf16 %v1876, %v1875
    %v1880 = vpack.c.bf16 %v1878, %v1877
    %1881 = vmatpush.bf16.msra.mxu0 0
    %1882 = vmatpush.bf16.msra.mxu0 0
    %1883 = vmatpush.bf16.msra.mxu0 0
    %1884 = vmatpush.bf16.msra.mxu0 0
    %1885 = vmatpush.bf16.msra.mxu0 0
    %1886 = vmatpush.bf16.msra.mxu0 0
    %1887 = vmatpush.bf16.msra.mxu0 %v1880
    %1888 = vmatpush.bf16.msra.mxu0 %v1879
    %1889 = vmatmul.bf16.gmra.mxu0 %v157
    %v1890 = vpop.f32.mrf.mxu0
    %v1891 = vadd.f32 %v128, %v1890
    %v1892 = vpop.f32.mrf.mxu0
    %v1893 = vadd.f32 %v133, %v1892
    %1894 = vmatmul.bf16.gmra.mxu0 %v160
    %v1895 = vpop.f32.mrf.mxu0
    %v1896 = vadd.f32 %v138, %v1895
    %v1897 = vpop.f32.mrf.mxu0
    %v1898 = vadd.f32 %v143, %v1897
    %1899 = vdwg.mxu0
    %v1900 = vmax.f32 %v1891, 0.0
    %v1901 = vmax.f32 %v1893, 0.0
    %v1902 = vmax.f32 %v1896, 0.0
    %v1903 = vmax.f32 %v1898, 0.0
    %v1904 = vpack.c.bf16 %v1901, %v1900
    %v1905 = vpack.c.bf16 %v1903, %v1902
    %1906 = vmatpush.bf16.msra.mxu0 0
    %1907 = vmatpush.bf16.msra.mxu0 0
    %1908 = vmatpush.bf16.msra.mxu0 0
    %1909 = vmatpush.bf16.msra.mxu0 0
    %1910 = vmatpush.bf16.msra.mxu0 0
    %1911 = vmatpush.bf16.msra.mxu0 0
    %1912 = vmatpush.bf16.msra.mxu0 %v1905
    %1913 = vmatpush.bf16.msra.mxu0 %v1904
    %1914 = vmatmul.bf16.gmra.mxu0 %v214
    %v1915 = vpop.f32.mrf.mxu0
    %v1916 = vadd.f32 %v189, %v1915
    %v1917 = vpop.f32.mrf.mxu0
    %v1918 = vadd.f32 %v193, %v1917
    %1919 = vmatmul.bf16.gmra.mxu0 %v217
    %v1920 = vpop.f32.mrf.mxu0
    %v1921 = vadd.f32 %v197, %v1920
    %v1922 = vpop.f32.mrf.mxu0
    %v1923 = vadd.f32 %v201, %v1922
    %1924 = vdwg.mxu0
    %v1925 = vmax.f32 %v1916, 0.0
    %v1926 = vmax.f32 %v1918, 0.0
    %v1927 = vmax.f32 %v1921, 0.0
    %v1928 = vmax.f32 %v1923, 0.0
    %v1929 = vpack.c.bf16 %v1926, %v1925
    %v1930 = vpack.c.bf16 %v1928, %v1927
    %1931 = vmatpush.bf16.msra.mxu0 0
    %1932 = vmatpush.bf16.msra.mxu0 0
    %1933 = vmatpush.bf16.msra.mxu0 0
    %1934 = vmatpush.bf16.msra.mxu0 0
    %1935 = vmatpush.bf16.msra.mxu0 0
    %1936 = vmatpush.bf16.msra.mxu0 0
    %1937 = vmatpush.bf16.msra.mxu0 %v1930
    %1938 = vmatpush.bf16.msra.mxu0 %v1929
    %1939 = vmatmul.bf16.gmra.mxu0 %v271
    %v1940 = vpop.f32.mrf.mxu0
    %v1941 = vadd.f32 %v246, %v1940
    %v1942 = vpop.f32.mrf.mxu0
    %v1943 = vadd.f32 %v250, %v1942
    %1944 = vmatmul.bf16.gmra.mxu0 %v274
    %v1945 = vpop.f32.mrf.mxu0
    %v1946 = vadd.f32 %v254, %v1945
    %v1947 = vpop.f32.mrf.mxu0
    %v1948 = vadd.f32 %v258, %v1947
    %1949 = vdwg.mxu0
    %v1950 = vmax.f32 %v1941, 0.0
    %v1951 = vmax.f32 %v1943, 0.0
    %v1952 = vmax.f32 %v1946, 0.0
    %v1953 = vmax.f32 %v1948, 0.0
    %v1954 = vpack.c.bf16 %v1951, %v1950
    %v1955 = vpack.c.bf16 %v1953, %v1952
    %v1960 = vunpack.c.l.b16 %v1836
    %v1961 = vunpack.c.l.b16 %v1837
    %v1962 = vunpack.c.l.b16 %v1838
    %v1963 = vunpack.c.l.b16 %v1839
    %v1964 = vpack.c.b16 %v1961, %v1960
    %v1965 = vpack.c.b16 %v1963, %v1962
    %v1967 = vsel %vm93, %v1964, 0
    %v1970 = vsel %vm93, %v1965, 0
    %1972 = vmatpush.bf16.msra.mxu0 0
    %1973 = vmatpush.bf16.msra.mxu0 0
    %1974 = vmatpush.bf16.msra.mxu0 0
    %1975 = vmatpush.bf16.msra.mxu0 0
    %1976 = vmatpush.bf16.msra.mxu0 0
    %1977 = vmatpush.bf16.msra.mxu0 0
    %1978 = vmatpush.bf16.msra.mxu0 0
    %1979 = vmatpush.bf16.msra.mxu0 %v91
    %1980 = vmatmul.bf16.gmra.mxu0 %v1967
    %v1981 = vpop.f32.mrf.mxu0
    %v1982 = vadd.f32 0.0, %v1981
    %v1983 = vpop.f32.mrf.mxu0
    %v1984 = vadd.f32 0.0, %v1983
    %1985 = vmatmul.bf16.gmra.mxu0 %v1970
    %v1986 = vpop.f32.mrf.mxu0
    %v1987 = vadd.f32 0.0, %v1986
    %v1988 = vpop.f32.mrf.mxu0
    %v1989 = vadd.f32 0.0, %v1988
    %1990 = vdwg.mxu0
    %1991 = vmatpush.bf16.msra.mxu0 0
    %1992 = vmatpush.bf16.msra.mxu0 0
    %1993 = vmatpush.bf16.msra.mxu0 0
    %1994 = vmatpush.bf16.msra.mxu0 0
    %1995 = vmatpush.bf16.msra.mxu0 0
    %1996 = vmatpush.bf16.msra.mxu0 0
    %1997 = vmatpush.bf16.msra.mxu0 %v1955
    %1998 = vmatpush.bf16.msra.mxu0 %v1954
    %1999 = vmatmul.bf16.gmra.mxu0 %v347
    %v2000 = vpop.f32.mrf.mxu0
    %v2001 = vadd.f32 %v1982, %v2000
    %v2002 = vpop.f32.mrf.mxu0
    %v2003 = vadd.f32 %v1984, %v2002
    %2004 = vmatmul.bf16.gmra.mxu0 %v350
    %v2005 = vpop.f32.mrf.mxu0
    %v2006 = vadd.f32 %v1987, %v2005
    %v2007 = vpop.f32.mrf.mxu0
    %v2008 = vadd.f32 %v1989, %v2007
    %2009 = vdwg.mxu0
    %v2010 = vmax.f32 %v2001, 0.0
    %v2011 = vmax.f32 %v2003, 0.0
    %v2012 = vmax.f32 %v2006, 0.0
    %v2013 = vmax.f32 %v2008, 0.0
    %v2014 = vpack.c.bf16 %v2011, %v2010
    %v2015 = vpack.c.bf16 %v2013, %v2012
    %2016 = vmatpush.bf16.msra.mxu0 0
    %2017 = vmatpush.bf16.msra.mxu0 0
    %2018 = vmatpush.bf16.msra.mxu0 0
    %2019 = vmatpush.bf16.msra.mxu0 0
    %2020 = vmatpush.bf16.msra.mxu0 0
    %2021 = vmatpush.bf16.msra.mxu0 0
    %2022 = vmatpush.bf16.msra.mxu0 %v2015
    %2023 = vmatpush.bf16.msra.mxu0 %v2014
    %2024 = vmatmul.bf16.gmra.mxu0 %v404
    %v2025 = vpop.f32.mrf.mxu0
    %v2026 = vadd.f32 %v379, %v2025
    %v2027 = vpop.f32.mrf.mxu0
    %v2028 = vadd.f32 %v383, %v2027
    %2029 = vmatmul.bf16.gmra.mxu0 %v407
    %v2030 = vpop.f32.mrf.mxu0
    %v2031 = vadd.f32 %v387, %v2030
    %v2032 = vpop.f32.mrf.mxu0
    %v2033 = vadd.f32 %v391, %v2032
    %2034 = vdwg.mxu0
    %v2035 = vmax.f32 %v2026, 0.0
    %v2036 = vmax.f32 %v2028, 0.0
    %v2037 = vmax.f32 %v2031, 0.0
    %v2038 = vmax.f32 %v2033, 0.0
    %v2039 = vpack.c.bf16 %v2036, %v2035
    %v2040 = vpack.c.bf16 %v2038, %v2037
    %2041 = vmatpush.bf16.msra.mxu0 0
    %2042 = vmatpush.bf16.msra.mxu0 0
    %2043 = vmatpush.bf16.msra.mxu0 0
    %2044 = vmatpush.bf16.msra.mxu0 0
    %2045 = vmatpush.bf16.msra.mxu0 0
    %2046 = vmatpush.bf16.msra.mxu0 0
    %2047 = vmatpush.bf16.msra.mxu0 %v2040
    %2048 = vmatpush.bf16.msra.mxu0 %v2039
    %2049 = vmatmul.bf16.gmra.mxu0 %v461
    %v2050 = vpop.f32.mrf.mxu0
    %v2051 = vadd.f32 %v436, %v2050
    %v2052 = vpop.f32.mrf.mxu0
    %v2053 = vadd.f32 %v440, %v2052
    %2054 = vmatmul.bf16.gmra.mxu0 %v464
    %v2055 = vpop.f32.mrf.mxu0
    %v2056 = vadd.f32 %v444, %v2055
    %v2057 = vpop.f32.mrf.mxu0
    %v2058 = vadd.f32 %v448, %v2057
    %2059 = vdwg.mxu0
    %v2060 = vmax.f32 %v2051, 0.0
    %v2061 = vmax.f32 %v2053, 0.0
    %v2062 = vmax.f32 %v2056, 0.0
    %v2063 = vmax.f32 %v2058, 0.0
    %v2064 = vpack.c.bf16 %v2061, %v2060
    %v2065 = vpack.c.bf16 %v2063, %v2062
    %2066 = vmatpush.bf16.msra.mxu0 0
    %2067 = vmatpush.bf16.msra.mxu0 0
    %2068 = vmatpush.bf16.msra.mxu0 0
    %2069 = vmatpush.bf16.msra.mxu0 0
    %2070 = vmatpush.bf16.msra.mxu0 0
    %2071 = vmatpush.bf16.msra.mxu0 0
    %2072 = vmatpush.bf16.msra.mxu0 %v2065
    %2073 = vmatpush.bf16.msra.mxu0 %v2064
    %2074 = vmatmul.bf16.gmra.mxu0 %v518
    %v2075 = vpop.f32.mrf.mxu0
    %v2076 = vadd.f32 %v493, %v2075
    %v2077 = vpop.f32.mrf.mxu0
    %v2078 = vadd.f32 %v497, %v2077
    %2079 = vmatmul.bf16.gmra.mxu0 %v521
    %v2080 = vpop.f32.mrf.mxu0
    %v2081 = vadd.f32 %v501, %v2080
    %v2082 = vpop.f32.mrf.mxu0
    %v2083 = vadd.f32 %v505, %v2082
    %2084 = vdwg.mxu0
    %v2085 = vmax.f32 %v2076, 0.0
    %v2086 = vmax.f32 %v2078, 0.0
    %v2087 = vmax.f32 %v2081, 0.0
    %v2088 = vmax.f32 %v2083, 0.0
    %v2089 = vpack.c.bf16 %v2086, %v2085
    %v2090 = vpack.c.bf16 %v2088, %v2087
    %2091 = vmatpush.bf16.msra.mxu0 0
    %2092 = vmatpush.bf16.msra.mxu0 0
    %2093 = vmatpush.bf16.msra.mxu0 0
    %2094 = vmatpush.bf16.msra.mxu0 0
    %2095 = vmatpush.bf16.msra.mxu0 0
    %2096 = vmatpush.bf16.msra.mxu0 0
    %2097 = vmatpush.bf16.msra.mxu0 %v2090
    %2098 = vmatpush.bf16.msra.mxu0 %v2089
    %2099 = vmatmul.bf16.gmra.mxu0 %v575
    %v2100 = vpop.f32.mrf.mxu0
    %v2101 = vadd.f32 %v550, %v2100
    %v2102 = vpop.f32.mrf.mxu0
    %v2103 = vadd.f32 %v554, %v2102
    %2104 = vmatmul.bf16.gmra.mxu0 %v578
    %v2105 = vpop.f32.mrf.mxu0
    %v2106 = vadd.f32 %v558, %v2105
    %v2107 = vpop.f32.mrf.mxu0
    %v2108 = vadd.f32 %v562, %v2107
    %2109 = vdwg.mxu0
    %v2110 = vmax.f32 %v2101, 0.0
    %v2111 = vmax.f32 %v2103, 0.0
    %v2112 = vmax.f32 %v2106, 0.0
    %v2113 = vmax.f32 %v2108, 0.0
    %v2114 = vmul.f32 %v2110, %v605
    %v2115 = vmul.f32 %v2111, %v609
    %v2116 = vmul.f32 %v2112, %v613
    %v2117 = vmul.f32 %v2113, %v617
    %v2118 = vadd.f32 %v2114, %v2115
    %v2119 = vadd.f32 %v2118, %v2116
    %v2120 = vadd.f32 %v2119, %v2117
    %v2121 = vrot.slane %v2120, 4
    %v2122 = vadd.f32 %v2120, %v2121
    %v2123 = vrot.slane %v2122, 2
    %v2124 = vadd.f32 %v2122, %v2123
    %v2125 = vrot.slane %v2124, 1
    %v2126 = vadd.f32 %v2124, %v2125
    %v2127 = vadd.f32 %v2126, %v635
    %s2128 = scalar_lea.vmem %s1, 192
    %v2129 = vld [vmem:[%s2128] sm:$0xf]
    %v2130 = vld [vmem:[%s2128 + $0x4] sm:$0xf]
    %v2131 = vld [vmem:[%s2128 + $0x8] sm:$0xf]
    %v2132 = vld [vmem:[%s2128 + $0xc] sm:$0xf]
    %s2133 = scalar_lea.vmem %s1, 208
    %v2134 = vld [vmem:[%s2133] sm:$0xf]
    %v2135 = vld [vmem:[%s2133 + $0x4] sm:$0xf]
    %v2136 = vld [vmem:[%s2133 + $0x8] sm:$0xf]
    %v2137 = vld [vmem:[%s2133 + $0xc] sm:$0xf]
    %v2142 = vunpack.c.l.b16 %v2129
    %v2143 = vunpack.c.l.b16 %v2130
    %v2144 = vunpack.c.l.b16 %v2131
    %v2145 = vunpack.c.l.b16 %v2132
    %v2146 = vpack.c.b16 %v2143, %v2142
    %v2147 = vpack.c.b16 %v2145, %v2144
    %v2149 = vsel %vm93, %v2146, 0
    %v2152 = vsel %vm93, %v2147, 0
    %2154 = vmatpush.bf16.msra.mxu0 0
    %2155 = vmatpush.bf16.msra.mxu0 0
    %2156 = vmatpush.bf16.msra.mxu0 0
    %2157 = vmatpush.bf16.msra.mxu0 0
    %2158 = vmatpush.bf16.msra.mxu0 0
    %2159 = vmatpush.bf16.msra.mxu0 0
    %2160 = vmatpush.bf16.msra.mxu0 0
    %2161 = vmatpush.bf16.msra.mxu0 %v91
    %2162 = vmatmul.bf16.gmra.mxu0 %v2149
    %v2163 = vpop.f32.mrf.mxu0
    %v2164 = vadd.f32 0.0, %v2163
    %v2165 = vpop.f32.mrf.mxu0
    %v2166 = vadd.f32 0.0, %v2165
    %2167 = vmatmul.bf16.gmra.mxu0 %v2152
    %v2168 = vpop.f32.mrf.mxu0
    %v2169 = vadd.f32 0.0, %v2168
    %v2170 = vpop.f32.mrf.mxu0
    %v2171 = vadd.f32 0.0, %v2170
    %2172 = vdwg.mxu0
    %v2173 = vmax.f32 %v2164, 0.0
    %v2174 = vmax.f32 %v2166, 0.0
    %v2175 = vmax.f32 %v2169, 0.0
    %v2176 = vmax.f32 %v2171, 0.0
    %v2177 = vpack.c.bf16 %v2174, %v2173
    %v2178 = vpack.c.bf16 %v2176, %v2175
    %2179 = vmatpush.bf16.msra.mxu0 0
    %2180 = vmatpush.bf16.msra.mxu0 0
    %2181 = vmatpush.bf16.msra.mxu0 0
    %2182 = vmatpush.bf16.msra.mxu0 0
    %2183 = vmatpush.bf16.msra.mxu0 0
    %2184 = vmatpush.bf16.msra.mxu0 0
    %2185 = vmatpush.bf16.msra.mxu0 %v2178
    %2186 = vmatpush.bf16.msra.mxu0 %v2177
    %2187 = vmatmul.bf16.gmra.mxu0 %v157
    %v2188 = vpop.f32.mrf.mxu0
    %v2189 = vadd.f32 %v128, %v2188
    %v2190 = vpop.f32.mrf.mxu0
    %v2191 = vadd.f32 %v133, %v2190
    %2192 = vmatmul.bf16.gmra.mxu0 %v160
    %v2193 = vpop.f32.mrf.mxu0
    %v2194 = vadd.f32 %v138, %v2193
    %v2195 = vpop.f32.mrf.mxu0
    %v2196 = vadd.f32 %v143, %v2195
    %2197 = vdwg.mxu0
    %v2198 = vmax.f32 %v2189, 0.0
    %v2199 = vmax.f32 %v2191, 0.0
    %v2200 = vmax.f32 %v2194, 0.0
    %v2201 = vmax.f32 %v2196, 0.0
    %v2202 = vpack.c.bf16 %v2199, %v2198
    %v2203 = vpack.c.bf16 %v2201, %v2200
    %2204 = vmatpush.bf16.msra.mxu0 0
    %2205 = vmatpush.bf16.msra.mxu0 0
    %2206 = vmatpush.bf16.msra.mxu0 0
    %2207 = vmatpush.bf16.msra.mxu0 0
    %2208 = vmatpush.bf16.msra.mxu0 0
    %2209 = vmatpush.bf16.msra.mxu0 0
    %2210 = vmatpush.bf16.msra.mxu0 %v2203
    %2211 = vmatpush.bf16.msra.mxu0 %v2202
    %2212 = vmatmul.bf16.gmra.mxu0 %v214
    %v2213 = vpop.f32.mrf.mxu0
    %v2214 = vadd.f32 %v189, %v2213
    %v2215 = vpop.f32.mrf.mxu0
    %v2216 = vadd.f32 %v193, %v2215
    %2217 = vmatmul.bf16.gmra.mxu0 %v217
    %v2218 = vpop.f32.mrf.mxu0
    %v2219 = vadd.f32 %v197, %v2218
    %v2220 = vpop.f32.mrf.mxu0
    %v2221 = vadd.f32 %v201, %v2220
    %2222 = vdwg.mxu0
    %v2223 = vmax.f32 %v2214, 0.0
    %v2224 = vmax.f32 %v2216, 0.0
    %v2225 = vmax.f32 %v2219, 0.0
    %v2226 = vmax.f32 %v2221, 0.0
    %v2227 = vpack.c.bf16 %v2224, %v2223
    %v2228 = vpack.c.bf16 %v2226, %v2225
    %2229 = vmatpush.bf16.msra.mxu0 0
    %2230 = vmatpush.bf16.msra.mxu0 0
    %2231 = vmatpush.bf16.msra.mxu0 0
    %2232 = vmatpush.bf16.msra.mxu0 0
    %2233 = vmatpush.bf16.msra.mxu0 0
    %2234 = vmatpush.bf16.msra.mxu0 0
    %2235 = vmatpush.bf16.msra.mxu0 %v2228
    %2236 = vmatpush.bf16.msra.mxu0 %v2227
    %2237 = vmatmul.bf16.gmra.mxu0 %v271
    %v2238 = vpop.f32.mrf.mxu0
    %v2239 = vadd.f32 %v246, %v2238
    %v2240 = vpop.f32.mrf.mxu0
    %v2241 = vadd.f32 %v250, %v2240
    %2242 = vmatmul.bf16.gmra.mxu0 %v274
    %v2243 = vpop.f32.mrf.mxu0
    %v2244 = vadd.f32 %v254, %v2243
    %v2245 = vpop.f32.mrf.mxu0
    %v2246 = vadd.f32 %v258, %v2245
    %2247 = vdwg.mxu0
    %v2248 = vmax.f32 %v2239, 0.0
    %v2249 = vmax.f32 %v2241, 0.0
    %v2250 = vmax.f32 %v2244, 0.0
    %v2251 = vmax.f32 %v2246, 0.0
    %v2252 = vpack.c.bf16 %v2249, %v2248
    %v2253 = vpack.c.bf16 %v2251, %v2250
    %v2258 = vunpack.c.l.b16 %v2134
    %v2259 = vunpack.c.l.b16 %v2135
    %v2260 = vunpack.c.l.b16 %v2136
    %v2261 = vunpack.c.l.b16 %v2137
    %v2262 = vpack.c.b16 %v2259, %v2258
    %v2263 = vpack.c.b16 %v2261, %v2260
    %v2265 = vsel %vm93, %v2262, 0
    %v2268 = vsel %vm93, %v2263, 0
    %2270 = vmatpush.bf16.msra.mxu0 0
    %2271 = vmatpush.bf16.msra.mxu0 0
    %2272 = vmatpush.bf16.msra.mxu0 0
    %2273 = vmatpush.bf16.msra.mxu0 0
    %2274 = vmatpush.bf16.msra.mxu0 0
    %2275 = vmatpush.bf16.msra.mxu0 0
    %2276 = vmatpush.bf16.msra.mxu0 0
    %2277 = vmatpush.bf16.msra.mxu0 %v91
    %2278 = vmatmul.bf16.gmra.mxu0 %v2265
    %v2279 = vpop.f32.mrf.mxu0
    %v2280 = vadd.f32 0.0, %v2279
    %v2281 = vpop.f32.mrf.mxu0
    %v2282 = vadd.f32 0.0, %v2281
    %2283 = vmatmul.bf16.gmra.mxu0 %v2268
    %v2284 = vpop.f32.mrf.mxu0
    %v2285 = vadd.f32 0.0, %v2284
    %v2286 = vpop.f32.mrf.mxu0
    %v2287 = vadd.f32 0.0, %v2286
    %2288 = vdwg.mxu0
    %2289 = vmatpush.bf16.msra.mxu0 0
    %2290 = vmatpush.bf16.msra.mxu0 0
    %2291 = vmatpush.bf16.msra.mxu0 0
    %2292 = vmatpush.bf16.msra.mxu0 0
    %2293 = vmatpush.bf16.msra.mxu0 0
    %2294 = vmatpush.bf16.msra.mxu0 0
    %2295 = vmatpush.bf16.msra.mxu0 %v2253
    %2296 = vmatpush.bf16.msra.mxu0 %v2252
    %2297 = vmatmul.bf16.gmra.mxu0 %v347
    %v2298 = vpop.f32.mrf.mxu0
    %v2299 = vadd.f32 %v2280, %v2298
    %v2300 = vpop.f32.mrf.mxu0
    %v2301 = vadd.f32 %v2282, %v2300
    %2302 = vmatmul.bf16.gmra.mxu0 %v350
    %v2303 = vpop.f32.mrf.mxu0
    %v2304 = vadd.f32 %v2285, %v2303
    %v2305 = vpop.f32.mrf.mxu0
    %v2306 = vadd.f32 %v2287, %v2305
    %2307 = vdwg.mxu0
    %v2308 = vmax.f32 %v2299, 0.0
    %v2309 = vmax.f32 %v2301, 0.0
    %v2310 = vmax.f32 %v2304, 0.0
    %v2311 = vmax.f32 %v2306, 0.0
    %v2312 = vpack.c.bf16 %v2309, %v2308
    %v2313 = vpack.c.bf16 %v2311, %v2310
    %2314 = vmatpush.bf16.msra.mxu0 0
    %2315 = vmatpush.bf16.msra.mxu0 0
    %2316 = vmatpush.bf16.msra.mxu0 0
    %2317 = vmatpush.bf16.msra.mxu0 0
    %2318 = vmatpush.bf16.msra.mxu0 0
    %2319 = vmatpush.bf16.msra.mxu0 0
    %2320 = vmatpush.bf16.msra.mxu0 %v2313
    %2321 = vmatpush.bf16.msra.mxu0 %v2312
    %2322 = vmatmul.bf16.gmra.mxu0 %v404
    %v2323 = vpop.f32.mrf.mxu0
    %v2324 = vadd.f32 %v379, %v2323
    %v2325 = vpop.f32.mrf.mxu0
    %v2326 = vadd.f32 %v383, %v2325
    %2327 = vmatmul.bf16.gmra.mxu0 %v407
    %v2328 = vpop.f32.mrf.mxu0
    %v2329 = vadd.f32 %v387, %v2328
    %v2330 = vpop.f32.mrf.mxu0
    %v2331 = vadd.f32 %v391, %v2330
    %2332 = vdwg.mxu0
    %v2333 = vmax.f32 %v2324, 0.0
    %v2334 = vmax.f32 %v2326, 0.0
    %v2335 = vmax.f32 %v2329, 0.0
    %v2336 = vmax.f32 %v2331, 0.0
    %v2337 = vpack.c.bf16 %v2334, %v2333
    %v2338 = vpack.c.bf16 %v2336, %v2335
    %2339 = vmatpush.bf16.msra.mxu0 0
    %2340 = vmatpush.bf16.msra.mxu0 0
    %2341 = vmatpush.bf16.msra.mxu0 0
    %2342 = vmatpush.bf16.msra.mxu0 0
    %2343 = vmatpush.bf16.msra.mxu0 0
    %2344 = vmatpush.bf16.msra.mxu0 0
    %2345 = vmatpush.bf16.msra.mxu0 %v2338
    %2346 = vmatpush.bf16.msra.mxu0 %v2337
    %2347 = vmatmul.bf16.gmra.mxu0 %v461
    %v2348 = vpop.f32.mrf.mxu0
    %v2349 = vadd.f32 %v436, %v2348
    %v2350 = vpop.f32.mrf.mxu0
    %v2351 = vadd.f32 %v440, %v2350
    %2352 = vmatmul.bf16.gmra.mxu0 %v464
    %v2353 = vpop.f32.mrf.mxu0
    %v2354 = vadd.f32 %v444, %v2353
    %v2355 = vpop.f32.mrf.mxu0
    %v2356 = vadd.f32 %v448, %v2355
    %2357 = vdwg.mxu0
    %v2358 = vmax.f32 %v2349, 0.0
    %v2359 = vmax.f32 %v2351, 0.0
    %v2360 = vmax.f32 %v2354, 0.0
    %v2361 = vmax.f32 %v2356, 0.0
    %v2362 = vpack.c.bf16 %v2359, %v2358
    %v2363 = vpack.c.bf16 %v2361, %v2360
    %2364 = vmatpush.bf16.msra.mxu0 0
    %2365 = vmatpush.bf16.msra.mxu0 0
    %2366 = vmatpush.bf16.msra.mxu0 0
    %2367 = vmatpush.bf16.msra.mxu0 0
    %2368 = vmatpush.bf16.msra.mxu0 0
    %2369 = vmatpush.bf16.msra.mxu0 0
    %2370 = vmatpush.bf16.msra.mxu0 %v2363
    %2371 = vmatpush.bf16.msra.mxu0 %v2362
    %2372 = vmatmul.bf16.gmra.mxu0 %v518
    %v2373 = vpop.f32.mrf.mxu0
    %v2374 = vadd.f32 %v493, %v2373
    %v2375 = vpop.f32.mrf.mxu0
    %v2376 = vadd.f32 %v497, %v2375
    %2377 = vmatmul.bf16.gmra.mxu0 %v521
    %v2378 = vpop.f32.mrf.mxu0
    %v2379 = vadd.f32 %v501, %v2378
    %v2380 = vpop.f32.mrf.mxu0
    %v2381 = vadd.f32 %v505, %v2380
    %2382 = vdwg.mxu0
    %v2383 = vmax.f32 %v2374, 0.0
    %v2384 = vmax.f32 %v2376, 0.0
    %v2385 = vmax.f32 %v2379, 0.0
    %v2386 = vmax.f32 %v2381, 0.0
    %v2387 = vpack.c.bf16 %v2384, %v2383
    %v2388 = vpack.c.bf16 %v2386, %v2385
    %2389 = vmatpush.bf16.msra.mxu0 0
    %2390 = vmatpush.bf16.msra.mxu0 0
    %2391 = vmatpush.bf16.msra.mxu0 0
    %2392 = vmatpush.bf16.msra.mxu0 0
    %2393 = vmatpush.bf16.msra.mxu0 0
    %2394 = vmatpush.bf16.msra.mxu0 0
    %2395 = vmatpush.bf16.msra.mxu0 %v2388
    %2396 = vmatpush.bf16.msra.mxu0 %v2387
    %2397 = vmatmul.bf16.gmra.mxu0 %v575
    %v2398 = vpop.f32.mrf.mxu0
    %v2399 = vadd.f32 %v550, %v2398
    %v2400 = vpop.f32.mrf.mxu0
    %v2401 = vadd.f32 %v554, %v2400
    %2402 = vmatmul.bf16.gmra.mxu0 %v578
    %v2403 = vpop.f32.mrf.mxu0
    %v2404 = vadd.f32 %v558, %v2403
    %v2405 = vpop.f32.mrf.mxu0
    %v2406 = vadd.f32 %v562, %v2405
    %2407 = vdwg.mxu0
    %v2408 = vmax.f32 %v2399, 0.0
    %v2409 = vmax.f32 %v2401, 0.0
    %v2410 = vmax.f32 %v2404, 0.0
    %v2411 = vmax.f32 %v2406, 0.0
    %v2412 = vmul.f32 %v2408, %v605
    %v2413 = vmul.f32 %v2409, %v609
    %v2414 = vmul.f32 %v2410, %v613
    %v2415 = vmul.f32 %v2411, %v617
    %v2416 = vadd.f32 %v2412, %v2413
    %v2417 = vadd.f32 %v2416, %v2414
    %v2418 = vadd.f32 %v2417, %v2415
    %v2419 = vrot.slane %v2418, 4
    %v2420 = vadd.f32 %v2418, %v2419
    %v2421 = vrot.slane %v2420, 2
    %v2422 = vadd.f32 %v2420, %v2421
    %v2423 = vrot.slane %v2422, 1
    %v2424 = vadd.f32 %v2422, %v2423
    %v2425 = vadd.f32 %v2424, %v635
    %s2426 = scalar_lea.vmem %s1, 224
    %v2427 = vld [vmem:[%s2426] sm:$0xf]
    %v2428 = vld [vmem:[%s2426 + $0x4] sm:$0xf]
    %v2429 = vld [vmem:[%s2426 + $0x8] sm:$0xf]
    %v2430 = vld [vmem:[%s2426 + $0xc] sm:$0xf]
    %s2431 = scalar_lea.vmem %s1, 240
    %v2432 = vld [vmem:[%s2431] sm:$0xf]
    %v2433 = vld [vmem:[%s2431 + $0x4] sm:$0xf]
    %v2434 = vld [vmem:[%s2431 + $0x8] sm:$0xf]
    %v2435 = vld [vmem:[%s2431 + $0xc] sm:$0xf]
    %v2440 = vunpack.c.l.b16 %v2427
    %v2441 = vunpack.c.l.b16 %v2428
    %v2442 = vunpack.c.l.b16 %v2429
    %v2443 = vunpack.c.l.b16 %v2430
    %v2444 = vpack.c.b16 %v2441, %v2440
    %v2445 = vpack.c.b16 %v2443, %v2442
    %v2447 = vsel %vm93, %v2444, 0
    %v2450 = vsel %vm93, %v2445, 0
    %2452 = vmatpush.bf16.msra.mxu0 0
    %2453 = vmatpush.bf16.msra.mxu0 0
    %2454 = vmatpush.bf16.msra.mxu0 0
    %2455 = vmatpush.bf16.msra.mxu0 0
    %2456 = vmatpush.bf16.msra.mxu0 0
    %2457 = vmatpush.bf16.msra.mxu0 0
    %2458 = vmatpush.bf16.msra.mxu0 0
    %2459 = vmatpush.bf16.msra.mxu0 %v91
    %2460 = vmatmul.bf16.gmra.mxu0 %v2447
    %v2461 = vpop.f32.mrf.mxu0
    %v2462 = vadd.f32 0.0, %v2461
    %v2463 = vpop.f32.mrf.mxu0
    %v2464 = vadd.f32 0.0, %v2463
    %2465 = vmatmul.bf16.gmra.mxu0 %v2450
    %v2466 = vpop.f32.mrf.mxu0
    %v2467 = vadd.f32 0.0, %v2466
    %v2468 = vpop.f32.mrf.mxu0
    %v2469 = vadd.f32 0.0, %v2468
    %2470 = vdwg.mxu0
    %v2471 = vmax.f32 %v2462, 0.0
    %v2472 = vmax.f32 %v2464, 0.0
    %v2473 = vmax.f32 %v2467, 0.0
    %v2474 = vmax.f32 %v2469, 0.0
    %v2475 = vpack.c.bf16 %v2472, %v2471
    %v2476 = vpack.c.bf16 %v2474, %v2473
    %2477 = vmatpush.bf16.msra.mxu0 0
    %2478 = vmatpush.bf16.msra.mxu0 0
    %2479 = vmatpush.bf16.msra.mxu0 0
    %2480 = vmatpush.bf16.msra.mxu0 0
    %2481 = vmatpush.bf16.msra.mxu0 0
    %2482 = vmatpush.bf16.msra.mxu0 0
    %2483 = vmatpush.bf16.msra.mxu0 %v2476
    %2484 = vmatpush.bf16.msra.mxu0 %v2475
    %2485 = vmatmul.bf16.gmra.mxu0 %v157
    %v2486 = vpop.f32.mrf.mxu0
    %v2487 = vadd.f32 %v128, %v2486
    %v2488 = vpop.f32.mrf.mxu0
    %v2489 = vadd.f32 %v133, %v2488
    %2490 = vmatmul.bf16.gmra.mxu0 %v160
    %v2491 = vpop.f32.mrf.mxu0
    %v2492 = vadd.f32 %v138, %v2491
    %v2493 = vpop.f32.mrf.mxu0
    %v2494 = vadd.f32 %v143, %v2493
    %2495 = vdwg.mxu0
    %v2496 = vmax.f32 %v2487, 0.0
    %v2497 = vmax.f32 %v2489, 0.0
    %v2498 = vmax.f32 %v2492, 0.0
    %v2499 = vmax.f32 %v2494, 0.0
    %v2500 = vpack.c.bf16 %v2497, %v2496
    %v2501 = vpack.c.bf16 %v2499, %v2498
    %2502 = vmatpush.bf16.msra.mxu0 0
    %2503 = vmatpush.bf16.msra.mxu0 0
    %2504 = vmatpush.bf16.msra.mxu0 0
    %2505 = vmatpush.bf16.msra.mxu0 0
    %2506 = vmatpush.bf16.msra.mxu0 0
    %2507 = vmatpush.bf16.msra.mxu0 0
    %2508 = vmatpush.bf16.msra.mxu0 %v2501
    %2509 = vmatpush.bf16.msra.mxu0 %v2500
    %2510 = vmatmul.bf16.gmra.mxu0 %v214
    %v2511 = vpop.f32.mrf.mxu0
    %v2512 = vadd.f32 %v189, %v2511
    %v2513 = vpop.f32.mrf.mxu0
    %v2514 = vadd.f32 %v193, %v2513
    %2515 = vmatmul.bf16.gmra.mxu0 %v217
    %v2516 = vpop.f32.mrf.mxu0
    %v2517 = vadd.f32 %v197, %v2516
    %v2518 = vpop.f32.mrf.mxu0
    %v2519 = vadd.f32 %v201, %v2518
    %2520 = vdwg.mxu0
    %v2521 = vmax.f32 %v2512, 0.0
    %v2522 = vmax.f32 %v2514, 0.0
    %v2523 = vmax.f32 %v2517, 0.0
    %v2524 = vmax.f32 %v2519, 0.0
    %v2525 = vpack.c.bf16 %v2522, %v2521
    %v2526 = vpack.c.bf16 %v2524, %v2523
    %2527 = vmatpush.bf16.msra.mxu0 0
    %2528 = vmatpush.bf16.msra.mxu0 0
    %2529 = vmatpush.bf16.msra.mxu0 0
    %2530 = vmatpush.bf16.msra.mxu0 0
    %2531 = vmatpush.bf16.msra.mxu0 0
    %2532 = vmatpush.bf16.msra.mxu0 0
    %2533 = vmatpush.bf16.msra.mxu0 %v2526
    %2534 = vmatpush.bf16.msra.mxu0 %v2525
    %2535 = vmatmul.bf16.gmra.mxu0 %v271
    %v2536 = vpop.f32.mrf.mxu0
    %v2537 = vadd.f32 %v246, %v2536
    %v2538 = vpop.f32.mrf.mxu0
    %v2539 = vadd.f32 %v250, %v2538
    %2540 = vmatmul.bf16.gmra.mxu0 %v274
    %v2541 = vpop.f32.mrf.mxu0
    %v2542 = vadd.f32 %v254, %v2541
    %v2543 = vpop.f32.mrf.mxu0
    %v2544 = vadd.f32 %v258, %v2543
    %2545 = vdwg.mxu0
    %v2546 = vmax.f32 %v2537, 0.0
    %v2547 = vmax.f32 %v2539, 0.0
    %v2548 = vmax.f32 %v2542, 0.0
    %v2549 = vmax.f32 %v2544, 0.0
    %v2550 = vpack.c.bf16 %v2547, %v2546
    %v2551 = vpack.c.bf16 %v2549, %v2548
    %v2556 = vunpack.c.l.b16 %v2432
    %v2557 = vunpack.c.l.b16 %v2433
    %v2558 = vunpack.c.l.b16 %v2434
    %v2559 = vunpack.c.l.b16 %v2435
    %v2560 = vpack.c.b16 %v2557, %v2556
    %v2561 = vpack.c.b16 %v2559, %v2558
    %v2563 = vsel %vm93, %v2560, 0
    %v2566 = vsel %vm93, %v2561, 0
    %2568 = vmatpush.bf16.msra.mxu0 0
    %2569 = vmatpush.bf16.msra.mxu0 0
    %2570 = vmatpush.bf16.msra.mxu0 0
    %2571 = vmatpush.bf16.msra.mxu0 0
    %2572 = vmatpush.bf16.msra.mxu0 0
    %2573 = vmatpush.bf16.msra.mxu0 0
    %2574 = vmatpush.bf16.msra.mxu0 0
    %2575 = vmatpush.bf16.msra.mxu0 %v91
    %2576 = vmatmul.bf16.gmra.mxu0 %v2563
    %v2577 = vpop.f32.mrf.mxu0
    %v2578 = vadd.f32 0.0, %v2577
    %v2579 = vpop.f32.mrf.mxu0
    %v2580 = vadd.f32 0.0, %v2579
    %2581 = vmatmul.bf16.gmra.mxu0 %v2566
    %v2582 = vpop.f32.mrf.mxu0
    %v2583 = vadd.f32 0.0, %v2582
    %v2584 = vpop.f32.mrf.mxu0
    %v2585 = vadd.f32 0.0, %v2584
    %2586 = vdwg.mxu0
    %2587 = vmatpush.bf16.msra.mxu0 0
    %2588 = vmatpush.bf16.msra.mxu0 0
    %2589 = vmatpush.bf16.msra.mxu0 0
    %2590 = vmatpush.bf16.msra.mxu0 0
    %2591 = vmatpush.bf16.msra.mxu0 0
    %2592 = vmatpush.bf16.msra.mxu0 0
    %2593 = vmatpush.bf16.msra.mxu0 %v2551
    %2594 = vmatpush.bf16.msra.mxu0 %v2550
    %2595 = vmatmul.bf16.gmra.mxu0 %v347
    %v2596 = vpop.f32.mrf.mxu0
    %v2597 = vadd.f32 %v2578, %v2596
    %v2598 = vpop.f32.mrf.mxu0
    %v2599 = vadd.f32 %v2580, %v2598
    %2600 = vmatmul.bf16.gmra.mxu0 %v350
    %v2601 = vpop.f32.mrf.mxu0
    %v2602 = vadd.f32 %v2583, %v2601
    %v2603 = vpop.f32.mrf.mxu0
    %v2604 = vadd.f32 %v2585, %v2603
    %2605 = vdwg.mxu0
    %v2606 = vmax.f32 %v2597, 0.0
    %v2607 = vmax.f32 %v2599, 0.0
    %v2608 = vmax.f32 %v2602, 0.0
    %v2609 = vmax.f32 %v2604, 0.0
    %v2610 = vpack.c.bf16 %v2607, %v2606
    %v2611 = vpack.c.bf16 %v2609, %v2608
    %2612 = vmatpush.bf16.msra.mxu0 0
    %2613 = vmatpush.bf16.msra.mxu0 0
    %2614 = vmatpush.bf16.msra.mxu0 0
    %2615 = vmatpush.bf16.msra.mxu0 0
    %2616 = vmatpush.bf16.msra.mxu0 0
    %2617 = vmatpush.bf16.msra.mxu0 0
    %2618 = vmatpush.bf16.msra.mxu0 %v2611
    %2619 = vmatpush.bf16.msra.mxu0 %v2610
    %2620 = vmatmul.bf16.gmra.mxu0 %v404
    %v2621 = vpop.f32.mrf.mxu0
    %v2622 = vadd.f32 %v379, %v2621
    %v2623 = vpop.f32.mrf.mxu0
    %v2624 = vadd.f32 %v383, %v2623
    %2625 = vmatmul.bf16.gmra.mxu0 %v407
    %v2626 = vpop.f32.mrf.mxu0
    %v2627 = vadd.f32 %v387, %v2626
    %v2628 = vpop.f32.mrf.mxu0
    %v2629 = vadd.f32 %v391, %v2628
    %2630 = vdwg.mxu0
    %v2631 = vmax.f32 %v2622, 0.0
    %v2632 = vmax.f32 %v2624, 0.0
    %v2633 = vmax.f32 %v2627, 0.0
    %v2634 = vmax.f32 %v2629, 0.0
    %v2635 = vpack.c.bf16 %v2632, %v2631
    %v2636 = vpack.c.bf16 %v2634, %v2633
    %2637 = vmatpush.bf16.msra.mxu0 0
    %2638 = vmatpush.bf16.msra.mxu0 0
    %2639 = vmatpush.bf16.msra.mxu0 0
    %2640 = vmatpush.bf16.msra.mxu0 0
    %2641 = vmatpush.bf16.msra.mxu0 0
    %2642 = vmatpush.bf16.msra.mxu0 0
    %2643 = vmatpush.bf16.msra.mxu0 %v2636
    %2644 = vmatpush.bf16.msra.mxu0 %v2635
    %2645 = vmatmul.bf16.gmra.mxu0 %v461
    %v2646 = vpop.f32.mrf.mxu0
    %v2647 = vadd.f32 %v436, %v2646
    %v2648 = vpop.f32.mrf.mxu0
    %v2649 = vadd.f32 %v440, %v2648
    %2650 = vmatmul.bf16.gmra.mxu0 %v464
    %v2651 = vpop.f32.mrf.mxu0
    %v2652 = vadd.f32 %v444, %v2651
    %v2653 = vpop.f32.mrf.mxu0
    %v2654 = vadd.f32 %v448, %v2653
    %2655 = vdwg.mxu0
    %v2656 = vmax.f32 %v2647, 0.0
    %v2657 = vmax.f32 %v2649, 0.0
    %v2658 = vmax.f32 %v2652, 0.0
    %v2659 = vmax.f32 %v2654, 0.0
    %v2660 = vpack.c.bf16 %v2657, %v2656
    %v2661 = vpack.c.bf16 %v2659, %v2658
    %2662 = vmatpush.bf16.msra.mxu0 0
    %2663 = vmatpush.bf16.msra.mxu0 0
    %2664 = vmatpush.bf16.msra.mxu0 0
    %2665 = vmatpush.bf16.msra.mxu0 0
    %2666 = vmatpush.bf16.msra.mxu0 0
    %2667 = vmatpush.bf16.msra.mxu0 0
    %2668 = vmatpush.bf16.msra.mxu0 %v2661
    %2669 = vmatpush.bf16.msra.mxu0 %v2660
    %2670 = vmatmul.bf16.gmra.mxu0 %v518
    %v2671 = vpop.f32.mrf.mxu0
    %v2672 = vadd.f32 %v493, %v2671
    %v2673 = vpop.f32.mrf.mxu0
    %v2674 = vadd.f32 %v497, %v2673
    %2675 = vmatmul.bf16.gmra.mxu0 %v521
    %v2676 = vpop.f32.mrf.mxu0
    %v2677 = vadd.f32 %v501, %v2676
    %v2678 = vpop.f32.mrf.mxu0
    %v2679 = vadd.f32 %v505, %v2678
    %2680 = vdwg.mxu0
    %v2681 = vmax.f32 %v2672, 0.0
    %v2682 = vmax.f32 %v2674, 0.0
    %v2683 = vmax.f32 %v2677, 0.0
    %v2684 = vmax.f32 %v2679, 0.0
    %v2685 = vpack.c.bf16 %v2682, %v2681
    %v2686 = vpack.c.bf16 %v2684, %v2683
    %2687 = vmatpush.bf16.msra.mxu0 0
    %2688 = vmatpush.bf16.msra.mxu0 0
    %2689 = vmatpush.bf16.msra.mxu0 0
    %2690 = vmatpush.bf16.msra.mxu0 0
    %2691 = vmatpush.bf16.msra.mxu0 0
    %2692 = vmatpush.bf16.msra.mxu0 0
    %2693 = vmatpush.bf16.msra.mxu0 %v2686
    %2694 = vmatpush.bf16.msra.mxu0 %v2685
    %2695 = vmatmul.bf16.gmra.mxu0 %v575
    %v2696 = vpop.f32.mrf.mxu0
    %v2697 = vadd.f32 %v550, %v2696
    %v2698 = vpop.f32.mrf.mxu0
    %v2699 = vadd.f32 %v554, %v2698
    %2700 = vmatmul.bf16.gmra.mxu0 %v578
    %v2701 = vpop.f32.mrf.mxu0
    %v2702 = vadd.f32 %v558, %v2701
    %v2703 = vpop.f32.mrf.mxu0
    %v2704 = vadd.f32 %v562, %v2703
    %2705 = vdwg.mxu0
    %v2706 = vmax.f32 %v2697, 0.0
    %v2707 = vmax.f32 %v2699, 0.0
    %v2708 = vmax.f32 %v2702, 0.0
    %v2709 = vmax.f32 %v2704, 0.0
    %v2710 = vmul.f32 %v2706, %v605
    %v2711 = vmul.f32 %v2707, %v609
    %v2712 = vmul.f32 %v2708, %v613
    %v2713 = vmul.f32 %v2709, %v617
    %v2714 = vadd.f32 %v2710, %v2711
    %v2715 = vadd.f32 %v2714, %v2712
    %v2716 = vadd.f32 %v2715, %v2713
    %v2717 = vrot.slane %v2716, 4
    %v2718 = vadd.f32 %v2716, %v2717
    %v2719 = vrot.slane %v2718, 2
    %v2720 = vadd.f32 %v2718, %v2719
    %v2721 = vrot.slane %v2720, 1
    %v2722 = vadd.f32 %v2720, %v2721
    %v2723 = vadd.f32 %v2722, %v635
    %v2725 = vrot.slane %v935, 7
    %v2728 = vrot.slane %v1233, 6
    %v2731 = vrot.slane %v1531, 5
    %v2734 = vrot.slane %v1829, 4
    %v2737 = vrot.slane %v2127, 3
    %v2740 = vrot.slane %v2425, 2
    %v2743 = vrot.slane %v2723, 1
    %vm2745 = vcmask 1040384
    %v2746 = vsel %vm2745, %v637, %v2725
    %vm2747 = vcmask 1041408
    %v2748 = vsel %vm2747, %v2746, %v2728
    %vm2749 = vcmask 1042432
    %v2750 = vsel %vm2749, %v2748, %v2731
    %vm2751 = vcmask 1043456
    %v2752 = vsel %vm2751, %v2750, %v2734
    %vm2753 = vcmask 1044480
    %v2754 = vsel %vm2753, %v2752, %v2737
    %vm2755 = vcmask 1045504
    %v2756 = vsel %vm2755, %v2754, %v2740
    %vm2757 = vcmask 1046528
    %v2758 = vsel %vm2757, %v2756, %v2743
    %v2759 = vpack.c.bf16 %v2758, %v2758
    %2760 = vst [vmem:[#allocation2] sm:$0xf] %v2759
    %v2761 = vrot.slane %v2758, 4
    %v2762 = vadd.f32 %v2758, %v2761
    %v2763 = vrot.slane %v2762, 2
    %v2764 = vadd.f32 %v2762, %v2763
    %v2765 = vrot.slane %v2764, 1
    %v2766 = vadd.f32 %v2764, %v2765
    %v2767 = vmul.f32 %v2766, 0.125
    %2768 = vst [vmem:[#allocation4] sm:$0x1] %v2767
    // Predicated region
    $region18: #{tpu_custom_call.1} parent=1 // pred_check
      _
    $region19: #{tpu_custom_call.1} parent=1 // pred_check_branch
      %2770 = sbr.rel (0) target = $region21
    $region20: #{tpu_custom_call.1} parent=1 // pred_region
      %2772 = vsyncadd [#allocation3], 0
      %s2774 = sshll.u32 [#allocation2], 4
      %s2775 = int_to_ptr.vmem [resolvable:$true] %s2774
      %s2776 = sshll.u32 %s4, 4
      %s2777 = int_to_ptr.hbm [resolvable:$true] %s2776
      %2779 = dma.vmem_to_hbm [thread:$0]  %s2775, 64, %s2777, [#allocation3]
    $region21: #{tpu_custom_call.1} parent=1 // pred_fallthru
      _
    // Predicated region
    $region22: #{tpu_custom_call.1} parent=1 // pred_check
      _
    $region23: #{tpu_custom_call.1} parent=1 // pred_check_branch
      %2781 = sbr.rel (0) target = $region25
    $region24: #{tpu_custom_call.1} parent=1 // pred_region
      %2783 = vsyncadd [#allocation5], 0
      %s2785 = sshll.u32 [#allocation4], 4
      %s2786 = int_to_ptr.vmem [resolvable:$true] %s2785
      %s2787 = sshll.u32 %s5, 4
      %s2788 = int_to_ptr.hbm [resolvable:$true] %s2787
      %2790 = dma.vmem_to_hbm [thread:$0]  %s2786, 16, %s2788, [#allocation5]
    $region25: #{tpu_custom_call.1} parent=1 // pred_fallthru
      _
    // Predicated region
    $region26: #{tpu_custom_call.1} parent=1 // pred_check
      _
    $region27: #{tpu_custom_call.1} parent=1 // pred_check_branch
      %2792 = sbr.rel (0) target = $region29
    $region28: #{tpu_custom_call.1} parent=1 // pred_region
      %2794 = dma.done [#allocation3], 64
    $region29: #{tpu_custom_call.1} parent=1 // pred_fallthru
      _
    // Predicated region
    $region30: #{tpu_custom_call.1} parent=1 // pred_check
      _
    $region31: #{tpu_custom_call.1} parent=1 // pred_check_branch
      %2796 = sbr.rel (0) target = $region33
    $region32: #{tpu_custom_call.1} parent=1 // pred_region
      %2798 = dma.done [#allocation5], 16
    $region33: #{tpu_custom_call.1} parent=1 // pred_fallthru
      _
    %2799 = vsyncpa [#allocation3], 1
    %2800 = vsyncpa [#allocation5], 1

</llo_original>
